<compile_context>
chip_gen: v6e
topology: v6e:2x2x1
jax: 0.10.0
libtpu: 0.0.40
codegen_flags: <defaults>
</compile_context>

<pallas_src>
import functools

import jax
import jax.numpy as jnp
from jax import lax
from jax.experimental import pallas as pl
from jax.experimental.pallas import tpu as pltpu


def _round_up(n, m=8):
    return ((n + m - 1) // m) * m


# ----------------------------- fused Pallas kernel ---------------------------


def _rnnp_fused_kernel(x_ref, gate_ref, proj_ref, out_ref, states_ref,
                       xw_ref, ys_ref, *, T, H, P, subs, in_dims,
                       gate_offs, proj_offs, n_layers):
    """Fused RNNP forward.

    refs (all VMEM):
      inputs : x (T, D0), gate slab (rows, 4H), proj slab (rows, P)
      outputs: out (T_final, P), states (2*n_layers, H) rows = [h0,c0,h1,c1,...]
      scratch: xw (T, 4H) f32, ys (T, H) f32
    All slab offsets are static Python ints baked in via functools.partial.
    """
    x = x_ref[...].astype(jnp.float32)
    t_cur = T
    for layer in range(n_layers):
        D = in_dims[layer]
        wih_off, whh_off, b_off = gate_offs[layer]
        wproj_off, bproj_off = proj_offs[layer]

        # Input contribution for every timestep in one MXU matmul, parked in
        # VMEM scratch so the recurrence only does per-row vector loads.
        wih_t = gate_ref[pl.ds(wih_off, D), :]
        b_row = gate_ref[pl.ds(b_off, 1), :]
        xw_ref[pl.ds(0, t_cur), :] = (
            jnp.dot(x, wih_t, preferred_element_type=jnp.float32) + b_row
        )

        # Hoist W_hh^T into vregs once; stays resident across all timesteps.
        whh = gate_ref[pl.ds(whh_off, H), :]
        # TODO(synk): pin W_hh^T in the MXU via pltpu.matmul_push_rhs /
        # matmul_acc_lhs / matmul_pop (and on v7x fuse the xw add through MRB
        # acc_addrs) to shave the per-step RHS push off the serial carry chain.

        sub = subs[layer]
        h = jnp.zeros((1, H), jnp.float32)
        c = jnp.zeros((1, H), jnp.float32)
        # Fully unrolled recurrence (T static & small).
        for t in range(t_cur):
            gates = xw_ref[pl.ds(t, 1), :] + jnp.dot(
                h, whh, preferred_element_type=jnp.float32
            )
            # Single EUP op for all four gates: sigmoid's 0.5 pre-scale is
            # folded into the i/f/o columns at prepare_params, so
            # sigmoid(x) == 0.5*tanh(x/2)+0.5 needs only this one tanh plus a
            # cheap full-vreg VALU affine.
            act = jnp.tanh(gates)
            sig = 0.5 * act + 0.5
            i = sig[:, 0:H]
            f = sig[:, H:2 * H]
            o = sig[:, 3 * H:4 * H]
            g = act[:, 2 * H:3 * H]
            c = f * c + i * g
            h = o * jnp.tanh(c)
            if t % sub == 0:
                # Store only the kept (subsampled) timesteps; off the carry
                # dependency chain so it overlaps with the next step.
                ys_ref[pl.ds(t // sub, 1), :] = h
        # Final states packed into one output: rows [h0, c0, h1, c1, ...].
        states_ref[pl.ds(2 * layer, 1), :] = h
        states_ref[pl.ds(2 * layer + 1, 1), :] = c

        # Subsampled length for the projection / next layer.
        t_cur = len(range(0, t_cur, sub))
        ys = ys_ref[pl.ds(0, t_cur), :]
        wproj_t = proj_ref[pl.ds(wproj_off, H), :]
        bproj = proj_ref[pl.ds(bproj_off, 1), :]
        z = jnp.dot(ys, wproj_t, preferred_element_type=jnp.float32) + bproj
        if layer < n_layers - 1:
            z = jnp.tanh(z)
        x = z

    out_ref[...] = x.astype(out_ref.dtype)


# ------------------------------ JAX wrappers ---------------------------------

_VMEM = pl.BlockSpec(memory_space=pltpu.MemorySpace.VMEM)


def prepare_params(params):
    """One-time parameter prep (outside the per-forward path).

    * Transposes weights to row-major layouts and folds the two LSTM biases.
    * Folds the 0.5 of sigmoid(x)=0.5*tanh(x/2)+0.5 into the i/f/o gate columns.
    * Packs everything into two contiguous f32 slabs (8-row-aligned sections):
        gate slab (rows, 4H):  per layer [W_ih^T | W_hh^T | bias]
        proj slab (rows, P):   per layer [W_proj^T | b_proj]
    Returns (gate_slab, proj_slab, meta) with meta a hashable tuple of static
    layout info consumed by the kernel.
    """
    n_layers = len(params)
    H = params[0]["w_hh"].shape[1]
    P = params[0]["w_proj"].shape[0]
    # 0.5 on i/f/o gate columns (sigmoid fold), 1.0 on g (tanh) columns.
    col_scale = jnp.concatenate(
        [jnp.full((H,), 0.5), jnp.full((H,), 0.5),
         jnp.ones((H,)), jnp.full((H,), 0.5)]
    ).astype(jnp.float32)

    gate_sections, proj_sections = [], []
    gate_offs, proj_offs, in_dims = [], [], []
    g_off = 0
    p_off = 0
    for p in params:
        w_ih = jnp.asarray(p["w_ih"], jnp.float32)            # (4H, D)
        w_hh = jnp.asarray(p["w_hh"], jnp.float32)            # (4H, H)
        bias = (jnp.asarray(p["b_ih"], jnp.float32)
                + jnp.asarray(p["b_hh"], jnp.float32)) * col_scale
        D = w_ih.shape[1]
        in_dims.append(D)
        wih_t = w_ih.T * col_scale[None, :]                    # (D, 4H)
        whh_t = w_hh.T * col_scale[None, :]                    # (H, 4H)

        wih_pad, whh_pad = _round_up(D), _round_up(H)
        wih_off = g_off
        whh_off = wih_off + wih_pad
        b_off = whh_off + whh_pad
        section_rows = wih_pad + whh_pad + 8
        gate_offs.append((wih_off, whh_off, b_off))
        g_off += section_rows

        sec = jnp.zeros((section_rows, 4 * H), jnp.float32)
        sec = sec.at[0:D].set(wih_t)
        sec = sec.at[wih_pad:wih_pad + H].set(whh_t)
        sec = sec.at[wih_pad + whh_pad].set(bias)
        gate_sections.append(sec)

        w_proj = jnp.asarray(p["w_proj"], jnp.float32)         # (P, H)
        b_proj = jnp.asarray(p["b_proj"], jnp.float32)         # (P,)
        wproj_off = p_off
        bproj_off = wproj_off + _round_up(H)
        psec_rows = _round_up(H) + 8
        proj_offs.append((wproj_off, bproj_off))
        p_off += psec_rows

        psec = jnp.zeros((psec_rows, P), jnp.float32)
        psec = psec.at[0:H].set(w_proj.T)
        psec = psec.at[_round_up(H)].set(b_proj)
        proj_sections.append(psec)

    gate_slab = jnp.concatenate(gate_sections, axis=0)
    proj_slab = jnp.concatenate(proj_sections, axis=0)
    meta = (H, P, tuple(in_dims), tuple(gate_offs), tuple(proj_offs), n_layers)
    return gate_slab, proj_slab, meta


@functools.partial(jax.jit, static_argnames=("subsample", "meta"))
def onnx_rnnp_forward(xs_pad, ilens, gate_slab, proj_slab, subsample, meta):
    """xs_pad: (1, T, idim), ilens: (1,) int32. Returns (xs_pad, ilens, states)."""
    H, P, in_dims, gate_offs, proj_offs, n_layers = meta
    x = xs_pad[0].astype(jnp.float32)   # batch is always 1 in ONNX inference
    T = x.shape[0]
    subs = tuple(int(s) for s in subsample[1:1 + n_layers])

    # Static sequence length after all subsampling.
    t_final = T
    for sub in subs:
        t_final = len(range(0, t_final, sub))

    kern = functools.partial(
        _rnnp_fused_kernel, T=T, H=H, P=P, subs=subs, in_dims=in_dims,
        gate_offs=gate_offs, proj_offs=proj_offs, n_layers=n_layers,
    )
    out, states = pl.pallas_call(
        kern,
        out_shape=(
            jax.ShapeDtypeStruct((t_final, P), jnp.float32),
            jax.ShapeDtypeStruct((2 * n_layers, H), jnp.float32),
        ),
        in_specs=[_VMEM, _VMEM, _VMEM],
        out_specs=(_VMEM, _VMEM),
        scratch_shapes=[
            pltpu.VMEM((T, 4 * H), jnp.float32),   # xw scratch (input matmul)
            pltpu.VMEM((T, H), jnp.float32),       # ys scratch (hidden states)
        ],
    )(x, gate_slab, proj_slab)

    xs_out = out[None, :, :]
    elayer_states = []
    for layer in range(n_layers):
        # torch nn.LSTM state shape: (num_dirs * num_layers, batch, cdim)
        h_n = states[2 * layer][None, None, :]
        c_n = states[2 * layer + 1][None, None, :]
        elayer_states.append((h_n, c_n))

    new_ilens = ilens
    for sub in subs:
        if sub > 1:
            new_ilens = new_ilens // sub
    return xs_out, new_ilens, elayer_states


# ------------------------- pure-JAX reference check --------------------------


def _ref_lstm(x, w_ih, w_hh, b_ih, b_hh):
    H = w_hh.shape[1]
    b = b_ih + b_hh

    def step(carry, x_t):
        h, c = carry
        gates = x_t @ w_ih.T + h @ w_hh.T + b
        i = jax.nn.sigmoid(gates[0:H])
        f = jax.nn.sigmoid(gates[H:2 * H])
        g = jnp.tanh(gates[2 * H:3 * H])
        o = jax.nn.sigmoid(gates[3 * H:4 * H])
        c = f * c + i * g
        h = o * jnp.tanh(c)
        return (h, c), h

    (h, c), ys = lax.scan(step, (jnp.zeros(H), jnp.zeros(H)), x)
    return ys, h, c


def _ref_forward(xs_pad, ilens, params, subsample):
    x = xs_pad[0]
    n_layers = len(params)
    states = []
    for layer, p in enumerate(params):
        ys, h, c = _ref_lstm(x, p["w_ih"], p["w_hh"], p["b_ih"], p["b_hh"])
        states.append((h, c))
        sub = int(subsample[layer + 1])
        if sub > 1:
            ys = ys[::sub]
            ilens = ilens // sub
        x = ys @ p["w_proj"].T + p["b_proj"]
        if layer < n_layers - 1:
            x = jnp.tanh(x)
    return x[None], ilens, states


# ---------------------------------- main ------------------------------------

if __name__ == "__main__":
    # Synthetic RNNP config.
    B, T = 1, 16
    idim, cdim, hdim = 16, 32, 32
    elayers = 2
    subsample = (1, 2, 1)  # subsample[layer + 1] applied after each layer

    key = jax.random.PRNGKey(0)

    def _init(key, shape, scale=0.1):
        return scale * jax.random.normal(key, shape, dtype=jnp.float32)

    params = []
    in_dim = idim
    for layer in range(elayers):
        key, k1, k2, k3, k4, k5, k6 = jax.random.split(key, 7)
        params.append(
            {
                "w_ih": _init(k1, (4 * cdim, in_dim)),
                "w_hh": _init(k2, (4 * cdim, cdim)),
                "b_ih": _init(k3, (4 * cdim,)),
                "b_hh": _init(k4, (4 * cdim,)),
                "w_proj": _init(k5, (hdim, cdim)),
                "b_proj": _init(k6, (hdim,)),
            }
        )
        in_dim = hdim

    key, kx = jax.random.split(key)
    xs_pad = jax.random.normal(kx, (B, T, idim), dtype=jnp.float32)
    ilens = jnp.array([T], dtype=jnp.int32)

    # One-time prep (transposes, bias folding, sigmoid 0.5 fold, slab packing).
    gate_slab, proj_slab, meta = prepare_params(params)

    out, out_ilens, states = onnx_rnnp_forward(
        xs_pad, ilens, gate_slab, proj_slab, subsample=subsample, meta=meta
    )
    out = jax.block_until_ready(out)
    out_ilens = jax.block_until_ready(out_ilens)
    states = jax.block_until_ready(states)

    # Correctness check against a pure-JAX reference.
    ref_out, ref_ilens, ref_states = _ref_forward(xs_pad, ilens, params, subsample)
    assert out.shape == ref_out.shape, (out.shape, ref_out.shape)
    assert jnp.allclose(out, ref_out, atol=1e-4, rtol=1e-4)
    assert jnp.array_equal(out_ilens, ref_ilens)
    for layer in range(elayers):
        assert states[layer][0].shape == (1, 1, cdim)
        assert states[layer][1].shape == (1, 1, cdim)
        assert jnp.allclose(states[layer][0][0, 0], ref_states[layer][0],
                            atol=1e-4, rtol=1e-4)
        assert jnp.allclose(states[layer][1][0, 0], ref_states[layer][1],
                            atol=1e-4, rtol=1e-4)

    print("KERNEL_OK")
</pallas_src>

<mosaic_0001>
module attributes {stable_mosaic.version = 11 : i64} {
  func.func @_rnnp_fused_kernel(%arg0: memref<16x16xf32, #tpu.memory_space<vmem>>, %arg1: memref<128x128xf32, #tpu.memory_space<vmem>>, %arg2: memref<80x32xf32, #tpu.memory_space<vmem>>, %arg3: memref<8x32xf32, #tpu.memory_space<vmem>>, %arg4: memref<4x32xf32, #tpu.memory_space<vmem>>, %arg5: memref<16x128xf32, #tpu.memory_space<vmem>>, %arg6: memref<16x32xf32, #tpu.memory_space<vmem>>) attributes {dimension_semantics = [], scalar_prefetch = 0 : i64, scratch_operands = 2 : i64, tpu.core_type = #tpu.core_type<tc>} {
    %c0 = arith.constant 0 : index
    %c0_0 = arith.constant 0 : index
    %0 = vector.load %arg0[%c0, %c0_0] : memref<16x16xf32, #tpu.memory_space<vmem>>, vector<16x16xf32>
    %c0_1 = arith.constant 0 : index
    %c0_2 = arith.constant 0 : index
    %1 = vector.load %arg1[%c0_1, %c0_2] : memref<128x128xf32, #tpu.memory_space<vmem>>, vector<16x128xf32>
    %c48 = arith.constant 48 : index
    %c0_3 = arith.constant 0 : index
    %2 = vector.load %arg1[%c48, %c0_3] : memref<128x128xf32, #tpu.memory_space<vmem>>, vector<1x128xf32>
    %cst = arith.constant dense<0.000000e+00> : vector<16x128xf32>
    %3 = tpu.matmul %0, %1, %cst {dimension_numbers = #tpu.dot_dimension_numbers<[1], [0], [0], [1], [0, 0, 1, 1], [], []>} : vector<16x16xf32>, vector<16x128xf32>, vector<16x128xf32> -> vector<16x128xf32>
    %4 = vector.broadcast %2 : vector<1x128xf32> to vector<16x128xf32>
    %5 = arith.addf %3, %4 : vector<16x128xf32>
    %c0_4 = arith.constant 0 : index
    %c0_5 = arith.constant 0 : index
    %6 = vector.load %arg5[%c0_4, %c0_5] : memref<16x128xf32, #tpu.memory_space<vmem>>, vector<16x128xf32>
    tpu.vector_store %arg5[%c0_4, %c0_5], %5 {strides = array<i32>} : memref<16x128xf32, #tpu.memory_space<vmem>>, vector<16x128xf32>,
    %c16 = arith.constant 16 : index
    %c0_6 = arith.constant 0 : index
    %7 = vector.load %arg1[%c16, %c0_6] : memref<128x128xf32, #tpu.memory_space<vmem>>, vector<32x128xf32>
    %cst_7 = arith.constant 0.000000e+00 : f32
    %8 = vector.broadcast %cst_7 : f32 to vector<1x32xf32>
    %cst_8 = arith.constant 0.000000e+00 : f32
    %9 = vector.broadcast %cst_8 : f32 to vector<1x32xf32>
    %c0_9 = arith.constant 0 : index
    %c0_10 = arith.constant 0 : index
    %10 = vector.load %arg5[%c0_9, %c0_10] : memref<16x128xf32, #tpu.memory_space<vmem>>, vector<1x128xf32>
    %cst_11 = arith.constant dense<0.000000e+00> : vector<1x128xf32>
    %11 = tpu.matmul %8, %7, %cst_11 {dimension_numbers = #tpu.dot_dimension_numbers<[1], [0], [0], [1], [0, 0, 1, 1], [], []>} : vector<1x32xf32>, vector<32x128xf32>, vector<1x128xf32> -> vector<1x128xf32>
    %12 = arith.addf %10, %11 : vector<1x128xf32>
    %13 = math.tanh %12 : vector<1x128xf32>
    %cst_12 = arith.constant 5.000000e-01 : f32
    %14 = vector.broadcast %cst_12 : f32 to vector<1x128xf32>
    %15 = arith.mulf %14, %13 : vector<1x128xf32>
    %cst_13 = arith.constant 5.000000e-01 : f32
    %16 = vector.broadcast %cst_13 : f32 to vector<1x128xf32>
    %17 = arith.addf %15, %16 : vector<1x128xf32>
    %18 = vector.extract_strided_slice %17 {offsets = [0, 0], sizes = [1, 32], strides = [1, 1]} : vector<1x128xf32> to vector<1x32xf32>
    %19 = vector.extract_strided_slice %17 {offsets = [0, 32], sizes = [1, 32], strides = [1, 1]} : vector<1x128xf32> to vector<1x32xf32>
    %20 = vector.extract_strided_slice %17 {offsets = [0, 96], sizes = [1, 32], strides = [1, 1]} : vector<1x128xf32> to vector<1x32xf32>
    %21 = vector.extract_strided_slice %13 {offsets = [0, 64], sizes = [1, 32], strides = [1, 1]} : vector<1x128xf32> to vector<1x32xf32>
    %22 = arith.mulf %19, %9 : vector<1x32xf32>
    %23 = arith.mulf %18, %21 : vector<1x32xf32>
    %24 = arith.addf %22, %23 : vector<1x32xf32>
    %25 = math.tanh %24 : vector<1x32xf32>
    %26 = arith.mulf %20, %25 : vector<1x32xf32>
    %c0_14 = arith.constant 0 : index
    %c0_15 = arith.constant 0 : index
    %27 = vector.load %arg6[%c0_14, %c0_15] : memref<16x32xf32, #tpu.memory_space<vmem>>, vector<1x32xf32>
    tpu.vector_store %arg6[%c0_14, %c0_15], %26 {strides = array<i32>} : memref<16x32xf32, #tpu.memory_space<vmem>>, vector<1x32xf32>,
    %c1 = arith.constant 1 : index
    %c0_16 = arith.constant 0 : index
    %28 = vector.load %arg5[%c1, %c0_16] : memref<16x128xf32, #tpu.memory_space<vmem>>, vector<1x128xf32>
    %cst_17 = arith.constant dense<0.000000e+00> : vector<1x128xf32>
    %29 = tpu.matmul %26, %7, %cst_17 {dimension_numbers = #tpu.dot_dimension_numbers<[1], [0], [0], [1], [0, 0, 1, 1], [], []>} : vector<1x32xf32>, vector<32x128xf32>, vector<1x128xf32> -> vector<1x128xf32>
    %30 = arith.addf %28, %29 : vector<1x128xf32>
    %31 = math.tanh %30 : vector<1x128xf32>
    %cst_18 = arith.constant 5.000000e-01 : f32
    %32 = vector.broadcast %cst_18 : f32 to vector<1x128xf32>
    %33 = arith.mulf %32, %31 : vector<1x128xf32>
    %cst_19 = arith.constant 5.000000e-01 : f32
    %34 = vector.broadcast %cst_19 : f32 to vector<1x128xf32>
    %35 = arith.addf %33, %34 : vector<1x128xf32>
    %36 = vector.extract_strided_slice %35 {offsets = [0, 0], sizes = [1, 32], strides = [1, 1]} : vector<1x128xf32> to vector<1x32xf32>
    %37 = vector.extract_strided_slice %35 {offsets = [0, 32], sizes = [1, 32], strides = [1, 1]} : vector<1x128xf32> to vector<1x32xf32>
    %38 = vector.extract_strided_slice %35 {offsets = [0, 96], sizes = [1, 32], strides = [1, 1]} : vector<1x128xf32> to vector<1x32xf32>
    %39 = vector.extract_strided_slice %31 {offsets = [0, 64], sizes = [1, 32], strides = [1, 1]} : vector<1x128xf32> to vector<1x32xf32>
    %40 = arith.mulf %37, %24 : vector<1x32xf32>
    %41 = arith.mulf %36, %39 : vector<1x32xf32>
    %42 = arith.addf %40, %41 : vector<1x32xf32>
    %43 = math.tanh %42 : vector<1x32xf32>
    %44 = arith.mulf %38, %43 : vector<1x32xf32>
    %c2 = arith.constant 2 : index
    %c0_20 = arith.constant 0 : index
    %45 = vector.load %arg5[%c2, %c0_20] : memref<16x128xf32, #tpu.memory_space<vmem>>, vector<1x128xf32>
    %cst_21 = arith.constant dense<0.000000e+00> : vector<1x128xf32>
    %46 = tpu.matmul %44, %7, %cst_21 {dimension_numbers = #tpu.dot_dimension_numbers<[1], [0], [0], [1], [0, 0, 1, 1], [], []>} : vector<1x32xf32>, vector<32x128xf32>, vector<1x128xf32> -> vector<1x128xf32>
    %47 = arith.addf %45, %46 : vector<1x128xf32>
    %48 = math.tanh %47 : vector<1x128xf32>
    %cst_22 = arith.constant 5.000000e-01 : f32
    %49 = vector.broadcast %cst_22 : f32 to vector<1x128xf32>
    %50 = arith.mulf %49, %48 : vector<1x128xf32>
    %cst_23 = arith.constant 5.000000e-01 : f32
    %51 = vector.broadcast %cst_23 : f32 to vector<1x128xf32>
    %52 = arith.addf %50, %51 : vector<1x128xf32>
    %53 = vector.extract_strided_slice %52 {offsets = [0, 0], sizes = [1, 32], strides = [1, 1]} : vector<1x128xf32> to vector<1x32xf32>
    %54 = vector.extract_strided_slice %52 {offsets = [0, 32], sizes = [1, 32], strides = [1, 1]} : vector<1x128xf32> to vector<1x32xf32>
    %55 = vector.extract_strided_slice %52 {offsets = [0, 96], sizes = [1, 32], strides = [1, 1]} : vector<1x128xf32> to vector<1x32xf32>
    %56 = vector.extract_strided_slice %48 {offsets = [0, 64], sizes = [1, 32], strides = [1, 1]} : vector<1x128xf32> to vector<1x32xf32>
    %57 = arith.mulf %54, %42 : vector<1x32xf32>
    %58 = arith.mulf %53, %56 : vector<1x32xf32>
    %59 = arith.addf %57, %58 : vector<1x32xf32>
    %60 = math.tanh %59 : vector<1x32xf32>
    %61 = arith.mulf %55, %60 : vector<1x32xf32>
    %c1_24 = arith.constant 1 : index
    %c0_25 = arith.constant 0 : index
    %62 = vector.load %arg6[%c1_24, %c0_25] : memref<16x32xf32, #tpu.memory_space<vmem>>, vector<1x32xf32>
    tpu.vector_store %arg6[%c1_24, %c0_25], %61 {strides = array<i32>} : memref<16x32xf32, #tpu.memory_space<vmem>>, vector<1x32xf32>,
    %c3 = arith.constant 3 : index
    %c0_26 = arith.constant 0 : index
    %63 = vector.load %arg5[%c3, %c0_26] : memref<16x128xf32, #tpu.memory_space<vmem>>, vector<1x128xf32>
    %cst_27 = arith.constant dense<0.000000e+00> : vector<1x128xf32>
    %64 = tpu.matmul %61, %7, %cst_27 {dimension_numbers = #tpu.dot_dimension_numbers<[1], [0], [0], [1], [0, 0, 1, 1], [], []>} : vector<1x32xf32>, vector<32x128xf32>, vector<1x128xf32> -> vector<1x128xf32>
    %65 = arith.addf %63, %64 : vector<1x128xf32>
    %66 = math.tanh %65 : vector<1x128xf32>
    %cst_28 = arith.constant 5.000000e-01 : f32
    %67 = vector.broadcast %cst_28 : f32 to vector<1x128xf32>
    %68 = arith.mulf %67, %66 : vector<1x128xf32>
    %cst_29 = arith.constant 5.000000e-01 : f32
    %69 = vector.broadcast %cst_29 : f32 to vector<1x128xf32>
    %70 = arith.addf %68, %69 : vector<1x128xf32>
    %71 = vector.extract_strided_slice %70 {offsets = [0, 0], sizes = [1, 32], strides = [1, 1]} : vector<1x128xf32> to vector<1x32xf32>
    %72 = vector.extract_strided_slice %70 {offsets = [0, 32], sizes = [1, 32], strides = [1, 1]} : vector<1x128xf32> to vector<1x32xf32>
    %73 = vector.extract_strided_slice %70 {offsets = [0, 96], sizes = [1, 32], strides = [1, 1]} : vector<1x128xf32> to vector<1x32xf32>
    %74 = vector.extract_strided_slice %66 {offsets = [0, 64], sizes = [1, 32], strides = [1, 1]} : vector<1x128xf32> to vector<1x32xf32>
    %75 = arith.mulf %72, %59 : vector<1x32xf32>
    %76 = arith.mulf %71, %74 : vector<1x32xf32>
    %77 = arith.addf %75, %76 : vector<1x32xf32>
    %78 = math.tanh %77 : vector<1x32xf32>
    %79 = arith.mulf %73, %78 : vector<1x32xf32>
    %c4 = arith.constant 4 : index
    %c0_30 = arith.constant 0 : index
    %80 = vector.load %arg5[%c4, %c0_30] : memref<16x128xf32, #tpu.memory_space<vmem>>, vector<1x128xf32>
    %cst_31 = arith.constant dense<0.000000e+00> : vector<1x128xf32>
    %81 = tpu.matmul %79, %7, %cst_31 {dimension_numbers = #tpu.dot_dimension_numbers<[1], [0], [0], [1], [0, 0, 1, 1], [], []>} : vector<1x32xf32>, vector<32x128xf32>, vector<1x128xf32> -> vector<1x128xf32>
    %82 = arith.addf %80, %81 : vector<1x128xf32>
    %83 = math.tanh %82 : vector<1x128xf32>
    %cst_32 = arith.constant 5.000000e-01 : f32
    %84 = vector.broadcast %cst_32 : f32 to vector<1x128xf32>
    %85 = arith.mulf %84, %83 : vector<1x128xf32>
    %cst_33 = arith.constant 5.000000e-01 : f32
    %86 = vector.broadcast %cst_33 : f32 to vector<1x128xf32>
    %87 = arith.addf %85, %86 : vector<1x128xf32>
    %88 = vector.extract_strided_slice %87 {offsets = [0, 0], sizes = [1, 32], strides = [1, 1]} : vector<1x128xf32> to vector<1x32xf32>
    %89 = vector.extract_strided_slice %87 {offsets = [0, 32], sizes = [1, 32], strides = [1, 1]} : vector<1x128xf32> to vector<1x32xf32>
    %90 = vector.extract_strided_slice %87 {offsets = [0, 96], sizes = [1, 32], strides = [1, 1]} : vector<1x128xf32> to vector<1x32xf32>
    %91 = vector.extract_strided_slice %83 {offsets = [0, 64], sizes = [1, 32], strides = [1, 1]} : vector<1x128xf32> to vector<1x32xf32>
    %92 = arith.mulf %89, %77 : vector<1x32xf32>
    %93 = arith.mulf %88, %91 : vector<1x32xf32>
    %94 = arith.addf %92, %93 : vector<1x32xf32>
    %95 = math.tanh %94 : vector<1x32xf32>
    %96 = arith.mulf %90, %95 : vector<1x32xf32>
    %c2_34 = arith.constant 2 : index
    %c0_35 = arith.constant 0 : index
    %97 = vector.load %arg6[%c2_34, %c0_35] : memref<16x32xf32, #tpu.memory_space<vmem>>, vector<1x32xf32>
    tpu.vector_store %arg6[%c2_34, %c0_35], %96 {strides = array<i32>} : memref<16x32xf32, #tpu.memory_space<vmem>>, vector<1x32xf32>,
    %c5 = arith.constant 5 : index
    %c0_36 = arith.constant 0 : index
    %98 = vector.load %arg5[%c5, %c0_36] : memref<16x128xf32, #tpu.memory_space<vmem>>, vector<1x128xf32>
    %cst_37 = arith.constant dense<0.000000e+00> : vector<1x128xf32>
    %99 = tpu.matmul %96, %7, %cst_37 {dimension_numbers = #tpu.dot_dimension_numbers<[1], [0], [0], [1], [0, 0, 1, 1], [], []>} : vector<1x32xf32>, vector<32x128xf32>, vector<1x128xf32> -> vector<1x128xf32>
    %100 = arith.addf %98, %99 : vector<1x128xf32>
    %101 = math.tanh %100 : vector<1x128xf32>
    %cst_38 = arith.constant 5.000000e-01 : f32
    %102 = vector.broadcast %cst_38 : f32 to vector<1x128xf32>
    %103 = arith.mulf %102, %101 : vector<1x128xf32>
    %cst_39 = arith.constant 5.000000e-01 : f32
    %104 = vector.broadcast %cst_39 : f32 to vector<1x128xf32>
    %105 = arith.addf %103, %104 : vector<1x128xf32>
    %106 = vector.extract_strided_slice %105 {offsets = [0, 0], sizes = [1, 32], strides = [1, 1]} : vector<1x128xf32> to vector<1x32xf32>
    %107 = vector.extract_strided_slice %105 {offsets = [0, 32], sizes = [1, 32], strides = [1, 1]} : vector<1x128xf32> to vector<1x32xf32>
    %108 = vector.extract_strided_slice %105 {offsets = [0, 96], sizes = [1, 32], strides = [1, 1]} : vector<1x128xf32> to vector<1x32xf32>
    %109 = vector.extract_strided_slice %101 {offsets = [0, 64], sizes = [1, 32], strides = [1, 1]} : vector<1x128xf32> to vector<1x32xf32>
    %110 = arith.mulf %107, %94 : vector<1x32xf32>
    %111 = arith.mulf %106, %109 : vector<1x32xf32>
    %112 = arith.addf %110, %111 : vector<1x32xf32>
    %113 = math.tanh %112 : vector<1x32xf32>
    %114 = arith.mulf %108, %113 : vector<1x32xf32>
    %c6 = arith.constant 6 : index
    %c0_40 = arith.constant 0 : index
    %115 = vector.load %arg5[%c6, %c0_40] : memref<16x128xf32, #tpu.memory_space<vmem>>, vector<1x128xf32>
    %cst_41 = arith.constant dense<0.000000e+00> : vector<1x128xf32>
    %116 = tpu.matmul %114, %7, %cst_41 {dimension_numbers = #tpu.dot_dimension_numbers<[1], [0], [0], [1], [0, 0, 1, 1], [], []>} : vector<1x32xf32>, vector<32x128xf32>, vector<1x128xf32> -> vector<1x128xf32>
    %117 = arith.addf %115, %116 : vector<1x128xf32>
    %118 = math.tanh %117 : vector<1x128xf32>
    %cst_42 = arith.constant 5.000000e-01 : f32
    %119 = vector.broadcast %cst_42 : f32 to vector<1x128xf32>
    %120 = arith.mulf %119, %118 : vector<1x128xf32>
    %cst_43 = arith.constant 5.000000e-01 : f32
    %121 = vector.broadcast %cst_43 : f32 to vector<1x128xf32>
    %122 = arith.addf %120, %121 : vector<1x128xf32>
    %123 = vector.extract_strided_slice %122 {offsets = [0, 0], sizes = [1, 32], strides = [1, 1]} : vector<1x128xf32> to vector<1x32xf32>
    %124 = vector.extract_strided_slice %122 {offsets = [0, 32], sizes = [1, 32], strides = [1, 1]} : vector<1x128xf32> to vector<1x32xf32>
    %125 = vector.extract_strided_slice %122 {offsets = [0, 96], sizes = [1, 32], strides = [1, 1]} : vector<1x128xf32> to vector<1x32xf32>
    %126 = vector.extract_strided_slice %118 {offsets = [0, 64], sizes = [1, 32], strides = [1, 1]} : vector<1x128xf32> to vector<1x32xf32>
    %127 = arith.mulf %124, %112 : vector<1x32xf32>
    %128 = arith.mulf %123, %126 : vector<1x32xf32>
    %129 = arith.addf %127, %128 : vector<1x32xf32>
    %130 = math.tanh %129 : vector<1x32xf32>
    %131 = arith.mulf %125, %130 : vector<1x32xf32>
    %c3_44 = arith.constant 3 : index
    %c0_45 = arith.constant 0 : index
    %132 = vector.load %arg6[%c3_44, %c0_45] : memref<16x32xf32, #tpu.memory_space<vmem>>, vector<1x32xf32>
    tpu.vector_store %arg6[%c3_44, %c0_45], %131 {strides = array<i32>} : memref<16x32xf32, #tpu.memory_space<vmem>>, vector<1x32xf32>,
    %c7 = arith.constant 7 : index
    %c0_46 = arith.constant 0 : index
    %133 = vector.load %arg5[%c7, %c0_46] : memref<16x128xf32, #tpu.memory_space<vmem>>, vector<1x128xf32>
    %cst_47 = arith.constant dense<0.000000e+00> : vector<1x128xf32>
    %134 = tpu.matmul %131, %7, %cst_47 {dimension_numbers = #tpu.dot_dimension_numbers<[1], [0], [0], [1], [0, 0, 1, 1], [], []>} : vector<1x32xf32>, vector<32x128xf32>, vector<1x128xf32> -> vector<1x128xf32>
    %135 = arith.addf %133, %134 : vector<1x128xf32>
    %136 = math.tanh %135 : vector<1x128xf32>
    %cst_48 = arith.constant 5.000000e-01 : f32
    %137 = vector.broadcast %cst_48 : f32 to vector<1x128xf32>
    %138 = arith.mulf %137, %136 : vector<1x128xf32>
    %cst_49 = arith.constant 5.000000e-01 : f32
    %139 = vector.broadcast %cst_49 : f32 to vector<1x128xf32>
    %140 = arith.addf %138, %139 : vector<1x128xf32>
    %141 = vector.extract_strided_slice %140 {offsets = [0, 0], sizes = [1, 32], strides = [1, 1]} : vector<1x128xf32> to vector<1x32xf32>
    %142 = vector.extract_strided_slice %140 {offsets = [0, 32], sizes = [1, 32], strides = [1, 1]} : vector<1x128xf32> to vector<1x32xf32>
    %143 = vector.extract_strided_slice %140 {offsets = [0, 96], sizes = [1, 32], strides = [1, 1]} : vector<1x128xf32> to vector<1x32xf32>
    %144 = vector.extract_strided_slice %136 {offsets = [0, 64], sizes = [1, 32], strides = [1, 1]} : vector<1x128xf32> to vector<1x32xf32>
    %145 = arith.mulf %142, %129 : vector<1x32xf32>
    %146 = arith.mulf %141, %144 : vector<1x32xf32>
    %147 = arith.addf %145, %146 : vector<1x32xf32>
    %148 = math.tanh %147 : vector<1x32xf32>
    %149 = arith.mulf %143, %148 : vector<1x32xf32>
    %c8 = arith.constant 8 : index
    %c0_50 = arith.constant 0 : index
    %150 = vector.load %arg5[%c8, %c0_50] : memref<16x128xf32, #tpu.memory_space<vmem>>, vector<1x128xf32>
    %cst_51 = arith.constant dense<0.000000e+00> : vector<1x128xf32>
    %151 = tpu.matmul %149, %7, %cst_51 {dimension_numbers = #tpu.dot_dimension_numbers<[1], [0], [0], [1], [0, 0, 1, 1], [], []>} : vector<1x32xf32>, vector<32x128xf32>, vector<1x128xf32> -> vector<1x128xf32>
    %152 = arith.addf %150, %151 : vector<1x128xf32>
    %153 = math.tanh %152 : vector<1x128xf32>
    %cst_52 = arith.constant 5.000000e-01 : f32
    %154 = vector.broadcast %cst_52 : f32 to vector<1x128xf32>
    %155 = arith.mulf %154, %153 : vector<1x128xf32>
    %cst_53 = arith.constant 5.000000e-01 : f32
    %156 = vector.broadcast %cst_53 : f32 to vector<1x128xf32>
    %157 = arith.addf %155, %156 : vector<1x128xf32>
    %158 = vector.extract_strided_slice %157 {offsets = [0, 0], sizes = [1, 32], strides = [1, 1]} : vector<1x128xf32> to vector<1x32xf32>
    %159 = vector.extract_strided_slice %157 {offsets = [0, 32], sizes = [1, 32], strides = [1, 1]} : vector<1x128xf32> to vector<1x32xf32>
    %160 = vector.extract_strided_slice %157 {offsets = [0, 96], sizes = [1, 32], strides = [1, 1]} : vector<1x128xf32> to vector<1x32xf32>
    %161 = vector.extract_strided_slice %153 {offsets = [0, 64], sizes = [1, 32], strides = [1, 1]} : vector<1x128xf32> to vector<1x32xf32>
    %162 = arith.mulf %159, %147 : vector<1x32xf32>
    %163 = arith.mulf %158, %161 : vector<1x32xf32>
    %164 = arith.addf %162, %163 : vector<1x32xf32>
    %165 = math.tanh %164 : vector<1x32xf32>
    %166 = arith.mulf %160, %165 : vector<1x32xf32>
    %c4_54 = arith.constant 4 : index
    %c0_55 = arith.constant 0 : index
    %167 = vector.load %arg6[%c4_54, %c0_55] : memref<16x32xf32, #tpu.memory_space<vmem>>, vector<1x32xf32>
    tpu.vector_store %arg6[%c4_54, %c0_55], %166 {strides = array<i32>} : memref<16x32xf32, #tpu.memory_space<vmem>>, vector<1x32xf32>,
    %c9 = arith.constant 9 : index
    %c0_56 = arith.constant 0 : index
    %168 = vector.load %arg5[%c9, %c0_56] : memref<16x128xf32, #tpu.memory_space<vmem>>, vector<1x128xf32>
    %cst_57 = arith.constant dense<0.000000e+00> : vector<1x128xf32>
    %169 = tpu.matmul %166, %7, %cst_57 {dimension_numbers = #tpu.dot_dimension_numbers<[1], [0], [0], [1], [0, 0, 1, 1], [], []>} : vector<1x32xf32>, vector<32x128xf32>, vector<1x128xf32> -> vector<1x128xf32>
    %170 = arith.addf %168, %169 : vector<1x128xf32>
    %171 = math.tanh %170 : vector<1x128xf32>
    %cst_58 = arith.constant 5.000000e-01 : f32
    %172 = vector.broadcast %cst_58 : f32 to vector<1x128xf32>
    %173 = arith.mulf %172, %171 : vector<1x128xf32>
    %cst_59 = arith.constant 5.000000e-01 : f32
    %174 = vector.broadcast %cst_59 : f32 to vector<1x128xf32>
    %175 = arith.addf %173, %174 : vector<1x128xf32>
    %176 = vector.extract_strided_slice %175 {offsets = [0, 0], sizes = [1, 32], strides = [1, 1]} : vector<1x128xf32> to vector<1x32xf32>
    %177 = vector.extract_strided_slice %175 {offsets = [0, 32], sizes = [1, 32], strides = [1, 1]} : vector<1x128xf32> to vector<1x32xf32>
    %178 = vector.extract_strided_slice %175 {offsets = [0, 96], sizes = [1, 32], strides = [1, 1]} : vector<1x128xf32> to vector<1x32xf32>
    %179 = vector.extract_strided_slice %171 {offsets = [0, 64], sizes = [1, 32], strides = [1, 1]} : vector<1x128xf32> to vector<1x32xf32>
    %180 = arith.mulf %177, %164 : vector<1x32xf32>
    %181 = arith.mulf %176, %179 : vector<1x32xf32>
    %182 = arith.addf %180, %181 : vector<1x32xf32>
    %183 = math.tanh %182 : vector<1x32xf32>
    %184 = arith.mulf %178, %183 : vector<1x32xf32>
    %c10 = arith.constant 10 : index
    %c0_60 = arith.constant 0 : index
    %185 = vector.load %arg5[%c10, %c0_60] : memref<16x128xf32, #tpu.memory_space<vmem>>, vector<1x128xf32>
    %cst_61 = arith.constant dense<0.000000e+00> : vector<1x128xf32>
    %186 = tpu.matmul %184, %7, %cst_61 {dimension_numbers = #tpu.dot_dimension_numbers<[1], [0], [0], [1], [0, 0, 1, 1], [], []>} : vector<1x32xf32>, vector<32x128xf32>, vector<1x128xf32> -> vector<1x128xf32>
    %187 = arith.addf %185, %186 : vector<1x128xf32>
    %188 = math.tanh %187 : vector<1x128xf32>
    %cst_62 = arith.constant 5.000000e-01 : f32
    %189 = vector.broadcast %cst_62 : f32 to vector<1x128xf32>
    %190 = arith.mulf %189, %188 : vector<1x128xf32>
    %cst_63 = arith.constant 5.000000e-01 : f32
    %191 = vector.broadcast %cst_63 : f32 to vector<1x128xf32>
    %192 = arith.addf %190, %191 : vector<1x128xf32>
    %193 = vector.extract_strided_slice %192 {offsets = [0, 0], sizes = [1, 32], strides = [1, 1]} : vector<1x128xf32> to vector<1x32xf32>
    %194 = vector.extract_strided_slice %192 {offsets = [0, 32], sizes = [1, 32], strides = [1, 1]} : vector<1x128xf32> to vector<1x32xf32>
    %195 = vector.extract_strided_slice %192 {offsets = [0, 96], sizes = [1, 32], strides = [1, 1]} : vector<1x128xf32> to vector<1x32xf32>
    %196 = vector.extract_strided_slice %188 {offsets = [0, 64], sizes = [1, 32], strides = [1, 1]} : vector<1x128xf32> to vector<1x32xf32>
    %197 = arith.mulf %194, %182 : vector<1x32xf32>
    %198 = arith.mulf %193, %196 : vector<1x32xf32>
    %199 = arith.addf %197, %198 : vector<1x32xf32>
    %200 = math.tanh %199 : vector<1x32xf32>
    %201 = arith.mulf %195, %200 : vector<1x32xf32>
    %c5_64 = arith.constant 5 : index
    %c0_65 = arith.constant 0 : index
    %202 = vector.load %arg6[%c5_64, %c0_65] : memref<16x32xf32, #tpu.memory_space<vmem>>, vector<1x32xf32>
    tpu.vector_store %arg6[%c5_64, %c0_65], %201 {strides = array<i32>} : memref<16x32xf32, #tpu.memory_space<vmem>>, vector<1x32xf32>,
    %c11 = arith.constant 11 : index
    %c0_66 = arith.constant 0 : index
    %203 = vector.load %arg5[%c11, %c0_66] : memref<16x128xf32, #tpu.memory_space<vmem>>, vector<1x128xf32>
    %cst_67 = arith.constant dense<0.000000e+00> : vector<1x128xf32>
    %204 = tpu.matmul %201, %7, %cst_67 {dimension_numbers = #tpu.dot_dimension_numbers<[1], [0], [0], [1], [0, 0, 1, 1], [], []>} : vector<1x32xf32>, vector<32x128xf32>, vector<1x128xf32> -> vector<1x128xf32>
    %205 = arith.addf %203, %204 : vector<1x128xf32>
    %206 = math.tanh %205 : vector<1x128xf32>
    %cst_68 = arith.constant 5.000000e-01 : f32
    %207 = vector.broadcast %cst_68 : f32 to vector<1x128xf32>
    %208 = arith.mulf %207, %206 : vector<1x128xf32>
    %cst_69 = arith.constant 5.000000e-01 : f32
    %209 = vector.broadcast %cst_69 : f32 to vector<1x128xf32>
    %210 = arith.addf %208, %209 : vector<1x128xf32>
    %211 = vector.extract_strided_slice %210 {offsets = [0, 0], sizes = [1, 32], strides = [1, 1]} : vector<1x128xf32> to vector<1x32xf32>
    %212 = vector.extract_strided_slice %210 {offsets = [0, 32], sizes = [1, 32], strides = [1, 1]} : vector<1x128xf32> to vector<1x32xf32>
    %213 = vector.extract_strided_slice %210 {offsets = [0, 96], sizes = [1, 32], strides = [1, 1]} : vector<1x128xf32> to vector<1x32xf32>
    %214 = vector.extract_strided_slice %206 {offsets = [0, 64], sizes = [1, 32], strides = [1, 1]} : vector<1x128xf32> to vector<1x32xf32>
    %215 = arith.mulf %212, %199 : vector<1x32xf32>
    %216 = arith.mulf %211, %214 : vector<1x32xf32>
    %217 = arith.addf %215, %216 : vector<1x32xf32>
    %218 = math.tanh %217 : vector<1x32xf32>
    %219 = arith.mulf %213, %218 : vector<1x32xf32>
    %c12 = arith.constant 12 : index
    %c0_70 = arith.constant 0 : index
    %220 = vector.load %arg5[%c12, %c0_70] : memref<16x128xf32, #tpu.memory_space<vmem>>, vector<1x128xf32>
    %cst_71 = arith.constant dense<0.000000e+00> : vector<1x128xf32>
    %221 = tpu.matmul %219, %7, %cst_71 {dimension_numbers = #tpu.dot_dimension_numbers<[1], [0], [0], [1], [0, 0, 1, 1], [], []>} : vector<1x32xf32>, vector<32x128xf32>, vector<1x128xf32> -> vector<1x128xf32>
    %222 = arith.addf %220, %221 : vector<1x128xf32>
    %223 = math.tanh %222 : vector<1x128xf32>
    %cst_72 = arith.constant 5.000000e-01 : f32
    %224 = vector.broadcast %cst_72 : f32 to vector<1x128xf32>
    %225 = arith.mulf %224, %223 : vector<1x128xf32>
    %cst_73 = arith.constant 5.000000e-01 : f32
    %226 = vector.broadcast %cst_73 : f32 to vector<1x128xf32>
    %227 = arith.addf %225, %226 : vector<1x128xf32>
    %228 = vector.extract_strided_slice %227 {offsets = [0, 0], sizes = [1, 32], strides = [1, 1]} : vector<1x128xf32> to vector<1x32xf32>
    %229 = vector.extract_strided_slice %227 {offsets = [0, 32], sizes = [1, 32], strides = [1, 1]} : vector<1x128xf32> to vector<1x32xf32>
    %230 = vector.extract_strided_slice %227 {offsets = [0, 96], sizes = [1, 32], strides = [1, 1]} : vector<1x128xf32> to vector<1x32xf32>
    %231 = vector.extract_strided_slice %223 {offsets = [0, 64], sizes = [1, 32], strides = [1, 1]} : vector<1x128xf32> to vector<1x32xf32>
    %232 = arith.mulf %229, %217 : vector<1x32xf32>
    %233 = arith.mulf %228, %231 : vector<1x32xf32>
    %234 = arith.addf %232, %233 : vector<1x32xf32>
    %235 = math.tanh %234 : vector<1x32xf32>
    %236 = arith.mulf %230, %235 : vector<1x32xf32>
    %c6_74 = arith.constant 6 : index
    %c0_75 = arith.constant 0 : index
    %237 = vector.load %arg6[%c6_74, %c0_75] : memref<16x32xf32, #tpu.memory_space<vmem>>, vector<1x32xf32>
    tpu.vector_store %arg6[%c6_74, %c0_75], %236 {strides = array<i32>} : memref<16x32xf32, #tpu.memory_space<vmem>>, vector<1x32xf32>,
    %c13 = arith.constant 13 : index
    %c0_76 = arith.constant 0 : index
    %238 = vector.load %arg5[%c13, %c0_76] : memref<16x128xf32, #tpu.memory_space<vmem>>, vector<1x128xf32>
    %cst_77 = arith.constant dense<0.000000e+00> : vector<1x128xf32>
    %239 = tpu.matmul %236, %7, %cst_77 {dimension_numbers = #tpu.dot_dimension_numbers<[1], [0], [0], [1], [0, 0, 1, 1], [], []>} : vector<1x32xf32>, vector<32x128xf32>, vector<1x128xf32> -> vector<1x128xf32>
    %240 = arith.addf %238, %239 : vector<1x128xf32>
    %241 = math.tanh %240 : vector<1x128xf32>
    %cst_78 = arith.constant 5.000000e-01 : f32
    %242 = vector.broadcast %cst_78 : f32 to vector<1x128xf32>
    %243 = arith.mulf %242, %241 : vector<1x128xf32>
    %cst_79 = arith.constant 5.000000e-01 : f32
    %244 = vector.broadcast %cst_79 : f32 to vector<1x128xf32>
    %245 = arith.addf %243, %244 : vector<1x128xf32>
    %246 = vector.extract_strided_slice %245 {offsets = [0, 0], sizes = [1, 32], strides = [1, 1]} : vector<1x128xf32> to vector<1x32xf32>
    %247 = vector.extract_strided_slice %245 {offsets = [0, 32], sizes = [1, 32], strides = [1, 1]} : vector<1x128xf32> to vector<1x32xf32>
    %248 = vector.extract_strided_slice %245 {offsets = [0, 96], sizes = [1, 32], strides = [1, 1]} : vector<1x128xf32> to vector<1x32xf32>
    %249 = vector.extract_strided_slice %241 {offsets = [0, 64], sizes = [1, 32], strides = [1, 1]} : vector<1x128xf32> to vector<1x32xf32>
    %250 = arith.mulf %247, %234 : vector<1x32xf32>
    %251 = arith.mulf %246, %249 : vector<1x32xf32>
    %252 = arith.addf %250, %251 : vector<1x32xf32>
    %253 = math.tanh %252 : vector<1x32xf32>
    %254 = arith.mulf %248, %253 : vector<1x32xf32>
    %c14 = arith.constant 14 : index
    %c0_80 = arith.constant 0 : index
    %255 = vector.load %arg5[%c14, %c0_80] : memref<16x128xf32, #tpu.memory_space<vmem>>, vector<1x128xf32>
    %cst_81 = arith.constant dense<0.000000e+00> : vector<1x128xf32>
    %256 = tpu.matmul %254, %7, %cst_81 {dimension_numbers = #tpu.dot_dimension_numbers<[1], [0], [0], [1], [0, 0, 1, 1], [], []>} : vector<1x32xf32>, vector<32x128xf32>, vector<1x128xf32> -> vector<1x128xf32>
    %257 = arith.addf %255, %256 : vector<1x128xf32>
    %258 = math.tanh %257 : vector<1x128xf32>
    %cst_82 = arith.constant 5.000000e-01 : f32
    %259 = vector.broadcast %cst_82 : f32 to vector<1x128xf32>
    %260 = arith.mulf %259, %258 : vector<1x128xf32>
    %cst_83 = arith.constant 5.000000e-01 : f32
    %261 = vector.broadcast %cst_83 : f32 to vector<1x128xf32>
    %262 = arith.addf %260, %261 : vector<1x128xf32>
    %263 = vector.extract_strided_slice %262 {offsets = [0, 0], sizes = [1, 32], strides = [1, 1]} : vector<1x128xf32> to vector<1x32xf32>
    %264 = vector.extract_strided_slice %262 {offsets = [0, 32], sizes = [1, 32], strides = [1, 1]} : vector<1x128xf32> to vector<1x32xf32>
    %265 = vector.extract_strided_slice %262 {offsets = [0, 96], sizes = [1, 32], strides = [1, 1]} : vector<1x128xf32> to vector<1x32xf32>
    %266 = vector.extract_strided_slice %258 {offsets = [0, 64], sizes = [1, 32], strides = [1, 1]} : vector<1x128xf32> to vector<1x32xf32>
    %267 = arith.mulf %264, %252 : vector<1x32xf32>
    %268 = arith.mulf %263, %266 : vector<1x32xf32>
    %269 = arith.addf %267, %268 : vector<1x32xf32>
    %270 = math.tanh %269 : vector<1x32xf32>
    %271 = arith.mulf %265, %270 : vector<1x32xf32>
    %c7_84 = arith.constant 7 : index
    %c0_85 = arith.constant 0 : index
    %272 = vector.load %arg6[%c7_84, %c0_85] : memref<16x32xf32, #tpu.memory_space<vmem>>, vector<1x32xf32>
    tpu.vector_store %arg6[%c7_84, %c0_85], %271 {strides = array<i32>} : memref<16x32xf32, #tpu.memory_space<vmem>>, vector<1x32xf32>,
    %c15 = arith.constant 15 : index
    %c0_86 = arith.constant 0 : index
    %273 = vector.load %arg5[%c15, %c0_86] : memref<16x128xf32, #tpu.memory_space<vmem>>, vector<1x128xf32>
    %cst_87 = arith.constant dense<0.000000e+00> : vector<1x128xf32>
    %274 = tpu.matmul %271, %7, %cst_87 {dimension_numbers = #tpu.dot_dimension_numbers<[1], [0], [0], [1], [0, 0, 1, 1], [], []>} : vector<1x32xf32>, vector<32x128xf32>, vector<1x128xf32> -> vector<1x128xf32>
    %275 = arith.addf %273, %274 : vector<1x128xf32>
    %276 = math.tanh %275 : vector<1x128xf32>
    %cst_88 = arith.constant 5.000000e-01 : f32
    %277 = vector.broadcast %cst_88 : f32 to vector<1x128xf32>
    %278 = arith.mulf %277, %276 : vector<1x128xf32>
    %cst_89 = arith.constant 5.000000e-01 : f32
    %279 = vector.broadcast %cst_89 : f32 to vector<1x128xf32>
    %280 = arith.addf %278, %279 : vector<1x128xf32>
    %281 = vector.extract_strided_slice %280 {offsets = [0, 0], sizes = [1, 32], strides = [1, 1]} : vector<1x128xf32> to vector<1x32xf32>
    %282 = vector.extract_strided_slice %280 {offsets = [0, 32], sizes = [1, 32], strides = [1, 1]} : vector<1x128xf32> to vector<1x32xf32>
    %283 = vector.extract_strided_slice %280 {offsets = [0, 96], sizes = [1, 32], strides = [1, 1]} : vector<1x128xf32> to vector<1x32xf32>
    %284 = vector.extract_strided_slice %276 {offsets = [0, 64], sizes = [1, 32], strides = [1, 1]} : vector<1x128xf32> to vector<1x32xf32>
    %285 = arith.mulf %282, %269 : vector<1x32xf32>
    %286 = arith.mulf %281, %284 : vector<1x32xf32>
    %287 = arith.addf %285, %286 : vector<1x32xf32>
    %288 = math.tanh %287 : vector<1x32xf32>
    %289 = arith.mulf %283, %288 : vector<1x32xf32>
    %c0_90 = arith.constant 0 : index
    %c0_91 = arith.constant 0 : index
    %290 = vector.load %arg4[%c0_90, %c0_91] : memref<4x32xf32, #tpu.memory_space<vmem>>, vector<1x32xf32>
    tpu.vector_store %arg4[%c0_90, %c0_91], %289 {strides = array<i32>} : memref<4x32xf32, #tpu.memory_space<vmem>>, vector<1x32xf32>,
    %c1_92 = arith.constant 1 : index
    %c0_93 = arith.constant 0 : index
    %291 = vector.load %arg4[%c1_92, %c0_93] : memref<4x32xf32, #tpu.memory_space<vmem>>, vector<1x32xf32>
    tpu.vector_store %arg4[%c1_92, %c0_93], %287 {strides = array<i32>} : memref<4x32xf32, #tpu.memory_space<vmem>>, vector<1x32xf32>,
    %c0_94 = arith.constant 0 : index
    %c0_95 = arith.constant 0 : index
    %292 = vector.load %arg6[%c0_94, %c0_95] : memref<16x32xf32, #tpu.memory_space<vmem>>, vector<8x32xf32>
    %c0_96 = arith.constant 0 : index
    %c0_97 = arith.constant 0 : index
    %293 = vector.load %arg2[%c0_96, %c0_97] : memref<80x32xf32, #tpu.memory_space<vmem>>, vector<32x32xf32>
    %c32 = arith.constant 32 : index
    %c0_98 = arith.constant 0 : index
    %294 = vector.load %arg2[%c32, %c0_98] : memref<80x32xf32, #tpu.memory_space<vmem>>, vector<1x32xf32>
    %cst_99 = arith.constant dense<0.000000e+00> : vector<8x32xf32>
    %295 = tpu.matmul %292, %293, %cst_99 {dimension_numbers = #tpu.dot_dimension_numbers<[1], [0], [0], [1], [0, 0, 1, 1], [], []>} : vector<8x32xf32>, vector<32x32xf32>, vector<8x32xf32> -> vector<8x32xf32>
    %296 = vector.broadcast %294 : vector<1x32xf32> to vector<8x32xf32>
    %297 = arith.addf %295, %296 : vector<8x32xf32>
    %298 = math.tanh %297 : vector<8x32xf32>
    %c56 = arith.constant 56 : index
    %c0_100 = arith.constant 0 : index
    %299 = vector.load %arg1[%c56, %c0_100] : memref<128x128xf32, #tpu.memory_space<vmem>>, vector<32x128xf32>
    %c120 = arith.constant 120 : index
    %c0_101 = arith.constant 0 : index
    %300 = vector.load %arg1[%c120, %c0_101] : memref<128x128xf32, #tpu.memory_space<vmem>>, vector<1x128xf32>
    %cst_102 = arith.constant dense<0.000000e+00> : vector<8x128xf32>
    %301 = tpu.matmul %298, %299, %cst_102 {dimension_numbers = #tpu.dot_dimension_numbers<[1], [0], [0], [1], [0, 0, 1, 1], [], []>} : vector<8x32xf32>, vector<32x128xf32>, vector<8x128xf32> -> vector<8x128xf32>
    %302 = vector.broadcast %300 : vector<1x128xf32> to vector<8x128xf32>
    %303 = arith.addf %301, %302 : vector<8x128xf32>
    %c0_103 = arith.constant 0 : index
    %c0_104 = arith.constant 0 : index
    %304 = vector.load %arg5[%c0_103, %c0_104] : memref<16x128xf32, #tpu.memory_space<vmem>>, vector<8x128xf32>
    tpu.vector_store %arg5[%c0_103, %c0_104], %303 {strides = array<i32>} : memref<16x128xf32, #tpu.memory_space<vmem>>, vector<8x128xf32>,
    %c88 = arith.constant 88 : index
    %c0_105 = arith.constant 0 : index
    %305 = vector.load %arg1[%c88, %c0_105] : memref<128x128xf32, #tpu.memory_space<vmem>>, vector<32x128xf32>
    %cst_106 = arith.constant 0.000000e+00 : f32
    %306 = vector.broadcast %cst_106 : f32 to vector<1x32xf32>
    %cst_107 = arith.constant 0.000000e+00 : f32
    %307 = vector.broadcast %cst_107 : f32 to vector<1x32xf32>
    %c0_108 = arith.constant 0 : index
    %c0_109 = arith.constant 0 : index
    %308 = vector.load %arg5[%c0_108, %c0_109] : memref<16x128xf32, #tpu.memory_space<vmem>>, vector<1x128xf32>
    %cst_110 = arith.constant dense<0.000000e+00> : vector<1x128xf32>
    %309 = tpu.matmul %306, %305, %cst_110 {dimension_numbers = #tpu.dot_dimension_numbers<[1], [0], [0], [1], [0, 0, 1, 1], [], []>} : vector<1x32xf32>, vector<32x128xf32>, vector<1x128xf32> -> vector<1x128xf32>
    %310 = arith.addf %308, %309 : vector<1x128xf32>
    %311 = math.tanh %310 : vector<1x128xf32>
    %cst_111 = arith.constant 5.000000e-01 : f32
    %312 = vector.broadcast %cst_111 : f32 to vector<1x128xf32>
    %313 = arith.mulf %312, %311 : vector<1x128xf32>
    %cst_112 = arith.constant 5.000000e-01 : f32
    %314 = vector.broadcast %cst_112 : f32 to vector<1x128xf32>
    %315 = arith.addf %313, %314 : vector<1x128xf32>
    %316 = vector.extract_strided_slice %315 {offsets = [0, 0], sizes = [1, 32], strides = [1, 1]} : vector<1x128xf32> to vector<1x32xf32>
    %317 = vector.extract_strided_slice %315 {offsets = [0, 32], sizes = [1, 32], strides = [1, 1]} : vector<1x128xf32> to vector<1x32xf32>
    %318 = vector.extract_strided_slice %315 {offsets = [0, 96], sizes = [1, 32], strides = [1, 1]} : vector<1x128xf32> to vector<1x32xf32>
    %319 = vector.extract_strided_slice %311 {offsets = [0, 64], sizes = [1, 32], strides = [1, 1]} : vector<1x128xf32> to vector<1x32xf32>
    %320 = arith.mulf %317, %307 : vector<1x32xf32>
    %321 = arith.mulf %316, %319 : vector<1x32xf32>
    %322 = arith.addf %320, %321 : vector<1x32xf32>
    %323 = math.tanh %322 : vector<1x32xf32>
    %324 = arith.mulf %318, %323 : vector<1x32xf32>
    %c0_113 = arith.constant 0 : index
    %c0_114 = arith.constant 0 : index
    %325 = vector.load %arg6[%c0_113, %c0_114] : memref<16x32xf32, #tpu.memory_space<vmem>>, vector<1x32xf32>
    tpu.vector_store %arg6[%c0_113, %c0_114], %324 {strides = array<i32>} : memref<16x32xf32, #tpu.memory_space<vmem>>, vector<1x32xf32>,
    %c1_115 = arith.constant 1 : index
    %c0_116 = arith.constant 0 : index
    %326 = vector.load %arg5[%c1_115, %c0_116] : memref<16x128xf32, #tpu.memory_space<vmem>>, vector<1x128xf32>
    %cst_117 = arith.constant dense<0.000000e+00> : vector<1x128xf32>
    %327 = tpu.matmul %324, %305, %cst_117 {dimension_numbers = #tpu.dot_dimension_numbers<[1], [0], [0], [1], [0, 0, 1, 1], [], []>} : vector<1x32xf32>, vector<32x128xf32>, vector<1x128xf32> -> vector<1x128xf32>
    %328 = arith.addf %326, %327 : vector<1x128xf32>
    %329 = math.tanh %328 : vector<1x128xf32>
    %cst_118 = arith.constant 5.000000e-01 : f32
    %330 = vector.broadcast %cst_118 : f32 to vector<1x128xf32>
    %331 = arith.mulf %330, %329 : vector<1x128xf32>
    %cst_119 = arith.constant 5.000000e-01 : f32
    %332 = vector.broadcast %cst_119 : f32 to vector<1x128xf32>
    %333 = arith.addf %331, %332 : vector<1x128xf32>
    %334 = vector.extract_strided_slice %333 {offsets = [0, 0], sizes = [1, 32], strides = [1, 1]} : vector<1x128xf32> to vector<1x32xf32>
    %335 = vector.extract_strided_slice %333 {offsets = [0, 32], sizes = [1, 32], strides = [1, 1]} : vector<1x128xf32> to vector<1x32xf32>
    %336 = vector.extract_strided_slice %333 {offsets = [0, 96], sizes = [1, 32], strides = [1, 1]} : vector<1x128xf32> to vector<1x32xf32>
    %337 = vector.extract_strided_slice %329 {offsets = [0, 64], sizes = [1, 32], strides = [1, 1]} : vector<1x128xf32> to vector<1x32xf32>
    %338 = arith.mulf %335, %322 : vector<1x32xf32>
    %339 = arith.mulf %334, %337 : vector<1x32xf32>
    %340 = arith.addf %338, %339 : vector<1x32xf32>
    %341 = math.tanh %340 : vector<1x32xf32>
    %342 = arith.mulf %336, %341 : vector<1x32xf32>
    %c1_120 = arith.constant 1 : index
    %c0_121 = arith.constant 0 : index
    %343 = vector.load %arg6[%c1_120, %c0_121] : memref<16x32xf32, #tpu.memory_space<vmem>>, vector<1x32xf32>
    tpu.vector_store %arg6[%c1_120, %c0_121], %342 {strides = array<i32>} : memref<16x32xf32, #tpu.memory_space<vmem>>, vector<1x32xf32>,
    %c2_122 = arith.constant 2 : index
    %c0_123 = arith.constant 0 : index
    %344 = vector.load %arg5[%c2_122, %c0_123] : memref<16x128xf32, #tpu.memory_space<vmem>>, vector<1x128xf32>
    %cst_124 = arith.constant dense<0.000000e+00> : vector<1x128xf32>
    %345 = tpu.matmul %342, %305, %cst_124 {dimension_numbers = #tpu.dot_dimension_numbers<[1], [0], [0], [1], [0, 0, 1, 1], [], []>} : vector<1x32xf32>, vector<32x128xf32>, vector<1x128xf32> -> vector<1x128xf32>
    %346 = arith.addf %344, %345 : vector<1x128xf32>
    %347 = math.tanh %346 : vector<1x128xf32>
    %cst_125 = arith.constant 5.000000e-01 : f32
    %348 = vector.broadcast %cst_125 : f32 to vector<1x128xf32>
    %349 = arith.mulf %348, %347 : vector<1x128xf32>
    %cst_126 = arith.constant 5.000000e-01 : f32
    %350 = vector.broadcast %cst_126 : f32 to vector<1x128xf32>
    %351 = arith.addf %349, %350 : vector<1x128xf32>
    %352 = vector.extract_strided_slice %351 {offsets = [0, 0], sizes = [1, 32], strides = [1, 1]} : vector<1x128xf32> to vector<1x32xf32>
    %353 = vector.extract_strided_slice %351 {offsets = [0, 32], sizes = [1, 32], strides = [1, 1]} : vector<1x128xf32> to vector<1x32xf32>
    %354 = vector.extract_strided_slice %351 {offsets = [0, 96], sizes = [1, 32], strides = [1, 1]} : vector<1x128xf32> to vector<1x32xf32>
    %355 = vector.extract_strided_slice %347 {offsets = [0, 64], sizes = [1, 32], strides = [1, 1]} : vector<1x128xf32> to vector<1x32xf32>
    %356 = arith.mulf %353, %340 : vector<1x32xf32>
    %357 = arith.mulf %352, %355 : vector<1x32xf32>
    %358 = arith.addf %356, %357 : vector<1x32xf32>
    %359 = math.tanh %358 : vector<1x32xf32>
    %360 = arith.mulf %354, %359 : vector<1x32xf32>
    %c2_127 = arith.constant 2 : index
    %c0_128 = arith.constant 0 : index
    %361 = vector.load %arg6[%c2_127, %c0_128] : memref<16x32xf32, #tpu.memory_space<vmem>>, vector<1x32xf32>
    tpu.vector_store %arg6[%c2_127, %c0_128], %360 {strides = array<i32>} : memref<16x32xf32, #tpu.memory_space<vmem>>, vector<1x32xf32>,
    %c3_129 = arith.constant 3 : index
    %c0_130 = arith.constant 0 : index
    %362 = vector.load %arg5[%c3_129, %c0_130] : memref<16x128xf32, #tpu.memory_space<vmem>>, vector<1x128xf32>
    %cst_131 = arith.constant dense<0.000000e+00> : vector<1x128xf32>
    %363 = tpu.matmul %360, %305, %cst_131 {dimension_numbers = #tpu.dot_dimension_numbers<[1], [0], [0], [1], [0, 0, 1, 1], [], []>} : vector<1x32xf32>, vector<32x128xf32>, vector<1x128xf32> -> vector<1x128xf32>
    %364 = arith.addf %362, %363 : vector<1x128xf32>
    %365 = math.tanh %364 : vector<1x128xf32>
    %cst_132 = arith.constant 5.000000e-01 : f32
    %366 = vector.broadcast %cst_132 : f32 to vector<1x128xf32>
    %367 = arith.mulf %366, %365 : vector<1x128xf32>
    %cst_133 = arith.constant 5.000000e-01 : f32
    %368 = vector.broadcast %cst_133 : f32 to vector<1x128xf32>
    %369 = arith.addf %367, %368 : vector<1x128xf32>
    %370 = vector.extract_strided_slice %369 {offsets = [0, 0], sizes = [1, 32], strides = [1, 1]} : vector<1x128xf32> to vector<1x32xf32>
    %371 = vector.extract_strided_slice %369 {offsets = [0, 32], sizes = [1, 32], strides = [1, 1]} : vector<1x128xf32> to vector<1x32xf32>
    %372 = vector.extract_strided_slice %369 {offsets = [0, 96], sizes = [1, 32], strides = [1, 1]} : vector<1x128xf32> to vector<1x32xf32>
    %373 = vector.extract_strided_slice %365 {offsets = [0, 64], sizes = [1, 32], strides = [1, 1]} : vector<1x128xf32> to vector<1x32xf32>
    %374 = arith.mulf %371, %358 : vector<1x32xf32>
    %375 = arith.mulf %370, %373 : vector<1x32xf32>
    %376 = arith.addf %374, %375 : vector<1x32xf32>
    %377 = math.tanh %376 : vector<1x32xf32>
    %378 = arith.mulf %372, %377 : vector<1x32xf32>
    %c3_134 = arith.constant 3 : index
    %c0_135 = arith.constant 0 : index
    %379 = vector.load %arg6[%c3_134, %c0_135] : memref<16x32xf32, #tpu.memory_space<vmem>>, vector<1x32xf32>
    tpu.vector_store %arg6[%c3_134, %c0_135], %378 {strides = array<i32>} : memref<16x32xf32, #tpu.memory_space<vmem>>, vector<1x32xf32>,
    %c4_136 = arith.constant 4 : index
    %c0_137 = arith.constant 0 : index
    %380 = vector.load %arg5[%c4_136, %c0_137] : memref<16x128xf32, #tpu.memory_space<vmem>>, vector<1x128xf32>
    %cst_138 = arith.constant dense<0.000000e+00> : vector<1x128xf32>
    %381 = tpu.matmul %378, %305, %cst_138 {dimension_numbers = #tpu.dot_dimension_numbers<[1], [0], [0], [1], [0, 0, 1, 1], [], []>} : vector<1x32xf32>, vector<32x128xf32>, vector<1x128xf32> -> vector<1x128xf32>
    %382 = arith.addf %380, %381 : vector<1x128xf32>
    %383 = math.tanh %382 : vector<1x128xf32>
    %cst_139 = arith.constant 5.000000e-01 : f32
    %384 = vector.broadcast %cst_139 : f32 to vector<1x128xf32>
    %385 = arith.mulf %384, %383 : vector<1x128xf32>
    %cst_140 = arith.constant 5.000000e-01 : f32
    %386 = vector.broadcast %cst_140 : f32 to vector<1x128xf32>
    %387 = arith.addf %385, %386 : vector<1x128xf32>
    %388 = vector.extract_strided_slice %387 {offsets = [0, 0], sizes = [1, 32], strides = [1, 1]} : vector<1x128xf32> to vector<1x32xf32>
    %389 = vector.extract_strided_slice %387 {offsets = [0, 32], sizes = [1, 32], strides = [1, 1]} : vector<1x128xf32> to vector<1x32xf32>
    %390 = vector.extract_strided_slice %387 {offsets = [0, 96], sizes = [1, 32], strides = [1, 1]} : vector<1x128xf32> to vector<1x32xf32>
    %391 = vector.extract_strided_slice %383 {offsets = [0, 64], sizes = [1, 32], strides = [1, 1]} : vector<1x128xf32> to vector<1x32xf32>
    %392 = arith.mulf %389, %376 : vector<1x32xf32>
    %393 = arith.mulf %388, %391 : vector<1x32xf32>
    %394 = arith.addf %392, %393 : vector<1x32xf32>
    %395 = math.tanh %394 : vector<1x32xf32>
    %396 = arith.mulf %390, %395 : vector<1x32xf32>
    %c4_141 = arith.constant 4 : index
    %c0_142 = arith.constant 0 : index
    %397 = vector.load %arg6[%c4_141, %c0_142] : memref<16x32xf32, #tpu.memory_space<vmem>>, vector<1x32xf32>
    tpu.vector_store %arg6[%c4_141, %c0_142], %396 {strides = array<i32>} : memref<16x32xf32, #tpu.memory_space<vmem>>, vector<1x32xf32>,
    %c5_143 = arith.constant 5 : index
    %c0_144 = arith.constant 0 : index
    %398 = vector.load %arg5[%c5_143, %c0_144] : memref<16x128xf32, #tpu.memory_space<vmem>>, vector<1x128xf32>
    %cst_145 = arith.constant dense<0.000000e+00> : vector<1x128xf32>
    %399 = tpu.matmul %396, %305, %cst_145 {dimension_numbers = #tpu.dot_dimension_numbers<[1], [0], [0], [1], [0, 0, 1, 1], [], []>} : vector<1x32xf32>, vector<32x128xf32>, vector<1x128xf32> -> vector<1x128xf32>
    %400 = arith.addf %398, %399 : vector<1x128xf32>
    %401 = math.tanh %400 : vector<1x128xf32>
    %cst_146 = arith.constant 5.000000e-01 : f32
    %402 = vector.broadcast %cst_146 : f32 to vector<1x128xf32>
    %403 = arith.mulf %402, %401 : vector<1x128xf32>
    %cst_147 = arith.constant 5.000000e-01 : f32
    %404 = vector.broadcast %cst_147 : f32 to vector<1x128xf32>
    %405 = arith.addf %403, %404 : vector<1x128xf32>
    %406 = vector.extract_strided_slice %405 {offsets = [0, 0], sizes = [1, 32], strides = [1, 1]} : vector<1x128xf32> to vector<1x32xf32>
    %407 = vector.extract_strided_slice %405 {offsets = [0, 32], sizes = [1, 32], strides = [1, 1]} : vector<1x128xf32> to vector<1x32xf32>
    %408 = vector.extract_strided_slice %405 {offsets = [0, 96], sizes = [1, 32], strides = [1, 1]} : vector<1x128xf32> to vector<1x32xf32>
    %409 = vector.extract_strided_slice %401 {offsets = [0, 64], sizes = [1, 32], strides = [1, 1]} : vector<1x128xf32> to vector<1x32xf32>
    %410 = arith.mulf %407, %394 : vector<1x32xf32>
    %411 = arith.mulf %406, %409 : vector<1x32xf32>
    %412 = arith.addf %410, %411 : vector<1x32xf32>
    %413 = math.tanh %412 : vector<1x32xf32>
    %414 = arith.mulf %408, %413 : vector<1x32xf32>
    %c5_148 = arith.constant 5 : index
    %c0_149 = arith.constant 0 : index
    %415 = vector.load %arg6[%c5_148, %c0_149] : memref<16x32xf32, #tpu.memory_space<vmem>>, vector<1x32xf32>
    tpu.vector_store %arg6[%c5_148, %c0_149], %414 {strides = array<i32>} : memref<16x32xf32, #tpu.memory_space<vmem>>, vector<1x32xf32>,
    %c6_150 = arith.constant 6 : index
    %c0_151 = arith.constant 0 : index
    %416 = vector.load %arg5[%c6_150, %c0_151] : memref<16x128xf32, #tpu.memory_space<vmem>>, vector<1x128xf32>
    %cst_152 = arith.constant dense<0.000000e+00> : vector<1x128xf32>
    %417 = tpu.matmul %414, %305, %cst_152 {dimension_numbers = #tpu.dot_dimension_numbers<[1], [0], [0], [1], [0, 0, 1, 1], [], []>} : vector<1x32xf32>, vector<32x128xf32>, vector<1x128xf32> -> vector<1x128xf32>
    %418 = arith.addf %416, %417 : vector<1x128xf32>
    %419 = math.tanh %418 : vector<1x128xf32>
    %cst_153 = arith.constant 5.000000e-01 : f32
    %420 = vector.broadcast %cst_153 : f32 to vector<1x128xf32>
    %421 = arith.mulf %420, %419 : vector<1x128xf32>
    %cst_154 = arith.constant 5.000000e-01 : f32
    %422 = vector.broadcast %cst_154 : f32 to vector<1x128xf32>
    %423 = arith.addf %421, %422 : vector<1x128xf32>
    %424 = vector.extract_strided_slice %423 {offsets = [0, 0], sizes = [1, 32], strides = [1, 1]} : vector<1x128xf32> to vector<1x32xf32>
    %425 = vector.extract_strided_slice %423 {offsets = [0, 32], sizes = [1, 32], strides = [1, 1]} : vector<1x128xf32> to vector<1x32xf32>
    %426 = vector.extract_strided_slice %423 {offsets = [0, 96], sizes = [1, 32], strides = [1, 1]} : vector<1x128xf32> to vector<1x32xf32>
    %427 = vector.extract_strided_slice %419 {offsets = [0, 64], sizes = [1, 32], strides = [1, 1]} : vector<1x128xf32> to vector<1x32xf32>
    %428 = arith.mulf %425, %412 : vector<1x32xf32>
    %429 = arith.mulf %424, %427 : vector<1x32xf32>
    %430 = arith.addf %428, %429 : vector<1x32xf32>
    %431 = math.tanh %430 : vector<1x32xf32>
    %432 = arith.mulf %426, %431 : vector<1x32xf32>
    %c6_155 = arith.constant 6 : index
    %c0_156 = arith.constant 0 : index
    %433 = vector.load %arg6[%c6_155, %c0_156] : memref<16x32xf32, #tpu.memory_space<vmem>>, vector<1x32xf32>
    tpu.vector_store %arg6[%c6_155, %c0_156], %432 {strides = array<i32>} : memref<16x32xf32, #tpu.memory_space<vmem>>, vector<1x32xf32>,
    %c7_157 = arith.constant 7 : index
    %c0_158 = arith.constant 0 : index
    %434 = vector.load %arg5[%c7_157, %c0_158] : memref<16x128xf32, #tpu.memory_space<vmem>>, vector<1x128xf32>
    %cst_159 = arith.constant dense<0.000000e+00> : vector<1x128xf32>
    %435 = tpu.matmul %432, %305, %cst_159 {dimension_numbers = #tpu.dot_dimension_numbers<[1], [0], [0], [1], [0, 0, 1, 1], [], []>} : vector<1x32xf32>, vector<32x128xf32>, vector<1x128xf32> -> vector<1x128xf32>
    %436 = arith.addf %434, %435 : vector<1x128xf32>
    %437 = math.tanh %436 : vector<1x128xf32>
    %cst_160 = arith.constant 5.000000e-01 : f32
    %438 = vector.broadcast %cst_160 : f32 to vector<1x128xf32>
    %439 = arith.mulf %438, %437 : vector<1x128xf32>
    %cst_161 = arith.constant 5.000000e-01 : f32
    %440 = vector.broadcast %cst_161 : f32 to vector<1x128xf32>
    %441 = arith.addf %439, %440 : vector<1x128xf32>
    %442 = vector.extract_strided_slice %441 {offsets = [0, 0], sizes = [1, 32], strides = [1, 1]} : vector<1x128xf32> to vector<1x32xf32>
    %443 = vector.extract_strided_slice %441 {offsets = [0, 32], sizes = [1, 32], strides = [1, 1]} : vector<1x128xf32> to vector<1x32xf32>
    %444 = vector.extract_strided_slice %441 {offsets = [0, 96], sizes = [1, 32], strides = [1, 1]} : vector<1x128xf32> to vector<1x32xf32>
    %445 = vector.extract_strided_slice %437 {offsets = [0, 64], sizes = [1, 32], strides = [1, 1]} : vector<1x128xf32> to vector<1x32xf32>
    %446 = arith.mulf %443, %430 : vector<1x32xf32>
    %447 = arith.mulf %442, %445 : vector<1x32xf32>
    %448 = arith.addf %446, %447 : vector<1x32xf32>
    %449 = math.tanh %448 : vector<1x32xf32>
    %450 = arith.mulf %444, %449 : vector<1x32xf32>
    %c7_162 = arith.constant 7 : index
    %c0_163 = arith.constant 0 : index
    %451 = vector.load %arg6[%c7_162, %c0_163] : memref<16x32xf32, #tpu.memory_space<vmem>>, vector<1x32xf32>
    tpu.vector_store %arg6[%c7_162, %c0_163], %450 {strides = array<i32>} : memref<16x32xf32, #tpu.memory_space<vmem>>, vector<1x32xf32>,
    %c2_164 = arith.constant 2 : index
    %c0_165 = arith.constant 0 : index
    %452 = vector.load %arg4[%c2_164, %c0_165] : memref<4x32xf32, #tpu.memory_space<vmem>>, vector<1x32xf32>
    tpu.vector_store %arg4[%c2_164, %c0_165], %450 {strides = array<i32>} : memref<4x32xf32, #tpu.memory_space<vmem>>, vector<1x32xf32>,
    %c3_166 = arith.constant 3 : index
    %c0_167 = arith.constant 0 : index
    %453 = vector.load %arg4[%c3_166, %c0_167] : memref<4x32xf32, #tpu.memory_space<vmem>>, vector<1x32xf32>
    tpu.vector_store %arg4[%c3_166, %c0_167], %448 {strides = array<i32>} : memref<4x32xf32, #tpu.memory_space<vmem>>, vector<1x32xf32>,
    %c0_168 = arith.constant 0 : index
    %c0_169 = arith.constant 0 : index
    %454 = vector.load %arg6[%c0_168, %c0_169] : memref<16x32xf32, #tpu.memory_space<vmem>>, vector<8x32xf32>
    %c40 = arith.constant 40 : index
    %c0_170 = arith.constant 0 : index
    %455 = vector.load %arg2[%c40, %c0_170] : memref<80x32xf32, #tpu.memory_space<vmem>>, vector<32x32xf32>
    %c72 = arith.constant 72 : index
    %c0_171 = arith.constant 0 : index
    %456 = vector.load %arg2[%c72, %c0_171] : memref<80x32xf32, #tpu.memory_space<vmem>>, vector<1x32xf32>
    %cst_172 = arith.constant dense<0.000000e+00> : vector<8x32xf32>
    %457 = tpu.matmul %454, %455, %cst_172 {dimension_numbers = #tpu.dot_dimension_numbers<[1], [0], [0], [1], [0, 0, 1, 1], [], []>} : vector<8x32xf32>, vector<32x32xf32>, vector<8x32xf32> -> vector<8x32xf32>
    %458 = vector.broadcast %456 : vector<1x32xf32> to vector<8x32xf32>
    %459 = arith.addf %457, %458 : vector<8x32xf32>
    %c0_173 = arith.constant 0 : index
    %c0_174 = arith.constant 0 : index
    %460 = vector.load %arg3[%c0_173, %c0_174] : memref<8x32xf32, #tpu.memory_space<vmem>>, vector<8x32xf32>
    tpu.vector_store %arg3[%c0_173, %c0_174], %459 {strides = array<i32>} : memref<8x32xf32, #tpu.memory_space<vmem>>, vector<8x32xf32>,
    return
  }
}

</mosaic_0001>

<llo_original>
// kernel: onnx_rnnp_forward.1
$region0: #{onnx_rnnp_forward.1}
  #allocation0 [shape = 'u32[]', space=smem, size = 0x4, offset = 0x4, fixed_abs, tag = 'smem constant byte address 0x4 - core index']
  #allocation1 [shape = 'u32[144,128]{1,0:T(1,128)}', space=vmem, size = 0x12000, scoped, tag = 'internal scratch']
  #allocation2 [shape = 'f32[16,128]{1,0:T(8,128)}', space=vmem, size = 0x2000, scoped, tag = 'scratch operand']
  #allocation3 [shape = 'f32[16,32]{1,0:T(8,128)}', space=vmem, size = 0x2000, scoped, tag = 'scratch operand']
  %s0 = inlined_call_operand.vmem [shape: f32[16,16], index: 0, kind: input, shape index: {}]
  %s1 = inlined_call_operand.hbm [shape: f32[128,128], index: 1, kind: input, shape index: {}]
  %s2 = inlined_call_operand.vmem [shape: f32[80,32], index: 2, kind: input, shape index: {}]
  %s3 = inlined_call_operand.hbm [shape: f32[8,32], index: 3, kind: output, shape index: {0}]
  %s4 = inlined_call_operand.vmem [shape: f32[4,32], index: 4, kind: output, shape index: {1}]
  %5 = xla_tuple %s3, %s4
  %s6 = sld [smem:[#allocation0]]
  $region34: #{onnx_rnnp_forward.1} parent=0
    _
  %s8 = ssub.s32 1, %s6
  %s9 = scalar_select 0, %s8, %s6
  $region1: #{onnx_rnnp_forward.1} parent=0
    #allocation4 [shape = 'u8[65536]{0}', space=vmem, size = 0x10000, scoped, tag = 'input window, operand 1, single buffered']
    #allocation5 [shape = 's32[1]{0}', space=sflag, size = 0x4, scoped, tag = 'scoped memory for onnx_rnnp_forward.1']
    #allocation6 [shape = 's32[1]{0}', space=sflag, size = 0x4, scoped, tag = 'scoped memory for onnx_rnnp_forward.1']
    #allocation7 [shape = 'u8[4096]{0}', space=vmem, size = 0x1000, scoped, tag = 'output window, operand 0, single buffered']
    %10 = vsyncpa [#allocation5], 0
    %11 = vsyncpa [#allocation6], 0
    // Predicated region
    $region2: #{onnx_rnnp_forward.1} parent=1 // pred_check
      _
    $region3: #{onnx_rnnp_forward.1} parent=1 // pred_check_branch
      %13 = sbr.rel (0) target = $region5
    $region4: #{onnx_rnnp_forward.1} parent=1 // pred_region
      _
    $region5: #{onnx_rnnp_forward.1} parent=1 // pred_fallthru
      _
    // Predicated region
    $region6: #{onnx_rnnp_forward.1} parent=1 // pred_check
      _
    $region7: #{onnx_rnnp_forward.1} parent=1 // pred_check_branch
      %15 = sbr.rel (0) target = $region9
    $region8: #{onnx_rnnp_forward.1} parent=1 // pred_region
      %s17 = ssub.s32 2048, 2048
      %18 = vsyncadd [#allocation5], %s17
      %s19 = sshll.u32 [#allocation4], 4
      %s20 = int_to_ptr.vmem [resolvable:$true] %s19
      %25 = dma.hbm_to_vmem [thread:$0]  %s1, 2048, %s20, [#allocation5], 128, 128, 8
    $region9: #{onnx_rnnp_forward.1} parent=1 // pred_fallthru
      _
    // Predicated region
    $region10: #{onnx_rnnp_forward.1} parent=1 // pred_check
      _
    $region11: #{onnx_rnnp_forward.1} parent=1 // pred_check_branch
      %27 = sbr.rel (0) target = $region13
    $region12: #{onnx_rnnp_forward.1} parent=1 // pred_region
      _
    $region13: #{onnx_rnnp_forward.1} parent=1 // pred_fallthru
      _
    // Predicated region
    $region14: #{onnx_rnnp_forward.1} parent=1 // pred_check
      _
    $region15: #{onnx_rnnp_forward.1} parent=1 // pred_check_branch
      %29 = sbr.rel (0) target = $region17
    $region16: #{onnx_rnnp_forward.1} parent=1 // pred_region
      %30 = dma.done [#allocation5], 2048
    $region17: #{onnx_rnnp_forward.1} parent=1 // pred_fallthru
      _
    %v31 = vld [vmem:[%s0] sm:$0xff]
    %v32 = vld [vmem:[%s0 + $0x8] sm:$0xff]
    %v33 = vld [vmem:[#allocation4] sm:$0xff]
    %v34 = vld [vmem:[#allocation4 + $0x8] sm:$0xff]
    %v35 = vld [vmem:[#allocation4 + $0x30] sm:$0x1]
    %v36 = vlaneseq
    %v37 = vshrl.u32 %v36, 7
    %v38 = vsub.s32 0, %v37
    %v39 = vrot.slane %v35, %v38
    %vm40 = vcmask 130048
    %v42 = vsel %vm40, %v31, 0
    %v45 = vsel %vm40, %v32, 0
    %47 = vmatprep.subr.mxu0 0.0
    %48 = vmatpush1.msra.mxu0 0.0
    %49 = vmatprep.subr.mxu0 0.0
    %50 = vmatpush1.msra.mxu0 0.0
    %51 = vmatprep.subr.mxu0 0.0
    %52 = vmatpush1.msra.mxu0 0.0
    %53 = vmatprep.subr.mxu0 0.0
    %54 = vmatpush1.msra.mxu0 0.0
    %55 = vmatprep.subr.mxu0 0.0
    %56 = vmatpush1.msra.mxu0 0.0
    %57 = vmatprep.subr.mxu0 0.0
    %58 = vmatpush1.msra.mxu0 0.0
    %59 = vmatprep.subr.mxu0 0.0
    %60 = vmatpush1.msra.mxu0 0.0
    %61 = vmatprep.subr.mxu0 0.0
    %62 = vmatpush1.msra.mxu0 0.0
    %63 = vmatprep.subr.mxu0 0.0
    %64 = vmatpush1.msra.mxu0 0.0
    %65 = vmatprep.subr.mxu0 0.0
    %66 = vmatpush1.msra.mxu0 0.0
    %67 = vmatprep.subr.mxu0 0.0
    %68 = vmatpush1.msra.mxu0 0.0
    %69 = vmatprep.subr.mxu0 0.0
    %70 = vmatpush1.msra.mxu0 0.0
    %71 = vmatprep.subr.mxu0 0.0
    %72 = vmatpush1.msra.mxu0 0.0
    %73 = vmatprep.subr.mxu0 0.0
    %74 = vmatpush1.msra.mxu0 0.0
    %75 = vmatprep.subr.mxu0 0.0
    %76 = vmatpush1.msra.mxu0 %v34
    %77 = vmatprep.subr.mxu0 0.0
    %78 = vmatpush1.msra.mxu0 %v33
    %79 = vmatprep.subr.mxu0 0.0
    %80 = vmatpush2.msra.mxu0 0.0
    %81 = vmatprep.subr.mxu0 0.0
    %82 = vmatpush2.msra.mxu0 0.0
    %83 = vmatprep.subr.mxu0 0.0
    %84 = vmatpush2.msra.mxu0 0.0
    %85 = vmatprep.subr.mxu0 0.0
    %86 = vmatpush2.msra.mxu0 0.0
    %87 = vmatprep.subr.mxu0 0.0
    %88 = vmatpush2.msra.mxu0 0.0
    %89 = vmatprep.subr.mxu0 0.0
    %90 = vmatpush2.msra.mxu0 0.0
    %91 = vmatprep.subr.mxu0 0.0
    %92 = vmatpush2.msra.mxu0 0.0
    %93 = vmatprep.subr.mxu0 0.0
    %94 = vmatpush2.msra.mxu0 0.0
    %95 = vmatprep.subr.mxu0 0.0
    %96 = vmatpush2.msra.mxu0 0.0
    %97 = vmatprep.subr.mxu0 0.0
    %98 = vmatpush2.msra.mxu0 0.0
    %99 = vmatprep.subr.mxu0 0.0
    %100 = vmatpush2.msra.mxu0 0.0
    %101 = vmatprep.subr.mxu0 0.0
    %102 = vmatpush2.msra.mxu0 0.0
    %103 = vmatprep.subr.mxu0 0.0
    %104 = vmatpush2.msra.mxu0 0.0
    %105 = vmatprep.subr.mxu0 0.0
    %106 = vmatpush2.msra.mxu0 0.0
    %107 = vmatprep.subr.mxu0 0.0
    %108 = vmatpush2.msra.mxu0 0.0
    %109 = vmatprep.subr.mxu0 0.0
    %110 = vmatpush2.msra.mxu0 0.0
    %111 = vmatprep.mubr.f32.mxu0 0.0
    %112 = vmatmul.mubr.f32.gmra.mxu0 %v42
    %v113 = vpop.f32.mrf.mxu0
    %v114 = vadd.f32 %v39, %v113
    %v115 = vpop.f32.mrf.mxu0
    %116 = vmatprep.mubr.f32.mxu0 0.0
    %117 = vmatmul.mubr.f32.gmra.mxu0 %v45
    %v118 = vpop.f32.mrf.mxu0
    %v119 = vadd.f32 %v39, %v118
    %v120 = vpop.f32.mrf.mxu0
    %121 = vdwg.mxu0
    %122 = vst [vmem:[#allocation2] sm:$0xff] %v114
    %123 = vst [vmem:[#allocation2 + $0x8] sm:$0xff] %v119
    %v124 = vld [vmem:[#allocation4 + $0x10] sm:$0xff]
    %v125 = vld [vmem:[#allocation4 + $0x18] sm:$0xff]
    %v126 = vld [vmem:[#allocation4 + $0x20] sm:$0xff]
    %v127 = vld [vmem:[#allocation4 + $0x28] sm:$0xff]
    %v128 = vld [vmem:[#allocation2] sm:$0x1]
    %vm129 = vcmask 261120
    %v131 = vsel %vm129, 0.0, 0
    %133 = vmatprep.subr.mxu0 0.0
    %134 = vmatpush1.msra.mxu0 0.0
    %135 = vmatprep.subr.mxu0 0.0
    %136 = vmatpush1.msra.mxu0 0.0
    %137 = vmatprep.subr.mxu0 0.0
    %138 = vmatpush1.msra.mxu0 0.0
    %139 = vmatprep.subr.mxu0 0.0
    %140 = vmatpush1.msra.mxu0 0.0
    %141 = vmatprep.subr.mxu0 0.0
    %142 = vmatpush1.msra.mxu0 0.0
    %143 = vmatprep.subr.mxu0 0.0
    %144 = vmatpush1.msra.mxu0 0.0
    %145 = vmatprep.subr.mxu0 0.0
    %146 = vmatpush1.msra.mxu0 0.0
    %147 = vmatprep.subr.mxu0 0.0
    %148 = vmatpush1.msra.mxu0 0.0
    %149 = vmatprep.subr.mxu0 0.0
    %150 = vmatpush1.msra.mxu0 0.0
    %151 = vmatprep.subr.mxu0 0.0
    %152 = vmatpush1.msra.mxu0 0.0
    %153 = vmatprep.subr.mxu0 0.0
    %154 = vmatpush1.msra.mxu0 0.0
    %155 = vmatprep.subr.mxu0 0.0
    %156 = vmatpush1.msra.mxu0 0.0
    %157 = vmatprep.subr.mxu0 0.0
    %158 = vmatpush1.msra.mxu0 %v127
    %159 = vmatprep.subr.mxu0 0.0
    %160 = vmatpush1.msra.mxu0 %v126
    %161 = vmatprep.subr.mxu0 0.0
    %162 = vmatpush1.msra.mxu0 %v125
    %163 = vmatprep.subr.mxu0 0.0
    %164 = vmatpush1.msra.mxu0 %v124
    %165 = vmatprep.subr.mxu0 0.0
    %166 = vmatpush2.msra.mxu0 0.0
    %167 = vmatprep.subr.mxu0 0.0
    %168 = vmatpush2.msra.mxu0 0.0
    %169 = vmatprep.subr.mxu0 0.0
    %170 = vmatpush2.msra.mxu0 0.0
    %171 = vmatprep.subr.mxu0 0.0
    %172 = vmatpush2.msra.mxu0 0.0
    %173 = vmatprep.subr.mxu0 0.0
    %174 = vmatpush2.msra.mxu0 0.0
    %175 = vmatprep.subr.mxu0 0.0
    %176 = vmatpush2.msra.mxu0 0.0
    %177 = vmatprep.subr.mxu0 0.0
    %178 = vmatpush2.msra.mxu0 0.0
    %179 = vmatprep.subr.mxu0 0.0
    %180 = vmatpush2.msra.mxu0 0.0
    %181 = vmatprep.subr.mxu0 0.0
    %182 = vmatpush2.msra.mxu0 0.0
    %183 = vmatprep.subr.mxu0 0.0
    %184 = vmatpush2.msra.mxu0 0.0
    %185 = vmatprep.subr.mxu0 0.0
    %186 = vmatpush2.msra.mxu0 0.0
    %187 = vmatprep.subr.mxu0 0.0
    %188 = vmatpush2.msra.mxu0 0.0
    %189 = vmatprep.subr.mxu0 0.0
    %190 = vmatpush2.msra.mxu0 0.0
    %191 = vmatprep.subr.mxu0 0.0
    %192 = vmatpush2.msra.mxu0 0.0
    %193 = vmatprep.subr.mxu0 0.0
    %194 = vmatpush2.msra.mxu0 0.0
    %195 = vmatprep.subr.mxu0 0.0
    %196 = vmatpush2.msra.mxu0 0.0
    %197 = vmatprep.mubr.f32.mxu0 0.0
    %198 = vmatmul.mubr.f32.gmra.mxu0 %v131
    %v199 = vpop.f32.mrf.mxu0
    %v200 = vadd.f32 0.0, %v199
    %v201 = vpop.f32.mrf.mxu0
    %202 = vdwg.mxu0
    %v203 = vadd.f32 %v128, %v200
    %v204 = vtanh.pop %v203
    %v205 = vmul.f32 %v204, 0.5
    %v206 = vadd.f32 %v205, 0.5
    %v207 = vmul.f32 %v206, 0.0
    %209 = vrot.lane.b32.xlu0 %v204, 64
    %v210 = vpop.permute.xlu0 %209
    %v212 = vmul.f32 %v206, %v210
    %214 = vrot.lane.b32.xlu0 %v212, 32
    %v215 = vpop.permute.xlu0 %214
    %v217 = vadd.f32 %v207, %v215
    %v218 = vtanh.pop %v217
    %220 = vrot.lane.b32.xlu0 %v218, 64
    %v221 = vpop.permute.xlu0 %220
    %v223 = vmul.f32 %v206, %v221
    %225 = vrot.lane.b32.xlu0 %v223, 32
    %v226 = vpop.permute.xlu0 %225
    %vm228 = vcmask 253952
    %229 = vst.msk [vmem:[#allocation3] sm:$0x1] %vm228, %v226
    %v230 = vld [vmem:[#allocation2 + $0x1] sm:$0x1]
    %v231 = vsel %vm129, %v226, 0
    %233 = vmatprep.subr.mxu0 0.0
    %234 = vmatpush1.msra.mxu0 0.0
    %235 = vmatprep.subr.mxu0 0.0
    %236 = vmatpush1.msra.mxu0 0.0
    %237 = vmatprep.subr.mxu0 0.0
    %238 = vmatpush1.msra.mxu0 0.0
    %239 = vmatprep.subr.mxu0 0.0
    %240 = vmatpush1.msra.mxu0 0.0
    %241 = vmatprep.subr.mxu0 0.0
    %242 = vmatpush1.msra.mxu0 0.0
    %243 = vmatprep.subr.mxu0 0.0
    %244 = vmatpush1.msra.mxu0 0.0
    %245 = vmatprep.subr.mxu0 0.0
    %246 = vmatpush1.msra.mxu0 0.0
    %247 = vmatprep.subr.mxu0 0.0
    %248 = vmatpush1.msra.mxu0 0.0
    %249 = vmatprep.subr.mxu0 0.0
    %250 = vmatpush1.msra.mxu0 0.0
    %251 = vmatprep.subr.mxu0 0.0
    %252 = vmatpush1.msra.mxu0 0.0
    %253 = vmatprep.subr.mxu0 0.0
    %254 = vmatpush1.msra.mxu0 0.0
    %255 = vmatprep.subr.mxu0 0.0
    %256 = vmatpush1.msra.mxu0 0.0
    %257 = vmatprep.subr.mxu0 0.0
    %258 = vmatpush1.msra.mxu0 %v127
    %259 = vmatprep.subr.mxu0 0.0
    %260 = vmatpush1.msra.mxu0 %v126
    %261 = vmatprep.subr.mxu0 0.0
    %262 = vmatpush1.msra.mxu0 %v125
    %263 = vmatprep.subr.mxu0 0.0
    %264 = vmatpush1.msra.mxu0 %v124
    %265 = vmatprep.subr.mxu0 0.0
    %266 = vmatpush2.msra.mxu0 0.0
    %267 = vmatprep.subr.mxu0 0.0
    %268 = vmatpush2.msra.mxu0 0.0
    %269 = vmatprep.subr.mxu0 0.0
    %270 = vmatpush2.msra.mxu0 0.0
    %271 = vmatprep.subr.mxu0 0.0
    %272 = vmatpush2.msra.mxu0 0.0
    %273 = vmatprep.subr.mxu0 0.0
    %274 = vmatpush2.msra.mxu0 0.0
    %275 = vmatprep.subr.mxu0 0.0
    %276 = vmatpush2.msra.mxu0 0.0
    %277 = vmatprep.subr.mxu0 0.0
    %278 = vmatpush2.msra.mxu0 0.0
    %279 = vmatprep.subr.mxu0 0.0
    %280 = vmatpush2.msra.mxu0 0.0
    %281 = vmatprep.subr.mxu0 0.0
    %282 = vmatpush2.msra.mxu0 0.0
    %283 = vmatprep.subr.mxu0 0.0
    %284 = vmatpush2.msra.mxu0 0.0
    %285 = vmatprep.subr.mxu0 0.0
    %286 = vmatpush2.msra.mxu0 0.0
    %287 = vmatprep.subr.mxu0 0.0
    %288 = vmatpush2.msra.mxu0 0.0
    %289 = vmatprep.subr.mxu0 0.0
    %290 = vmatpush2.msra.mxu0 0.0
    %291 = vmatprep.subr.mxu0 0.0
    %292 = vmatpush2.msra.mxu0 0.0
    %293 = vmatprep.subr.mxu0 0.0
    %294 = vmatpush2.msra.mxu0 0.0
    %295 = vmatprep.subr.mxu0 0.0
    %296 = vmatpush2.msra.mxu0 0.0
    %297 = vmatprep.mubr.f32.mxu0 0.0
    %298 = vmatmul.mubr.f32.gmra.mxu0 %v231
    %v299 = vpop.f32.mrf.mxu0
    %v300 = vadd.f32 0.0, %v299
    %v301 = vpop.f32.mrf.mxu0
    %302 = vdwg.mxu0
    %v303 = vadd.f32 %v230, %v300
    %v304 = vtanh.pop %v303
    %v305 = vmul.f32 %v304, 0.5
    %v306 = vadd.f32 %v305, 0.5
    %v307 = vmul.f32 %v306, %v217
    %309 = vrot.lane.b32.xlu0 %v304, 64
    %v310 = vpop.permute.xlu0 %309
    %v312 = vmul.f32 %v306, %v310
    %314 = vrot.lane.b32.xlu0 %v312, 32
    %v315 = vpop.permute.xlu0 %314
    %v317 = vadd.f32 %v307, %v315
    %v318 = vtanh.pop %v317
    %320 = vrot.lane.b32.xlu0 %v318, 64
    %v321 = vpop.permute.xlu0 %320
    %v323 = vmul.f32 %v306, %v321
    %v324 = vld [vmem:[#allocation2 + $0x2] sm:$0x1]
    %326 = vrot.lane.b32.xlu0 %v323, 32
    %v327 = vpop.permute.xlu0 %326
    %v328 = vsel %vm129, %v327, 0
    %330 = vmatprep.subr.mxu0 0.0
    %331 = vmatpush1.msra.mxu0 0.0
    %332 = vmatprep.subr.mxu0 0.0
    %333 = vmatpush1.msra.mxu0 0.0
    %334 = vmatprep.subr.mxu0 0.0
    %335 = vmatpush1.msra.mxu0 0.0
    %336 = vmatprep.subr.mxu0 0.0
    %337 = vmatpush1.msra.mxu0 0.0
    %338 = vmatprep.subr.mxu0 0.0
    %339 = vmatpush1.msra.mxu0 0.0
    %340 = vmatprep.subr.mxu0 0.0
    %341 = vmatpush1.msra.mxu0 0.0
    %342 = vmatprep.subr.mxu0 0.0
    %343 = vmatpush1.msra.mxu0 0.0
    %344 = vmatprep.subr.mxu0 0.0
    %345 = vmatpush1.msra.mxu0 0.0
    %346 = vmatprep.subr.mxu0 0.0
    %347 = vmatpush1.msra.mxu0 0.0
    %348 = vmatprep.subr.mxu0 0.0
    %349 = vmatpush1.msra.mxu0 0.0
    %350 = vmatprep.subr.mxu0 0.0
    %351 = vmatpush1.msra.mxu0 0.0
    %352 = vmatprep.subr.mxu0 0.0
    %353 = vmatpush1.msra.mxu0 0.0
    %354 = vmatprep.subr.mxu0 0.0
    %355 = vmatpush1.msra.mxu0 %v127
    %356 = vmatprep.subr.mxu0 0.0
    %357 = vmatpush1.msra.mxu0 %v126
    %358 = vmatprep.subr.mxu0 0.0
    %359 = vmatpush1.msra.mxu0 %v125
    %360 = vmatprep.subr.mxu0 0.0
    %361 = vmatpush1.msra.mxu0 %v124
    %362 = vmatprep.subr.mxu0 0.0
    %363 = vmatpush2.msra.mxu0 0.0
    %364 = vmatprep.subr.mxu0 0.0
    %365 = vmatpush2.msra.mxu0 0.0
    %366 = vmatprep.subr.mxu0 0.0
    %367 = vmatpush2.msra.mxu0 0.0
    %368 = vmatprep.subr.mxu0 0.0
    %369 = vmatpush2.msra.mxu0 0.0
    %370 = vmatprep.subr.mxu0 0.0
    %371 = vmatpush2.msra.mxu0 0.0
    %372 = vmatprep.subr.mxu0 0.0
    %373 = vmatpush2.msra.mxu0 0.0
    %374 = vmatprep.subr.mxu0 0.0
    %375 = vmatpush2.msra.mxu0 0.0
    %376 = vmatprep.subr.mxu0 0.0
    %377 = vmatpush2.msra.mxu0 0.0
    %378 = vmatprep.subr.mxu0 0.0
    %379 = vmatpush2.msra.mxu0 0.0
    %380 = vmatprep.subr.mxu0 0.0
    %381 = vmatpush2.msra.mxu0 0.0
    %382 = vmatprep.subr.mxu0 0.0
    %383 = vmatpush2.msra.mxu0 0.0
    %384 = vmatprep.subr.mxu0 0.0
    %385 = vmatpush2.msra.mxu0 0.0
    %386 = vmatprep.subr.mxu0 0.0
    %387 = vmatpush2.msra.mxu0 0.0
    %388 = vmatprep.subr.mxu0 0.0
    %389 = vmatpush2.msra.mxu0 0.0
    %390 = vmatprep.subr.mxu0 0.0
    %391 = vmatpush2.msra.mxu0 0.0
    %392 = vmatprep.subr.mxu0 0.0
    %393 = vmatpush2.msra.mxu0 0.0
    %394 = vmatprep.mubr.f32.mxu0 0.0
    %395 = vmatmul.mubr.f32.gmra.mxu0 %v328
    %v396 = vpop.f32.mrf.mxu0
    %v397 = vadd.f32 0.0, %v396
    %v398 = vpop.f32.mrf.mxu0
    %399 = vdwg.mxu0
    %v400 = vadd.f32 %v324, %v397
    %v401 = vtanh.pop %v400
    %v402 = vmul.f32 %v401, 0.5
    %v403 = vadd.f32 %v402, 0.5
    %v404 = vmul.f32 %v403, %v317
    %406 = vrot.lane.b32.xlu0 %v401, 64
    %v407 = vpop.permute.xlu0 %406
    %v409 = vmul.f32 %v403, %v407
    %411 = vrot.lane.b32.xlu0 %v409, 32
    %v412 = vpop.permute.xlu0 %411
    %v414 = vadd.f32 %v404, %v412
    %v415 = vtanh.pop %v414
    %417 = vrot.lane.b32.xlu0 %v415, 64
    %v418 = vpop.permute.xlu0 %417
    %v420 = vmul.f32 %v403, %v418
    %422 = vrot.lane.b32.xlu0 %v420, 32
    %v423 = vpop.permute.xlu0 %422
    %425 = vst.msk [vmem:[#allocation3 + $0x1] sm:$0x1] %vm228, %v423
    %v426 = vld [vmem:[#allocation2 + $0x3] sm:$0x1]
    %v427 = vsel %vm129, %v423, 0
    %429 = vmatprep.subr.mxu0 0.0
    %430 = vmatpush1.msra.mxu0 0.0
    %431 = vmatprep.subr.mxu0 0.0
    %432 = vmatpush1.msra.mxu0 0.0
    %433 = vmatprep.subr.mxu0 0.0
    %434 = vmatpush1.msra.mxu0 0.0
    %435 = vmatprep.subr.mxu0 0.0
    %436 = vmatpush1.msra.mxu0 0.0
    %437 = vmatprep.subr.mxu0 0.0
    %438 = vmatpush1.msra.mxu0 0.0
    %439 = vmatprep.subr.mxu0 0.0
    %440 = vmatpush1.msra.mxu0 0.0
    %441 = vmatprep.subr.mxu0 0.0
    %442 = vmatpush1.msra.mxu0 0.0
    %443 = vmatprep.subr.mxu0 0.0
    %444 = vmatpush1.msra.mxu0 0.0
    %445 = vmatprep.subr.mxu0 0.0
    %446 = vmatpush1.msra.mxu0 0.0
    %447 = vmatprep.subr.mxu0 0.0
    %448 = vmatpush1.msra.mxu0 0.0
    %449 = vmatprep.subr.mxu0 0.0
    %450 = vmatpush1.msra.mxu0 0.0
    %451 = vmatprep.subr.mxu0 0.0
    %452 = vmatpush1.msra.mxu0 0.0
    %453 = vmatprep.subr.mxu0 0.0
    %454 = vmatpush1.msra.mxu0 %v127
    %455 = vmatprep.subr.mxu0 0.0
    %456 = vmatpush1.msra.mxu0 %v126
    %457 = vmatprep.subr.mxu0 0.0
    %458 = vmatpush1.msra.mxu0 %v125
    %459 = vmatprep.subr.mxu0 0.0
    %460 = vmatpush1.msra.mxu0 %v124
    %461 = vmatprep.subr.mxu0 0.0
    %462 = vmatpush2.msra.mxu0 0.0
    %463 = vmatprep.subr.mxu0 0.0
    %464 = vmatpush2.msra.mxu0 0.0
    %465 = vmatprep.subr.mxu0 0.0
    %466 = vmatpush2.msra.mxu0 0.0
    %467 = vmatprep.subr.mxu0 0.0
    %468 = vmatpush2.msra.mxu0 0.0
    %469 = vmatprep.subr.mxu0 0.0
    %470 = vmatpush2.msra.mxu0 0.0
    %471 = vmatprep.subr.mxu0 0.0
    %472 = vmatpush2.msra.mxu0 0.0
    %473 = vmatprep.subr.mxu0 0.0
    %474 = vmatpush2.msra.mxu0 0.0
    %475 = vmatprep.subr.mxu0 0.0
    %476 = vmatpush2.msra.mxu0 0.0
    %477 = vmatprep.subr.mxu0 0.0
    %478 = vmatpush2.msra.mxu0 0.0
    %479 = vmatprep.subr.mxu0 0.0
    %480 = vmatpush2.msra.mxu0 0.0
    %481 = vmatprep.subr.mxu0 0.0
    %482 = vmatpush2.msra.mxu0 0.0
    %483 = vmatprep.subr.mxu0 0.0
    %484 = vmatpush2.msra.mxu0 0.0
    %485 = vmatprep.subr.mxu0 0.0
    %486 = vmatpush2.msra.mxu0 0.0
    %487 = vmatprep.subr.mxu0 0.0
    %488 = vmatpush2.msra.mxu0 0.0
    %489 = vmatprep.subr.mxu0 0.0
    %490 = vmatpush2.msra.mxu0 0.0
    %491 = vmatprep.subr.mxu0 0.0
    %492 = vmatpush2.msra.mxu0 0.0
    %493 = vmatprep.mubr.f32.mxu0 0.0
    %494 = vmatmul.mubr.f32.gmra.mxu0 %v427
    %v495 = vpop.f32.mrf.mxu0
    %v496 = vadd.f32 0.0, %v495
    %v497 = vpop.f32.mrf.mxu0
    %498 = vdwg.mxu0
    %v499 = vadd.f32 %v426, %v496
    %v500 = vtanh.pop %v499
    %v501 = vmul.f32 %v500, 0.5
    %v502 = vadd.f32 %v501, 0.5
    %v503 = vmul.f32 %v502, %v414
    %505 = vrot.lane.b32.xlu0 %v500, 64
    %v506 = vpop.permute.xlu0 %505
    %v508 = vmul.f32 %v502, %v506
    %510 = vrot.lane.b32.xlu0 %v508, 32
    %v511 = vpop.permute.xlu0 %510
    %v513 = vadd.f32 %v503, %v511
    %v514 = vtanh.pop %v513
    %516 = vrot.lane.b32.xlu0 %v514, 64
    %v517 = vpop.permute.xlu0 %516
    %v519 = vmul.f32 %v502, %v517
    %v520 = vld [vmem:[#allocation2 + $0x4] sm:$0x1]
    %522 = vrot.lane.b32.xlu0 %v519, 32
    %v523 = vpop.permute.xlu0 %522
    %v524 = vsel %vm129, %v523, 0
    %526 = vmatprep.subr.mxu0 0.0
    %527 = vmatpush1.msra.mxu0 0.0
    %528 = vmatprep.subr.mxu0 0.0
    %529 = vmatpush1.msra.mxu0 0.0
    %530 = vmatprep.subr.mxu0 0.0
    %531 = vmatpush1.msra.mxu0 0.0
    %532 = vmatprep.subr.mxu0 0.0
    %533 = vmatpush1.msra.mxu0 0.0
    %534 = vmatprep.subr.mxu0 0.0
    %535 = vmatpush1.msra.mxu0 0.0
    %536 = vmatprep.subr.mxu0 0.0
    %537 = vmatpush1.msra.mxu0 0.0
    %538 = vmatprep.subr.mxu0 0.0
    %539 = vmatpush1.msra.mxu0 0.0
    %540 = vmatprep.subr.mxu0 0.0
    %541 = vmatpush1.msra.mxu0 0.0
    %542 = vmatprep.subr.mxu0 0.0
    %543 = vmatpush1.msra.mxu0 0.0
    %544 = vmatprep.subr.mxu0 0.0
    %545 = vmatpush1.msra.mxu0 0.0
    %546 = vmatprep.subr.mxu0 0.0
    %547 = vmatpush1.msra.mxu0 0.0
    %548 = vmatprep.subr.mxu0 0.0
    %549 = vmatpush1.msra.mxu0 0.0
    %550 = vmatprep.subr.mxu0 0.0
    %551 = vmatpush1.msra.mxu0 %v127
    %552 = vmatprep.subr.mxu0 0.0
    %553 = vmatpush1.msra.mxu0 %v126
    %554 = vmatprep.subr.mxu0 0.0
    %555 = vmatpush1.msra.mxu0 %v125
    %556 = vmatprep.subr.mxu0 0.0
    %557 = vmatpush1.msra.mxu0 %v124
    %558 = vmatprep.subr.mxu0 0.0
    %559 = vmatpush2.msra.mxu0 0.0
    %560 = vmatprep.subr.mxu0 0.0
    %561 = vmatpush2.msra.mxu0 0.0
    %562 = vmatprep.subr.mxu0 0.0
    %563 = vmatpush2.msra.mxu0 0.0
    %564 = vmatprep.subr.mxu0 0.0
    %565 = vmatpush2.msra.mxu0 0.0
    %566 = vmatprep.subr.mxu0 0.0
    %567 = vmatpush2.msra.mxu0 0.0
    %568 = vmatprep.subr.mxu0 0.0
    %569 = vmatpush2.msra.mxu0 0.0
    %570 = vmatprep.subr.mxu0 0.0
    %571 = vmatpush2.msra.mxu0 0.0
    %572 = vmatprep.subr.mxu0 0.0
    %573 = vmatpush2.msra.mxu0 0.0
    %574 = vmatprep.subr.mxu0 0.0
    %575 = vmatpush2.msra.mxu0 0.0
    %576 = vmatprep.subr.mxu0 0.0
    %577 = vmatpush2.msra.mxu0 0.0
    %578 = vmatprep.subr.mxu0 0.0
    %579 = vmatpush2.msra.mxu0 0.0
    %580 = vmatprep.subr.mxu0 0.0
    %581 = vmatpush2.msra.mxu0 0.0
    %582 = vmatprep.subr.mxu0 0.0
    %583 = vmatpush2.msra.mxu0 0.0
    %584 = vmatprep.subr.mxu0 0.0
    %585 = vmatpush2.msra.mxu0 0.0
    %586 = vmatprep.subr.mxu0 0.0
    %587 = vmatpush2.msra.mxu0 0.0
    %588 = vmatprep.subr.mxu0 0.0
    %589 = vmatpush2.msra.mxu0 0.0
    %590 = vmatprep.mubr.f32.mxu0 0.0
    %591 = vmatmul.mubr.f32.gmra.mxu0 %v524
    %v592 = vpop.f32.mrf.mxu0
    %v593 = vadd.f32 0.0, %v592
    %v594 = vpop.f32.mrf.mxu0
    %595 = vdwg.mxu0
    %v596 = vadd.f32 %v520, %v593
    %v597 = vtanh.pop %v596
    %v598 = vmul.f32 %v597, 0.5
    %v599 = vadd.f32 %v598, 0.5
    %v600 = vmul.f32 %v599, %v513
    %602 = vrot.lane.b32.xlu0 %v597, 64
    %v603 = vpop.permute.xlu0 %602
    %v605 = vmul.f32 %v599, %v603
    %607 = vrot.lane.b32.xlu0 %v605, 32
    %v608 = vpop.permute.xlu0 %607
    %v610 = vadd.f32 %v600, %v608
    %v611 = vtanh.pop %v610
    %613 = vrot.lane.b32.xlu0 %v611, 64
    %v614 = vpop.permute.xlu0 %613
    %v616 = vmul.f32 %v599, %v614
    %618 = vrot.lane.b32.xlu0 %v616, 32
    %v619 = vpop.permute.xlu0 %618
    %621 = vst.msk [vmem:[#allocation3 + $0x2] sm:$0x1] %vm228, %v619
    %v622 = vld [vmem:[#allocation2 + $0x5] sm:$0x1]
    %v623 = vsel %vm129, %v619, 0
    %625 = vmatprep.subr.mxu0 0.0
    %626 = vmatpush1.msra.mxu0 0.0
    %627 = vmatprep.subr.mxu0 0.0
    %628 = vmatpush1.msra.mxu0 0.0
    %629 = vmatprep.subr.mxu0 0.0
    %630 = vmatpush1.msra.mxu0 0.0
    %631 = vmatprep.subr.mxu0 0.0
    %632 = vmatpush1.msra.mxu0 0.0
    %633 = vmatprep.subr.mxu0 0.0
    %634 = vmatpush1.msra.mxu0 0.0
    %635 = vmatprep.subr.mxu0 0.0
    %636 = vmatpush1.msra.mxu0 0.0
    %637 = vmatprep.subr.mxu0 0.0
    %638 = vmatpush1.msra.mxu0 0.0
    %639 = vmatprep.subr.mxu0 0.0
    %640 = vmatpush1.msra.mxu0 0.0
    %641 = vmatprep.subr.mxu0 0.0
    %642 = vmatpush1.msra.mxu0 0.0
    %643 = vmatprep.subr.mxu0 0.0
    %644 = vmatpush1.msra.mxu0 0.0
    %645 = vmatprep.subr.mxu0 0.0
    %646 = vmatpush1.msra.mxu0 0.0
    %647 = vmatprep.subr.mxu0 0.0
    %648 = vmatpush1.msra.mxu0 0.0
    %649 = vmatprep.subr.mxu0 0.0
    %650 = vmatpush1.msra.mxu0 %v127
    %651 = vmatprep.subr.mxu0 0.0
    %652 = vmatpush1.msra.mxu0 %v126
    %653 = vmatprep.subr.mxu0 0.0
    %654 = vmatpush1.msra.mxu0 %v125
    %655 = vmatprep.subr.mxu0 0.0
    %656 = vmatpush1.msra.mxu0 %v124
    %657 = vmatprep.subr.mxu0 0.0
    %658 = vmatpush2.msra.mxu0 0.0
    %659 = vmatprep.subr.mxu0 0.0
    %660 = vmatpush2.msra.mxu0 0.0
    %661 = vmatprep.subr.mxu0 0.0
    %662 = vmatpush2.msra.mxu0 0.0
    %663 = vmatprep.subr.mxu0 0.0
    %664 = vmatpush2.msra.mxu0 0.0
    %665 = vmatprep.subr.mxu0 0.0
    %666 = vmatpush2.msra.mxu0 0.0
    %667 = vmatprep.subr.mxu0 0.0
    %668 = vmatpush2.msra.mxu0 0.0
    %669 = vmatprep.subr.mxu0 0.0
    %670 = vmatpush2.msra.mxu0 0.0
    %671 = vmatprep.subr.mxu0 0.0
    %672 = vmatpush2.msra.mxu0 0.0
    %673 = vmatprep.subr.mxu0 0.0
    %674 = vmatpush2.msra.mxu0 0.0
    %675 = vmatprep.subr.mxu0 0.0
    %676 = vmatpush2.msra.mxu0 0.0
    %677 = vmatprep.subr.mxu0 0.0
    %678 = vmatpush2.msra.mxu0 0.0
    %679 = vmatprep.subr.mxu0 0.0
    %680 = vmatpush2.msra.mxu0 0.0
    %681 = vmatprep.subr.mxu0 0.0
    %682 = vmatpush2.msra.mxu0 0.0
    %683 = vmatprep.subr.mxu0 0.0
    %684 = vmatpush2.msra.mxu0 0.0
    %685 = vmatprep.subr.mxu0 0.0
    %686 = vmatpush2.msra.mxu0 0.0
    %687 = vmatprep.subr.mxu0 0.0
    %688 = vmatpush2.msra.mxu0 0.0
    %689 = vmatprep.mubr.f32.mxu0 0.0
    %690 = vmatmul.mubr.f32.gmra.mxu0 %v623
    %v691 = vpop.f32.mrf.mxu0
    %v692 = vadd.f32 0.0, %v691
    %v693 = vpop.f32.mrf.mxu0
    %694 = vdwg.mxu0
    %v695 = vadd.f32 %v622, %v692
    %v696 = vtanh.pop %v695
    %v697 = vmul.f32 %v696, 0.5
    %v698 = vadd.f32 %v697, 0.5
    %v699 = vmul.f32 %v698, %v610
    %701 = vrot.lane.b32.xlu0 %v696, 64
    %v702 = vpop.permute.xlu0 %701
    %v704 = vmul.f32 %v698, %v702
    %706 = vrot.lane.b32.xlu0 %v704, 32
    %v707 = vpop.permute.xlu0 %706
    %v709 = vadd.f32 %v699, %v707
    %v710 = vtanh.pop %v709
    %712 = vrot.lane.b32.xlu0 %v710, 64
    %v713 = vpop.permute.xlu0 %712
    %v715 = vmul.f32 %v698, %v713
    %v716 = vld [vmem:[#allocation2 + $0x6] sm:$0x1]
    %718 = vrot.lane.b32.xlu0 %v715, 32
    %v719 = vpop.permute.xlu0 %718
    %v720 = vsel %vm129, %v719, 0
    %722 = vmatprep.subr.mxu0 0.0
    %723 = vmatpush1.msra.mxu0 0.0
    %724 = vmatprep.subr.mxu0 0.0
    %725 = vmatpush1.msra.mxu0 0.0
    %726 = vmatprep.subr.mxu0 0.0
    %727 = vmatpush1.msra.mxu0 0.0
    %728 = vmatprep.subr.mxu0 0.0
    %729 = vmatpush1.msra.mxu0 0.0
    %730 = vmatprep.subr.mxu0 0.0
    %731 = vmatpush1.msra.mxu0 0.0
    %732 = vmatprep.subr.mxu0 0.0
    %733 = vmatpush1.msra.mxu0 0.0
    %734 = vmatprep.subr.mxu0 0.0
    %735 = vmatpush1.msra.mxu0 0.0
    %736 = vmatprep.subr.mxu0 0.0
    %737 = vmatpush1.msra.mxu0 0.0
    %738 = vmatprep.subr.mxu0 0.0
    %739 = vmatpush1.msra.mxu0 0.0
    %740 = vmatprep.subr.mxu0 0.0
    %741 = vmatpush1.msra.mxu0 0.0
    %742 = vmatprep.subr.mxu0 0.0
    %743 = vmatpush1.msra.mxu0 0.0
    %744 = vmatprep.subr.mxu0 0.0
    %745 = vmatpush1.msra.mxu0 0.0
    %746 = vmatprep.subr.mxu0 0.0
    %747 = vmatpush1.msra.mxu0 %v127
    %748 = vmatprep.subr.mxu0 0.0
    %749 = vmatpush1.msra.mxu0 %v126
    %750 = vmatprep.subr.mxu0 0.0
    %751 = vmatpush1.msra.mxu0 %v125
    %752 = vmatprep.subr.mxu0 0.0
    %753 = vmatpush1.msra.mxu0 %v124
    %754 = vmatprep.subr.mxu0 0.0
    %755 = vmatpush2.msra.mxu0 0.0
    %756 = vmatprep.subr.mxu0 0.0
    %757 = vmatpush2.msra.mxu0 0.0
    %758 = vmatprep.subr.mxu0 0.0
    %759 = vmatpush2.msra.mxu0 0.0
    %760 = vmatprep.subr.mxu0 0.0
    %761 = vmatpush2.msra.mxu0 0.0
    %762 = vmatprep.subr.mxu0 0.0
    %763 = vmatpush2.msra.mxu0 0.0
    %764 = vmatprep.subr.mxu0 0.0
    %765 = vmatpush2.msra.mxu0 0.0
    %766 = vmatprep.subr.mxu0 0.0
    %767 = vmatpush2.msra.mxu0 0.0
    %768 = vmatprep.subr.mxu0 0.0
    %769 = vmatpush2.msra.mxu0 0.0
    %770 = vmatprep.subr.mxu0 0.0
    %771 = vmatpush2.msra.mxu0 0.0
    %772 = vmatprep.subr.mxu0 0.0
    %773 = vmatpush2.msra.mxu0 0.0
    %774 = vmatprep.subr.mxu0 0.0
    %775 = vmatpush2.msra.mxu0 0.0
    %776 = vmatprep.subr.mxu0 0.0
    %777 = vmatpush2.msra.mxu0 0.0
    %778 = vmatprep.subr.mxu0 0.0
    %779 = vmatpush2.msra.mxu0 0.0
    %780 = vmatprep.subr.mxu0 0.0
    %781 = vmatpush2.msra.mxu0 0.0
    %782 = vmatprep.subr.mxu0 0.0
    %783 = vmatpush2.msra.mxu0 0.0
    %784 = vmatprep.subr.mxu0 0.0
    %785 = vmatpush2.msra.mxu0 0.0
    %786 = vmatprep.mubr.f32.mxu0 0.0
    %787 = vmatmul.mubr.f32.gmra.mxu0 %v720
    %v788 = vpop.f32.mrf.mxu0
    %v789 = vadd.f32 0.0, %v788
    %v790 = vpop.f32.mrf.mxu0
    %791 = vdwg.mxu0
    %v792 = vadd.f32 %v716, %v789
    %v793 = vtanh.pop %v792
    %v794 = vmul.f32 %v793, 0.5
    %v795 = vadd.f32 %v794, 0.5
    %v796 = vmul.f32 %v795, %v709
    %798 = vrot.lane.b32.xlu0 %v793, 64
    %v799 = vpop.permute.xlu0 %798
    %v801 = vmul.f32 %v795, %v799
    %803 = vrot.lane.b32.xlu0 %v801, 32
    %v804 = vpop.permute.xlu0 %803
    %v806 = vadd.f32 %v796, %v804
    %v807 = vtanh.pop %v806
    %809 = vrot.lane.b32.xlu0 %v807, 64
    %v810 = vpop.permute.xlu0 %809
    %v812 = vmul.f32 %v795, %v810
    %814 = vrot.lane.b32.xlu0 %v812, 32
    %v815 = vpop.permute.xlu0 %814
    %817 = vst.msk [vmem:[#allocation3 + $0x3] sm:$0x1] %vm228, %v815
    %v818 = vld [vmem:[#allocation2 + $0x7] sm:$0x1]
    %v819 = vsel %vm129, %v815, 0
    %821 = vmatprep.subr.mxu0 0.0
    %822 = vmatpush1.msra.mxu0 0.0
    %823 = vmatprep.subr.mxu0 0.0
    %824 = vmatpush1.msra.mxu0 0.0
    %825 = vmatprep.subr.mxu0 0.0
    %826 = vmatpush1.msra.mxu0 0.0
    %827 = vmatprep.subr.mxu0 0.0
    %828 = vmatpush1.msra.mxu0 0.0
    %829 = vmatprep.subr.mxu0 0.0
    %830 = vmatpush1.msra.mxu0 0.0
    %831 = vmatprep.subr.mxu0 0.0
    %832 = vmatpush1.msra.mxu0 0.0
    %833 = vmatprep.subr.mxu0 0.0
    %834 = vmatpush1.msra.mxu0 0.0
    %835 = vmatprep.subr.mxu0 0.0
    %836 = vmatpush1.msra.mxu0 0.0
    %837 = vmatprep.subr.mxu0 0.0
    %838 = vmatpush1.msra.mxu0 0.0
    %839 = vmatprep.subr.mxu0 0.0
    %840 = vmatpush1.msra.mxu0 0.0
    %841 = vmatprep.subr.mxu0 0.0
    %842 = vmatpush1.msra.mxu0 0.0
    %843 = vmatprep.subr.mxu0 0.0
    %844 = vmatpush1.msra.mxu0 0.0
    %845 = vmatprep.subr.mxu0 0.0
    %846 = vmatpush1.msra.mxu0 %v127
    %847 = vmatprep.subr.mxu0 0.0
    %848 = vmatpush1.msra.mxu0 %v126
    %849 = vmatprep.subr.mxu0 0.0
    %850 = vmatpush1.msra.mxu0 %v125
    %851 = vmatprep.subr.mxu0 0.0
    %852 = vmatpush1.msra.mxu0 %v124
    %853 = vmatprep.subr.mxu0 0.0
    %854 = vmatpush2.msra.mxu0 0.0
    %855 = vmatprep.subr.mxu0 0.0
    %856 = vmatpush2.msra.mxu0 0.0
    %857 = vmatprep.subr.mxu0 0.0
    %858 = vmatpush2.msra.mxu0 0.0
    %859 = vmatprep.subr.mxu0 0.0
    %860 = vmatpush2.msra.mxu0 0.0
    %861 = vmatprep.subr.mxu0 0.0
    %862 = vmatpush2.msra.mxu0 0.0
    %863 = vmatprep.subr.mxu0 0.0
    %864 = vmatpush2.msra.mxu0 0.0
    %865 = vmatprep.subr.mxu0 0.0
    %866 = vmatpush2.msra.mxu0 0.0
    %867 = vmatprep.subr.mxu0 0.0
    %868 = vmatpush2.msra.mxu0 0.0
    %869 = vmatprep.subr.mxu0 0.0
    %870 = vmatpush2.msra.mxu0 0.0
    %871 = vmatprep.subr.mxu0 0.0
    %872 = vmatpush2.msra.mxu0 0.0
    %873 = vmatprep.subr.mxu0 0.0
    %874 = vmatpush2.msra.mxu0 0.0
    %875 = vmatprep.subr.mxu0 0.0
    %876 = vmatpush2.msra.mxu0 0.0
    %877 = vmatprep.subr.mxu0 0.0
    %878 = vmatpush2.msra.mxu0 0.0
    %879 = vmatprep.subr.mxu0 0.0
    %880 = vmatpush2.msra.mxu0 0.0
    %881 = vmatprep.subr.mxu0 0.0
    %882 = vmatpush2.msra.mxu0 0.0
    %883 = vmatprep.subr.mxu0 0.0
    %884 = vmatpush2.msra.mxu0 0.0
    %885 = vmatprep.mubr.f32.mxu0 0.0
    %886 = vmatmul.mubr.f32.gmra.mxu0 %v819
    %v887 = vpop.f32.mrf.mxu0
    %v888 = vadd.f32 0.0, %v887
    %v889 = vpop.f32.mrf.mxu0
    %890 = vdwg.mxu0
    %v891 = vadd.f32 %v818, %v888
    %v892 = vtanh.pop %v891
    %v893 = vmul.f32 %v892, 0.5
    %v894 = vadd.f32 %v893, 0.5
    %v895 = vmul.f32 %v894, %v806
    %897 = vrot.lane.b32.xlu0 %v892, 64
    %v898 = vpop.permute.xlu0 %897
    %v900 = vmul.f32 %v894, %v898
    %902 = vrot.lane.b32.xlu0 %v900, 32
    %v903 = vpop.permute.xlu0 %902
    %v905 = vadd.f32 %v895, %v903
    %v906 = vtanh.pop %v905
    %908 = vrot.lane.b32.xlu0 %v906, 64
    %v909 = vpop.permute.xlu0 %908
    %v911 = vmul.f32 %v894, %v909
    %v912 = vld [vmem:[#allocation2 + $0x8] sm:$0x1]
    %914 = vrot.lane.b32.xlu0 %v911, 32
    %v915 = vpop.permute.xlu0 %914
    %v916 = vsel %vm129, %v915, 0
    %918 = vmatprep.subr.mxu0 0.0
    %919 = vmatpush1.msra.mxu0 0.0
    %920 = vmatprep.subr.mxu0 0.0
    %921 = vmatpush1.msra.mxu0 0.0
    %922 = vmatprep.subr.mxu0 0.0
    %923 = vmatpush1.msra.mxu0 0.0
    %924 = vmatprep.subr.mxu0 0.0
    %925 = vmatpush1.msra.mxu0 0.0
    %926 = vmatprep.subr.mxu0 0.0
    %927 = vmatpush1.msra.mxu0 0.0
    %928 = vmatprep.subr.mxu0 0.0
    %929 = vmatpush1.msra.mxu0 0.0
    %930 = vmatprep.subr.mxu0 0.0
    %931 = vmatpush1.msra.mxu0 0.0
    %932 = vmatprep.subr.mxu0 0.0
    %933 = vmatpush1.msra.mxu0 0.0
    %934 = vmatprep.subr.mxu0 0.0
    %935 = vmatpush1.msra.mxu0 0.0
    %936 = vmatprep.subr.mxu0 0.0
    %937 = vmatpush1.msra.mxu0 0.0
    %938 = vmatprep.subr.mxu0 0.0
    %939 = vmatpush1.msra.mxu0 0.0
    %940 = vmatprep.subr.mxu0 0.0
    %941 = vmatpush1.msra.mxu0 0.0
    %942 = vmatprep.subr.mxu0 0.0
    %943 = vmatpush1.msra.mxu0 %v127
    %944 = vmatprep.subr.mxu0 0.0
    %945 = vmatpush1.msra.mxu0 %v126
    %946 = vmatprep.subr.mxu0 0.0
    %947 = vmatpush1.msra.mxu0 %v125
    %948 = vmatprep.subr.mxu0 0.0
    %949 = vmatpush1.msra.mxu0 %v124
    %950 = vmatprep.subr.mxu0 0.0
    %951 = vmatpush2.msra.mxu0 0.0
    %952 = vmatprep.subr.mxu0 0.0
    %953 = vmatpush2.msra.mxu0 0.0
    %954 = vmatprep.subr.mxu0 0.0
    %955 = vmatpush2.msra.mxu0 0.0
    %956 = vmatprep.subr.mxu0 0.0
    %957 = vmatpush2.msra.mxu0 0.0
    %958 = vmatprep.subr.mxu0 0.0
    %959 = vmatpush2.msra.mxu0 0.0
    %960 = vmatprep.subr.mxu0 0.0
    %961 = vmatpush2.msra.mxu0 0.0
    %962 = vmatprep.subr.mxu0 0.0
    %963 = vmatpush2.msra.mxu0 0.0
    %964 = vmatprep.subr.mxu0 0.0
    %965 = vmatpush2.msra.mxu0 0.0
    %966 = vmatprep.subr.mxu0 0.0
    %967 = vmatpush2.msra.mxu0 0.0
    %968 = vmatprep.subr.mxu0 0.0
    %969 = vmatpush2.msra.mxu0 0.0
    %970 = vmatprep.subr.mxu0 0.0
    %971 = vmatpush2.msra.mxu0 0.0
    %972 = vmatprep.subr.mxu0 0.0
    %973 = vmatpush2.msra.mxu0 0.0
    %974 = vmatprep.subr.mxu0 0.0
    %975 = vmatpush2.msra.mxu0 0.0
    %976 = vmatprep.subr.mxu0 0.0
    %977 = vmatpush2.msra.mxu0 0.0
    %978 = vmatprep.subr.mxu0 0.0
    %979 = vmatpush2.msra.mxu0 0.0
    %980 = vmatprep.subr.mxu0 0.0
    %981 = vmatpush2.msra.mxu0 0.0
    %982 = vmatprep.mubr.f32.mxu0 0.0
    %983 = vmatmul.mubr.f32.gmra.mxu0 %v916
    %v984 = vpop.f32.mrf.mxu0
    %v985 = vadd.f32 0.0, %v984
    %v986 = vpop.f32.mrf.mxu0
    %987 = vdwg.mxu0
    %v988 = vadd.f32 %v912, %v985
    %v989 = vtanh.pop %v988
    %v990 = vmul.f32 %v989, 0.5
    %v991 = vadd.f32 %v990, 0.5
    %v992 = vmul.f32 %v991, %v905
    %994 = vrot.lane.b32.xlu0 %v989, 64
    %v995 = vpop.permute.xlu0 %994
    %v997 = vmul.f32 %v991, %v995
    %999 = vrot.lane.b32.xlu0 %v997, 32
    %v1000 = vpop.permute.xlu0 %999
    %v1002 = vadd.f32 %v992, %v1000
    %v1003 = vtanh.pop %v1002
    %1005 = vrot.lane.b32.xlu0 %v1003, 64
    %v1006 = vpop.permute.xlu0 %1005
    %v1008 = vmul.f32 %v991, %v1006
    %1010 = vrot.lane.b32.xlu0 %v1008, 32
    %v1011 = vpop.permute.xlu0 %1010
    %1013 = vst.msk [vmem:[#allocation3 + $0x4] sm:$0x1] %vm228, %v1011
    %v1014 = vld [vmem:[#allocation2 + $0x9] sm:$0x1]
    %v1015 = vsel %vm129, %v1011, 0
    %1017 = vmatprep.subr.mxu0 0.0
    %1018 = vmatpush1.msra.mxu0 0.0
    %1019 = vmatprep.subr.mxu0 0.0
    %1020 = vmatpush1.msra.mxu0 0.0
    %1021 = vmatprep.subr.mxu0 0.0
    %1022 = vmatpush1.msra.mxu0 0.0
    %1023 = vmatprep.subr.mxu0 0.0
    %1024 = vmatpush1.msra.mxu0 0.0
    %1025 = vmatprep.subr.mxu0 0.0
    %1026 = vmatpush1.msra.mxu0 0.0
    %1027 = vmatprep.subr.mxu0 0.0
    %1028 = vmatpush1.msra.mxu0 0.0
    %1029 = vmatprep.subr.mxu0 0.0
    %1030 = vmatpush1.msra.mxu0 0.0
    %1031 = vmatprep.subr.mxu0 0.0
    %1032 = vmatpush1.msra.mxu0 0.0
    %1033 = vmatprep.subr.mxu0 0.0
    %1034 = vmatpush1.msra.mxu0 0.0
    %1035 = vmatprep.subr.mxu0 0.0
    %1036 = vmatpush1.msra.mxu0 0.0
    %1037 = vmatprep.subr.mxu0 0.0
    %1038 = vmatpush1.msra.mxu0 0.0
    %1039 = vmatprep.subr.mxu0 0.0
    %1040 = vmatpush1.msra.mxu0 0.0
    %1041 = vmatprep.subr.mxu0 0.0
    %1042 = vmatpush1.msra.mxu0 %v127
    %1043 = vmatprep.subr.mxu0 0.0
    %1044 = vmatpush1.msra.mxu0 %v126
    %1045 = vmatprep.subr.mxu0 0.0
    %1046 = vmatpush1.msra.mxu0 %v125
    %1047 = vmatprep.subr.mxu0 0.0
    %1048 = vmatpush1.msra.mxu0 %v124
    %1049 = vmatprep.subr.mxu0 0.0
    %1050 = vmatpush2.msra.mxu0 0.0
    %1051 = vmatprep.subr.mxu0 0.0
    %1052 = vmatpush2.msra.mxu0 0.0
    %1053 = vmatprep.subr.mxu0 0.0
    %1054 = vmatpush2.msra.mxu0 0.0
    %1055 = vmatprep.subr.mxu0 0.0
    %1056 = vmatpush2.msra.mxu0 0.0
    %1057 = vmatprep.subr.mxu0 0.0
    %1058 = vmatpush2.msra.mxu0 0.0
    %1059 = vmatprep.subr.mxu0 0.0
    %1060 = vmatpush2.msra.mxu0 0.0
    %1061 = vmatprep.subr.mxu0 0.0
    %1062 = vmatpush2.msra.mxu0 0.0
    %1063 = vmatprep.subr.mxu0 0.0
    %1064 = vmatpush2.msra.mxu0 0.0
    %1065 = vmatprep.subr.mxu0 0.0
    %1066 = vmatpush2.msra.mxu0 0.0
    %1067 = vmatprep.subr.mxu0 0.0
    %1068 = vmatpush2.msra.mxu0 0.0
    %1069 = vmatprep.subr.mxu0 0.0
    %1070 = vmatpush2.msra.mxu0 0.0
    %1071 = vmatprep.subr.mxu0 0.0
    %1072 = vmatpush2.msra.mxu0 0.0
    %1073 = vmatprep.subr.mxu0 0.0
    %1074 = vmatpush2.msra.mxu0 0.0
    %1075 = vmatprep.subr.mxu0 0.0
    %1076 = vmatpush2.msra.mxu0 0.0
    %1077 = vmatprep.subr.mxu0 0.0
    %1078 = vmatpush2.msra.mxu0 0.0
    %1079 = vmatprep.subr.mxu0 0.0
    %1080 = vmatpush2.msra.mxu0 0.0
    %1081 = vmatprep.mubr.f32.mxu0 0.0
    %1082 = vmatmul.mubr.f32.gmra.mxu0 %v1015
    %v1083 = vpop.f32.mrf.mxu0
    %v1084 = vadd.f32 0.0, %v1083
    %v1085 = vpop.f32.mrf.mxu0
    %1086 = vdwg.mxu0
    %v1087 = vadd.f32 %v1014, %v1084
    %v1088 = vtanh.pop %v1087
    %v1089 = vmul.f32 %v1088, 0.5
    %v1090 = vadd.f32 %v1089, 0.5
    %v1091 = vmul.f32 %v1090, %v1002
    %1093 = vrot.lane.b32.xlu0 %v1088, 64
    %v1094 = vpop.permute.xlu0 %1093
    %v1096 = vmul.f32 %v1090, %v1094
    %1098 = vrot.lane.b32.xlu0 %v1096, 32
    %v1099 = vpop.permute.xlu0 %1098
    %v1101 = vadd.f32 %v1091, %v1099
    %v1102 = vtanh.pop %v1101
    %1104 = vrot.lane.b32.xlu0 %v1102, 64
    %v1105 = vpop.permute.xlu0 %1104
    %v1107 = vmul.f32 %v1090, %v1105
    %v1108 = vld [vmem:[#allocation2 + $0xa] sm:$0x1]
    %1110 = vrot.lane.b32.xlu0 %v1107, 32
    %v1111 = vpop.permute.xlu0 %1110
    %v1112 = vsel %vm129, %v1111, 0
    %1114 = vmatprep.subr.mxu0 0.0
    %1115 = vmatpush1.msra.mxu0 0.0
    %1116 = vmatprep.subr.mxu0 0.0
    %1117 = vmatpush1.msra.mxu0 0.0
    %1118 = vmatprep.subr.mxu0 0.0
    %1119 = vmatpush1.msra.mxu0 0.0
    %1120 = vmatprep.subr.mxu0 0.0
    %1121 = vmatpush1.msra.mxu0 0.0
    %1122 = vmatprep.subr.mxu0 0.0
    %1123 = vmatpush1.msra.mxu0 0.0
    %1124 = vmatprep.subr.mxu0 0.0
    %1125 = vmatpush1.msra.mxu0 0.0
    %1126 = vmatprep.subr.mxu0 0.0
    %1127 = vmatpush1.msra.mxu0 0.0
    %1128 = vmatprep.subr.mxu0 0.0
    %1129 = vmatpush1.msra.mxu0 0.0
    %1130 = vmatprep.subr.mxu0 0.0
    %1131 = vmatpush1.msra.mxu0 0.0
    %1132 = vmatprep.subr.mxu0 0.0
    %1133 = vmatpush1.msra.mxu0 0.0
    %1134 = vmatprep.subr.mxu0 0.0
    %1135 = vmatpush1.msra.mxu0 0.0
    %1136 = vmatprep.subr.mxu0 0.0
    %1137 = vmatpush1.msra.mxu0 0.0
    %1138 = vmatprep.subr.mxu0 0.0
    %1139 = vmatpush1.msra.mxu0 %v127
    %1140 = vmatprep.subr.mxu0 0.0
    %1141 = vmatpush1.msra.mxu0 %v126
    %1142 = vmatprep.subr.mxu0 0.0
    %1143 = vmatpush1.msra.mxu0 %v125
    %1144 = vmatprep.subr.mxu0 0.0
    %1145 = vmatpush1.msra.mxu0 %v124
    %1146 = vmatprep.subr.mxu0 0.0
    %1147 = vmatpush2.msra.mxu0 0.0
    %1148 = vmatprep.subr.mxu0 0.0
    %1149 = vmatpush2.msra.mxu0 0.0
    %1150 = vmatprep.subr.mxu0 0.0
    %1151 = vmatpush2.msra.mxu0 0.0
    %1152 = vmatprep.subr.mxu0 0.0
    %1153 = vmatpush2.msra.mxu0 0.0
    %1154 = vmatprep.subr.mxu0 0.0
    %1155 = vmatpush2.msra.mxu0 0.0
    %1156 = vmatprep.subr.mxu0 0.0
    %1157 = vmatpush2.msra.mxu0 0.0
    %1158 = vmatprep.subr.mxu0 0.0
    %1159 = vmatpush2.msra.mxu0 0.0
    %1160 = vmatprep.subr.mxu0 0.0
    %1161 = vmatpush2.msra.mxu0 0.0
    %1162 = vmatprep.subr.mxu0 0.0
    %1163 = vmatpush2.msra.mxu0 0.0
    %1164 = vmatprep.subr.mxu0 0.0
    %1165 = vmatpush2.msra.mxu0 0.0
    %1166 = vmatprep.subr.mxu0 0.0
    %1167 = vmatpush2.msra.mxu0 0.0
    %1168 = vmatprep.subr.mxu0 0.0
    %1169 = vmatpush2.msra.mxu0 0.0
    %1170 = vmatprep.subr.mxu0 0.0
    %1171 = vmatpush2.msra.mxu0 0.0
    %1172 = vmatprep.subr.mxu0 0.0
    %1173 = vmatpush2.msra.mxu0 0.0
    %1174 = vmatprep.subr.mxu0 0.0
    %1175 = vmatpush2.msra.mxu0 0.0
    %1176 = vmatprep.subr.mxu0 0.0
    %1177 = vmatpush2.msra.mxu0 0.0
    %1178 = vmatprep.mubr.f32.mxu0 0.0
    %1179 = vmatmul.mubr.f32.gmra.mxu0 %v1112
    %v1180 = vpop.f32.mrf.mxu0
    %v1181 = vadd.f32 0.0, %v1180
    %v1182 = vpop.f32.mrf.mxu0
    %1183 = vdwg.mxu0
    %v1184 = vadd.f32 %v1108, %v1181
    %v1185 = vtanh.pop %v1184
    %v1186 = vmul.f32 %v1185, 0.5
    %v1187 = vadd.f32 %v1186, 0.5
    %v1188 = vmul.f32 %v1187, %v1101
    %1190 = vrot.lane.b32.xlu0 %v1185, 64
    %v1191 = vpop.permute.xlu0 %1190
    %v1193 = vmul.f32 %v1187, %v1191
    %1195 = vrot.lane.b32.xlu0 %v1193, 32
    %v1196 = vpop.permute.xlu0 %1195
    %v1198 = vadd.f32 %v1188, %v1196
    %v1199 = vtanh.pop %v1198
    %1201 = vrot.lane.b32.xlu0 %v1199, 64
    %v1202 = vpop.permute.xlu0 %1201
    %v1204 = vmul.f32 %v1187, %v1202
    %1206 = vrot.lane.b32.xlu0 %v1204, 32
    %v1207 = vpop.permute.xlu0 %1206
    %1209 = vst.msk [vmem:[#allocation3 + $0x5] sm:$0x1] %vm228, %v1207
    %v1210 = vld [vmem:[#allocation2 + $0xb] sm:$0x1]
    %v1211 = vsel %vm129, %v1207, 0
    %1213 = vmatprep.subr.mxu0 0.0
    %1214 = vmatpush1.msra.mxu0 0.0
    %1215 = vmatprep.subr.mxu0 0.0
    %1216 = vmatpush1.msra.mxu0 0.0
    %1217 = vmatprep.subr.mxu0 0.0
    %1218 = vmatpush1.msra.mxu0 0.0
    %1219 = vmatprep.subr.mxu0 0.0
    %1220 = vmatpush1.msra.mxu0 0.0
    %1221 = vmatprep.subr.mxu0 0.0
    %1222 = vmatpush1.msra.mxu0 0.0
    %1223 = vmatprep.subr.mxu0 0.0
    %1224 = vmatpush1.msra.mxu0 0.0
    %1225 = vmatprep.subr.mxu0 0.0
    %1226 = vmatpush1.msra.mxu0 0.0
    %1227 = vmatprep.subr.mxu0 0.0
    %1228 = vmatpush1.msra.mxu0 0.0
    %1229 = vmatprep.subr.mxu0 0.0
    %1230 = vmatpush1.msra.mxu0 0.0
    %1231 = vmatprep.subr.mxu0 0.0
    %1232 = vmatpush1.msra.mxu0 0.0
    %1233 = vmatprep.subr.mxu0 0.0
    %1234 = vmatpush1.msra.mxu0 0.0
    %1235 = vmatprep.subr.mxu0 0.0
    %1236 = vmatpush1.msra.mxu0 0.0
    %1237 = vmatprep.subr.mxu0 0.0
    %1238 = vmatpush1.msra.mxu0 %v127
    %1239 = vmatprep.subr.mxu0 0.0
    %1240 = vmatpush1.msra.mxu0 %v126
    %1241 = vmatprep.subr.mxu0 0.0
    %1242 = vmatpush1.msra.mxu0 %v125
    %1243 = vmatprep.subr.mxu0 0.0
    %1244 = vmatpush1.msra.mxu0 %v124
    %1245 = vmatprep.subr.mxu0 0.0
    %1246 = vmatpush2.msra.mxu0 0.0
    %1247 = vmatprep.subr.mxu0 0.0
    %1248 = vmatpush2.msra.mxu0 0.0
    %1249 = vmatprep.subr.mxu0 0.0
    %1250 = vmatpush2.msra.mxu0 0.0
    %1251 = vmatprep.subr.mxu0 0.0
    %1252 = vmatpush2.msra.mxu0 0.0
    %1253 = vmatprep.subr.mxu0 0.0
    %1254 = vmatpush2.msra.mxu0 0.0
    %1255 = vmatprep.subr.mxu0 0.0
    %1256 = vmatpush2.msra.mxu0 0.0
    %1257 = vmatprep.subr.mxu0 0.0
    %1258 = vmatpush2.msra.mxu0 0.0
    %1259 = vmatprep.subr.mxu0 0.0
    %1260 = vmatpush2.msra.mxu0 0.0
    %1261 = vmatprep.subr.mxu0 0.0
    %1262 = vmatpush2.msra.mxu0 0.0
    %1263 = vmatprep.subr.mxu0 0.0
    %1264 = vmatpush2.msra.mxu0 0.0
    %1265 = vmatprep.subr.mxu0 0.0
    %1266 = vmatpush2.msra.mxu0 0.0
    %1267 = vmatprep.subr.mxu0 0.0
    %1268 = vmatpush2.msra.mxu0 0.0
    %1269 = vmatprep.subr.mxu0 0.0
    %1270 = vmatpush2.msra.mxu0 0.0
    %1271 = vmatprep.subr.mxu0 0.0
    %1272 = vmatpush2.msra.mxu0 0.0
    %1273 = vmatprep.subr.mxu0 0.0
    %1274 = vmatpush2.msra.mxu0 0.0
    %1275 = vmatprep.subr.mxu0 0.0
    %1276 = vmatpush2.msra.mxu0 0.0
    %1277 = vmatprep.mubr.f32.mxu0 0.0
    %1278 = vmatmul.mubr.f32.gmra.mxu0 %v1211
    %v1279 = vpop.f32.mrf.mxu0
    %v1280 = vadd.f32 0.0, %v1279
    %v1281 = vpop.f32.mrf.mxu0
    %1282 = vdwg.mxu0
    %v1283 = vadd.f32 %v1210, %v1280
    %v1284 = vtanh.pop %v1283
    %v1285 = vmul.f32 %v1284, 0.5
    %v1286 = vadd.f32 %v1285, 0.5
    %v1287 = vmul.f32 %v1286, %v1198
    %1289 = vrot.lane.b32.xlu0 %v1284, 64
    %v1290 = vpop.permute.xlu0 %1289
    %v1292 = vmul.f32 %v1286, %v1290
    %1294 = vrot.lane.b32.xlu0 %v1292, 32
    %v1295 = vpop.permute.xlu0 %1294
    %v1297 = vadd.f32 %v1287, %v1295
    %v1298 = vtanh.pop %v1297
    %1300 = vrot.lane.b32.xlu0 %v1298, 64
    %v1301 = vpop.permute.xlu0 %1300
    %v1303 = vmul.f32 %v1286, %v1301
    %v1304 = vld [vmem:[#allocation2 + $0xc] sm:$0x1]
    %1306 = vrot.lane.b32.xlu0 %v1303, 32
    %v1307 = vpop.permute.xlu0 %1306
    %v1308 = vsel %vm129, %v1307, 0
    %1310 = vmatprep.subr.mxu0 0.0
    %1311 = vmatpush1.msra.mxu0 0.0
    %1312 = vmatprep.subr.mxu0 0.0
    %1313 = vmatpush1.msra.mxu0 0.0
    %1314 = vmatprep.subr.mxu0 0.0
    %1315 = vmatpush1.msra.mxu0 0.0
    %1316 = vmatprep.subr.mxu0 0.0
    %1317 = vmatpush1.msra.mxu0 0.0
    %1318 = vmatprep.subr.mxu0 0.0
    %1319 = vmatpush1.msra.mxu0 0.0
    %1320 = vmatprep.subr.mxu0 0.0
    %1321 = vmatpush1.msra.mxu0 0.0
    %1322 = vmatprep.subr.mxu0 0.0
    %1323 = vmatpush1.msra.mxu0 0.0
    %1324 = vmatprep.subr.mxu0 0.0
    %1325 = vmatpush1.msra.mxu0 0.0
    %1326 = vmatprep.subr.mxu0 0.0
    %1327 = vmatpush1.msra.mxu0 0.0
    %1328 = vmatprep.subr.mxu0 0.0
    %1329 = vmatpush1.msra.mxu0 0.0
    %1330 = vmatprep.subr.mxu0 0.0
    %1331 = vmatpush1.msra.mxu0 0.0
    %1332 = vmatprep.subr.mxu0 0.0
    %1333 = vmatpush1.msra.mxu0 0.0
    %1334 = vmatprep.subr.mxu0 0.0
    %1335 = vmatpush1.msra.mxu0 %v127
    %1336 = vmatprep.subr.mxu0 0.0
    %1337 = vmatpush1.msra.mxu0 %v126
    %1338 = vmatprep.subr.mxu0 0.0
    %1339 = vmatpush1.msra.mxu0 %v125
    %1340 = vmatprep.subr.mxu0 0.0
    %1341 = vmatpush1.msra.mxu0 %v124
    %1342 = vmatprep.subr.mxu0 0.0
    %1343 = vmatpush2.msra.mxu0 0.0
    %1344 = vmatprep.subr.mxu0 0.0
    %1345 = vmatpush2.msra.mxu0 0.0
    %1346 = vmatprep.subr.mxu0 0.0
    %1347 = vmatpush2.msra.mxu0 0.0
    %1348 = vmatprep.subr.mxu0 0.0
    %1349 = vmatpush2.msra.mxu0 0.0
    %1350 = vmatprep.subr.mxu0 0.0
    %1351 = vmatpush2.msra.mxu0 0.0
    %1352 = vmatprep.subr.mxu0 0.0
    %1353 = vmatpush2.msra.mxu0 0.0
    %1354 = vmatprep.subr.mxu0 0.0
    %1355 = vmatpush2.msra.mxu0 0.0
    %1356 = vmatprep.subr.mxu0 0.0
    %1357 = vmatpush2.msra.mxu0 0.0
    %1358 = vmatprep.subr.mxu0 0.0
    %1359 = vmatpush2.msra.mxu0 0.0
    %1360 = vmatprep.subr.mxu0 0.0
    %1361 = vmatpush2.msra.mxu0 0.0
    %1362 = vmatprep.subr.mxu0 0.0
    %1363 = vmatpush2.msra.mxu0 0.0
    %1364 = vmatprep.subr.mxu0 0.0
    %1365 = vmatpush2.msra.mxu0 0.0
    %1366 = vmatprep.subr.mxu0 0.0
    %1367 = vmatpush2.msra.mxu0 0.0
    %1368 = vmatprep.subr.mxu0 0.0
    %1369 = vmatpush2.msra.mxu0 0.0
    %1370 = vmatprep.subr.mxu0 0.0
    %1371 = vmatpush2.msra.mxu0 0.0
    %1372 = vmatprep.subr.mxu0 0.0
    %1373 = vmatpush2.msra.mxu0 0.0
    %1374 = vmatprep.mubr.f32.mxu0 0.0
    %1375 = vmatmul.mubr.f32.gmra.mxu0 %v1308
    %v1376 = vpop.f32.mrf.mxu0
    %v1377 = vadd.f32 0.0, %v1376
    %v1378 = vpop.f32.mrf.mxu0
    %1379 = vdwg.mxu0
    %v1380 = vadd.f32 %v1304, %v1377
    %v1381 = vtanh.pop %v1380
    %v1382 = vmul.f32 %v1381, 0.5
    %v1383 = vadd.f32 %v1382, 0.5
    %v1384 = vmul.f32 %v1383, %v1297
    %1386 = vrot.lane.b32.xlu0 %v1381, 64
    %v1387 = vpop.permute.xlu0 %1386
    %v1389 = vmul.f32 %v1383, %v1387
    %1391 = vrot.lane.b32.xlu0 %v1389, 32
    %v1392 = vpop.permute.xlu0 %1391
    %v1394 = vadd.f32 %v1384, %v1392
    %v1395 = vtanh.pop %v1394
    %1397 = vrot.lane.b32.xlu0 %v1395, 64
    %v1398 = vpop.permute.xlu0 %1397
    %v1400 = vmul.f32 %v1383, %v1398
    %1402 = vrot.lane.b32.xlu0 %v1400, 32
    %v1403 = vpop.permute.xlu0 %1402
    %1405 = vst.msk [vmem:[#allocation3 + $0x6] sm:$0x1] %vm228, %v1403
    %v1406 = vld [vmem:[#allocation2 + $0xd] sm:$0x1]
    %v1407 = vsel %vm129, %v1403, 0
    %1409 = vmatprep.subr.mxu0 0.0
    %1410 = vmatpush1.msra.mxu0 0.0
    %1411 = vmatprep.subr.mxu0 0.0
    %1412 = vmatpush1.msra.mxu0 0.0
    %1413 = vmatprep.subr.mxu0 0.0
    %1414 = vmatpush1.msra.mxu0 0.0
    %1415 = vmatprep.subr.mxu0 0.0
    %1416 = vmatpush1.msra.mxu0 0.0
    %1417 = vmatprep.subr.mxu0 0.0
    %1418 = vmatpush1.msra.mxu0 0.0
    %1419 = vmatprep.subr.mxu0 0.0
    %1420 = vmatpush1.msra.mxu0 0.0
    %1421 = vmatprep.subr.mxu0 0.0
    %1422 = vmatpush1.msra.mxu0 0.0
    %1423 = vmatprep.subr.mxu0 0.0
    %1424 = vmatpush1.msra.mxu0 0.0
    %1425 = vmatprep.subr.mxu0 0.0
    %1426 = vmatpush1.msra.mxu0 0.0
    %1427 = vmatprep.subr.mxu0 0.0
    %1428 = vmatpush1.msra.mxu0 0.0
    %1429 = vmatprep.subr.mxu0 0.0
    %1430 = vmatpush1.msra.mxu0 0.0
    %1431 = vmatprep.subr.mxu0 0.0
    %1432 = vmatpush1.msra.mxu0 0.0
    %1433 = vmatprep.subr.mxu0 0.0
    %1434 = vmatpush1.msra.mxu0 %v127
    %1435 = vmatprep.subr.mxu0 0.0
    %1436 = vmatpush1.msra.mxu0 %v126
    %1437 = vmatprep.subr.mxu0 0.0
    %1438 = vmatpush1.msra.mxu0 %v125
    %1439 = vmatprep.subr.mxu0 0.0
    %1440 = vmatpush1.msra.mxu0 %v124
    %1441 = vmatprep.subr.mxu0 0.0
    %1442 = vmatpush2.msra.mxu0 0.0
    %1443 = vmatprep.subr.mxu0 0.0
    %1444 = vmatpush2.msra.mxu0 0.0
    %1445 = vmatprep.subr.mxu0 0.0
    %1446 = vmatpush2.msra.mxu0 0.0
    %1447 = vmatprep.subr.mxu0 0.0
    %1448 = vmatpush2.msra.mxu0 0.0
    %1449 = vmatprep.subr.mxu0 0.0
    %1450 = vmatpush2.msra.mxu0 0.0
    %1451 = vmatprep.subr.mxu0 0.0
    %1452 = vmatpush2.msra.mxu0 0.0
    %1453 = vmatprep.subr.mxu0 0.0
    %1454 = vmatpush2.msra.mxu0 0.0
    %1455 = vmatprep.subr.mxu0 0.0
    %1456 = vmatpush2.msra.mxu0 0.0
    %1457 = vmatprep.subr.mxu0 0.0
    %1458 = vmatpush2.msra.mxu0 0.0
    %1459 = vmatprep.subr.mxu0 0.0
    %1460 = vmatpush2.msra.mxu0 0.0
    %1461 = vmatprep.subr.mxu0 0.0
    %1462 = vmatpush2.msra.mxu0 0.0
    %1463 = vmatprep.subr.mxu0 0.0
    %1464 = vmatpush2.msra.mxu0 0.0
    %1465 = vmatprep.subr.mxu0 0.0
    %1466 = vmatpush2.msra.mxu0 0.0
    %1467 = vmatprep.subr.mxu0 0.0
    %1468 = vmatpush2.msra.mxu0 0.0
    %1469 = vmatprep.subr.mxu0 0.0
    %1470 = vmatpush2.msra.mxu0 0.0
    %1471 = vmatprep.subr.mxu0 0.0
    %1472 = vmatpush2.msra.mxu0 0.0
    %1473 = vmatprep.mubr.f32.mxu0 0.0
    %1474 = vmatmul.mubr.f32.gmra.mxu0 %v1407
    %v1475 = vpop.f32.mrf.mxu0
    %v1476 = vadd.f32 0.0, %v1475
    %v1477 = vpop.f32.mrf.mxu0
    %1478 = vdwg.mxu0
    %v1479 = vadd.f32 %v1406, %v1476
    %v1480 = vtanh.pop %v1479
    %v1481 = vmul.f32 %v1480, 0.5
    %v1482 = vadd.f32 %v1481, 0.5
    %v1483 = vmul.f32 %v1482, %v1394
    %1485 = vrot.lane.b32.xlu0 %v1480, 64
    %v1486 = vpop.permute.xlu0 %1485
    %v1488 = vmul.f32 %v1482, %v1486
    %1490 = vrot.lane.b32.xlu0 %v1488, 32
    %v1491 = vpop.permute.xlu0 %1490
    %v1493 = vadd.f32 %v1483, %v1491
    %v1494 = vtanh.pop %v1493
    %1496 = vrot.lane.b32.xlu0 %v1494, 64
    %v1497 = vpop.permute.xlu0 %1496
    %v1499 = vmul.f32 %v1482, %v1497
    %v1500 = vld [vmem:[#allocation2 + $0xe] sm:$0x1]
    %1502 = vrot.lane.b32.xlu0 %v1499, 32
    %v1503 = vpop.permute.xlu0 %1502
    %v1504 = vsel %vm129, %v1503, 0
    %1506 = vmatprep.subr.mxu0 0.0
    %1507 = vmatpush1.msra.mxu0 0.0
    %1508 = vmatprep.subr.mxu0 0.0
    %1509 = vmatpush1.msra.mxu0 0.0
    %1510 = vmatprep.subr.mxu0 0.0
    %1511 = vmatpush1.msra.mxu0 0.0
    %1512 = vmatprep.subr.mxu0 0.0
    %1513 = vmatpush1.msra.mxu0 0.0
    %1514 = vmatprep.subr.mxu0 0.0
    %1515 = vmatpush1.msra.mxu0 0.0
    %1516 = vmatprep.subr.mxu0 0.0
    %1517 = vmatpush1.msra.mxu0 0.0
    %1518 = vmatprep.subr.mxu0 0.0
    %1519 = vmatpush1.msra.mxu0 0.0
    %1520 = vmatprep.subr.mxu0 0.0
    %1521 = vmatpush1.msra.mxu0 0.0
    %1522 = vmatprep.subr.mxu0 0.0
    %1523 = vmatpush1.msra.mxu0 0.0
    %1524 = vmatprep.subr.mxu0 0.0
    %1525 = vmatpush1.msra.mxu0 0.0
    %1526 = vmatprep.subr.mxu0 0.0
    %1527 = vmatpush1.msra.mxu0 0.0
    %1528 = vmatprep.subr.mxu0 0.0
    %1529 = vmatpush1.msra.mxu0 0.0
    %1530 = vmatprep.subr.mxu0 0.0
    %1531 = vmatpush1.msra.mxu0 %v127
    %1532 = vmatprep.subr.mxu0 0.0
    %1533 = vmatpush1.msra.mxu0 %v126
    %1534 = vmatprep.subr.mxu0 0.0
    %1535 = vmatpush1.msra.mxu0 %v125
    %1536 = vmatprep.subr.mxu0 0.0
    %1537 = vmatpush1.msra.mxu0 %v124
    %1538 = vmatprep.subr.mxu0 0.0
    %1539 = vmatpush2.msra.mxu0 0.0
    %1540 = vmatprep.subr.mxu0 0.0
    %1541 = vmatpush2.msra.mxu0 0.0
    %1542 = vmatprep.subr.mxu0 0.0
    %1543 = vmatpush2.msra.mxu0 0.0
    %1544 = vmatprep.subr.mxu0 0.0
    %1545 = vmatpush2.msra.mxu0 0.0
    %1546 = vmatprep.subr.mxu0 0.0
    %1547 = vmatpush2.msra.mxu0 0.0
    %1548 = vmatprep.subr.mxu0 0.0
    %1549 = vmatpush2.msra.mxu0 0.0
    %1550 = vmatprep.subr.mxu0 0.0
    %1551 = vmatpush2.msra.mxu0 0.0
    %1552 = vmatprep.subr.mxu0 0.0
    %1553 = vmatpush2.msra.mxu0 0.0
    %1554 = vmatprep.subr.mxu0 0.0
    %1555 = vmatpush2.msra.mxu0 0.0
    %1556 = vmatprep.subr.mxu0 0.0
    %1557 = vmatpush2.msra.mxu0 0.0
    %1558 = vmatprep.subr.mxu0 0.0
    %1559 = vmatpush2.msra.mxu0 0.0
    %1560 = vmatprep.subr.mxu0 0.0
    %1561 = vmatpush2.msra.mxu0 0.0
    %1562 = vmatprep.subr.mxu0 0.0
    %1563 = vmatpush2.msra.mxu0 0.0
    %1564 = vmatprep.subr.mxu0 0.0
    %1565 = vmatpush2.msra.mxu0 0.0
    %1566 = vmatprep.subr.mxu0 0.0
    %1567 = vmatpush2.msra.mxu0 0.0
    %1568 = vmatprep.subr.mxu0 0.0
    %1569 = vmatpush2.msra.mxu0 0.0
    %1570 = vmatprep.mubr.f32.mxu0 0.0
    %1571 = vmatmul.mubr.f32.gmra.mxu0 %v1504
    %v1572 = vpop.f32.mrf.mxu0
    %v1573 = vadd.f32 0.0, %v1572
    %v1574 = vpop.f32.mrf.mxu0
    %1575 = vdwg.mxu0
    %v1576 = vadd.f32 %v1500, %v1573
    %v1577 = vtanh.pop %v1576
    %v1578 = vmul.f32 %v1577, 0.5
    %v1579 = vadd.f32 %v1578, 0.5
    %v1580 = vmul.f32 %v1579, %v1493
    %1582 = vrot.lane.b32.xlu0 %v1577, 64
    %v1583 = vpop.permute.xlu0 %1582
    %v1585 = vmul.f32 %v1579, %v1583
    %1587 = vrot.lane.b32.xlu0 %v1585, 32
    %v1588 = vpop.permute.xlu0 %1587
    %v1590 = vadd.f32 %v1580, %v1588
    %v1591 = vtanh.pop %v1590
    %1593 = vrot.lane.b32.xlu0 %v1591, 64
    %v1594 = vpop.permute.xlu0 %1593
    %v1596 = vmul.f32 %v1579, %v1594
    %1598 = vrot.lane.b32.xlu0 %v1596, 32
    %v1599 = vpop.permute.xlu0 %1598
    %1601 = vst.msk [vmem:[#allocation3 + $0x7] sm:$0x1] %vm228, %v1599
    %v1602 = vld [vmem:[#allocation2 + $0xf] sm:$0x1]
    %v1603 = vsel %vm129, %v1599, 0
    %1605 = vmatprep.subr.mxu0 0.0
    %1606 = vmatpush1.msra.mxu0 0.0
    %1607 = vmatprep.subr.mxu0 0.0
    %1608 = vmatpush1.msra.mxu0 0.0
    %1609 = vmatprep.subr.mxu0 0.0
    %1610 = vmatpush1.msra.mxu0 0.0
    %1611 = vmatprep.subr.mxu0 0.0
    %1612 = vmatpush1.msra.mxu0 0.0
    %1613 = vmatprep.subr.mxu0 0.0
    %1614 = vmatpush1.msra.mxu0 0.0
    %1615 = vmatprep.subr.mxu0 0.0
    %1616 = vmatpush1.msra.mxu0 0.0
    %1617 = vmatprep.subr.mxu0 0.0
    %1618 = vmatpush1.msra.mxu0 0.0
    %1619 = vmatprep.subr.mxu0 0.0
    %1620 = vmatpush1.msra.mxu0 0.0
    %1621 = vmatprep.subr.mxu0 0.0
    %1622 = vmatpush1.msra.mxu0 0.0
    %1623 = vmatprep.subr.mxu0 0.0
    %1624 = vmatpush1.msra.mxu0 0.0
    %1625 = vmatprep.subr.mxu0 0.0
    %1626 = vmatpush1.msra.mxu0 0.0
    %1627 = vmatprep.subr.mxu0 0.0
    %1628 = vmatpush1.msra.mxu0 0.0
    %1629 = vmatprep.subr.mxu0 0.0
    %1630 = vmatpush1.msra.mxu0 %v127
    %1631 = vmatprep.subr.mxu0 0.0
    %1632 = vmatpush1.msra.mxu0 %v126
    %1633 = vmatprep.subr.mxu0 0.0
    %1634 = vmatpush1.msra.mxu0 %v125
    %1635 = vmatprep.subr.mxu0 0.0
    %1636 = vmatpush1.msra.mxu0 %v124
    %1637 = vmatprep.subr.mxu0 0.0
    %1638 = vmatpush2.msra.mxu0 0.0
    %1639 = vmatprep.subr.mxu0 0.0
    %1640 = vmatpush2.msra.mxu0 0.0
    %1641 = vmatprep.subr.mxu0 0.0
    %1642 = vmatpush2.msra.mxu0 0.0
    %1643 = vmatprep.subr.mxu0 0.0
    %1644 = vmatpush2.msra.mxu0 0.0
    %1645 = vmatprep.subr.mxu0 0.0
    %1646 = vmatpush2.msra.mxu0 0.0
    %1647 = vmatprep.subr.mxu0 0.0
    %1648 = vmatpush2.msra.mxu0 0.0
    %1649 = vmatprep.subr.mxu0 0.0
    %1650 = vmatpush2.msra.mxu0 0.0
    %1651 = vmatprep.subr.mxu0 0.0
    %1652 = vmatpush2.msra.mxu0 0.0
    %1653 = vmatprep.subr.mxu0 0.0
    %1654 = vmatpush2.msra.mxu0 0.0
    %1655 = vmatprep.subr.mxu0 0.0
    %1656 = vmatpush2.msra.mxu0 0.0
    %1657 = vmatprep.subr.mxu0 0.0
    %1658 = vmatpush2.msra.mxu0 0.0
    %1659 = vmatprep.subr.mxu0 0.0
    %1660 = vmatpush2.msra.mxu0 0.0
    %1661 = vmatprep.subr.mxu0 0.0
    %1662 = vmatpush2.msra.mxu0 0.0
    %1663 = vmatprep.subr.mxu0 0.0
    %1664 = vmatpush2.msra.mxu0 0.0
    %1665 = vmatprep.subr.mxu0 0.0
    %1666 = vmatpush2.msra.mxu0 0.0
    %1667 = vmatprep.subr.mxu0 0.0
    %1668 = vmatpush2.msra.mxu0 0.0
    %1669 = vmatprep.mubr.f32.mxu0 0.0
    %1670 = vmatmul.mubr.f32.gmra.mxu0 %v1603
    %v1671 = vpop.f32.mrf.mxu0
    %v1672 = vadd.f32 0.0, %v1671
    %v1673 = vpop.f32.mrf.mxu0
    %1674 = vdwg.mxu0
    %v1675 = vadd.f32 %v1602, %v1672
    %v1676 = vtanh.pop %v1675
    %v1677 = vmul.f32 %v1676, 0.5
    %v1678 = vadd.f32 %v1677, 0.5
    %v1679 = vmul.f32 %v1678, %v1590
    %1681 = vrot.lane.b32.xlu0 %v1676, 64
    %v1682 = vpop.permute.xlu0 %1681
    %v1684 = vmul.f32 %v1678, %v1682
    %1686 = vrot.lane.b32.xlu0 %v1684, 32
    %v1687 = vpop.permute.xlu0 %1686
    %v1689 = vadd.f32 %v1679, %v1687
    %v1690 = vtanh.pop %v1689
    %1692 = vrot.lane.b32.xlu0 %v1690, 64
    %v1693 = vpop.permute.xlu0 %1692
    %v1695 = vmul.f32 %v1678, %v1693
    %1697 = vrot.lane.b32.xlu0 %v1695, 32
    %v1698 = vpop.permute.xlu0 %1697
    %1700 = vst.msk [vmem:[%s4] sm:$0x1] %vm228, %v1698
    %1702 = vrot.lane.b32.xlu0 %v1689, 96
    %v1703 = vpop.permute.xlu0 %1702
    %1705 = vst.msk [vmem:[%s4 + $0x1] sm:$0x1] %vm228, %v1703
    %v1706 = vld [vmem:[#allocation3] sm:$0xff]
    %v1707 = vld [vmem:[%s2] sm:$0xff]
    %v1708 = vld [vmem:[%s2 + $0x8] sm:$0xff]
    %v1709 = vld [vmem:[%s2 + $0x10] sm:$0xff]
    %v1710 = vld [vmem:[%s2 + $0x18] sm:$0xff]
    %v1711 = vld [vmem:[%s2 + $0x20] sm:$0x1]
    %v1712 = vlaneseq
    %v1713 = vshrl.u32 %v1712, 7
    %v1714 = vsub.s32 0, %v1713
    %v1715 = vrot.slane %v1711, %v1714
    %v1717 = vsel %vm129, %v1706, 0
    %1719 = vmatprep.subr.mxu0 0.0
    %1720 = vmatpush1.msra.mxu0 0.0
    %1721 = vmatprep.subr.mxu0 0.0
    %1722 = vmatpush1.msra.mxu0 0.0
    %1723 = vmatprep.subr.mxu0 0.0
    %1724 = vmatpush1.msra.mxu0 0.0
    %1725 = vmatprep.subr.mxu0 0.0
    %1726 = vmatpush1.msra.mxu0 0.0
    %1727 = vmatprep.subr.mxu0 0.0
    %1728 = vmatpush1.msra.mxu0 0.0
    %1729 = vmatprep.subr.mxu0 0.0
    %1730 = vmatpush1.msra.mxu0 0.0
    %1731 = vmatprep.subr.mxu0 0.0
    %1732 = vmatpush1.msra.mxu0 0.0
    %1733 = vmatprep.subr.mxu0 0.0
    %1734 = vmatpush1.msra.mxu0 0.0
    %1735 = vmatprep.subr.mxu0 0.0
    %1736 = vmatpush1.msra.mxu0 0.0
    %1737 = vmatprep.subr.mxu0 0.0
    %1738 = vmatpush1.msra.mxu0 0.0
    %1739 = vmatprep.subr.mxu0 0.0
    %1740 = vmatpush1.msra.mxu0 0.0
    %1741 = vmatprep.subr.mxu0 0.0
    %1742 = vmatpush1.msra.mxu0 0.0
    %1743 = vmatprep.subr.mxu0 0.0
    %1744 = vmatpush1.msra.mxu0 %v1710
    %1745 = vmatprep.subr.mxu0 0.0
    %1746 = vmatpush1.msra.mxu0 %v1709
    %1747 = vmatprep.subr.mxu0 0.0
    %1748 = vmatpush1.msra.mxu0 %v1708
    %1749 = vmatprep.subr.mxu0 0.0
    %1750 = vmatpush1.msra.mxu0 %v1707
    %1751 = vmatprep.subr.mxu0 0.0
    %1752 = vmatpush2.msra.mxu0 0.0
    %1753 = vmatprep.subr.mxu0 0.0
    %1754 = vmatpush2.msra.mxu0 0.0
    %1755 = vmatprep.subr.mxu0 0.0
    %1756 = vmatpush2.msra.mxu0 0.0
    %1757 = vmatprep.subr.mxu0 0.0
    %1758 = vmatpush2.msra.mxu0 0.0
    %1759 = vmatprep.subr.mxu0 0.0
    %1760 = vmatpush2.msra.mxu0 0.0
    %1761 = vmatprep.subr.mxu0 0.0
    %1762 = vmatpush2.msra.mxu0 0.0
    %1763 = vmatprep.subr.mxu0 0.0
    %1764 = vmatpush2.msra.mxu0 0.0
    %1765 = vmatprep.subr.mxu0 0.0
    %1766 = vmatpush2.msra.mxu0 0.0
    %1767 = vmatprep.subr.mxu0 0.0
    %1768 = vmatpush2.msra.mxu0 0.0
    %1769 = vmatprep.subr.mxu0 0.0
    %1770 = vmatpush2.msra.mxu0 0.0
    %1771 = vmatprep.subr.mxu0 0.0
    %1772 = vmatpush2.msra.mxu0 0.0
    %1773 = vmatprep.subr.mxu0 0.0
    %1774 = vmatpush2.msra.mxu0 0.0
    %1775 = vmatprep.subr.mxu0 0.0
    %1776 = vmatpush2.msra.mxu0 0.0
    %1777 = vmatprep.subr.mxu0 0.0
    %1778 = vmatpush2.msra.mxu0 0.0
    %1779 = vmatprep.subr.mxu0 0.0
    %1780 = vmatpush2.msra.mxu0 0.0
    %1781 = vmatprep.subr.mxu0 0.0
    %1782 = vmatpush2.msra.mxu0 0.0
    %1783 = vmatprep.mubr.f32.mxu0 0.0
    %1784 = vmatmul.mubr.f32.gmra.mxu0 %v1717
    %v1785 = vpop.f32.mrf.mxu0
    %v1786 = vadd.f32 %v1715, %v1785
    %v1787 = vpop.f32.mrf.mxu0
    %1788 = vdwg.mxu0
    %v1789 = vtanh.pop %v1786
    %v1790 = vld [vmem:[#allocation4 + $0x38] sm:$0xff]
    %v1791 = vld [vmem:[#allocation4 + $0x40] sm:$0xff]
    %v1792 = vld [vmem:[#allocation4 + $0x48] sm:$0xff]
    %v1793 = vld [vmem:[#allocation4 + $0x50] sm:$0xff]
    %v1794 = vld [vmem:[#allocation4 + $0x78] sm:$0x1]
    %v1795 = vlaneseq
    %v1796 = vshrl.u32 %v1795, 7
    %v1797 = vsub.s32 0, %v1796
    %v1798 = vrot.slane %v1794, %v1797
    %v1800 = vsel %vm129, %v1789, 0
    %1802 = vmatprep.subr.mxu0 0.0
    %1803 = vmatpush1.msra.mxu0 0.0
    %1804 = vmatprep.subr.mxu0 0.0
    %1805 = vmatpush1.msra.mxu0 0.0
    %1806 = vmatprep.subr.mxu0 0.0
    %1807 = vmatpush1.msra.mxu0 0.0
    %1808 = vmatprep.subr.mxu0 0.0
    %1809 = vmatpush1.msra.mxu0 0.0
    %1810 = vmatprep.subr.mxu0 0.0
    %1811 = vmatpush1.msra.mxu0 0.0
    %1812 = vmatprep.subr.mxu0 0.0
    %1813 = vmatpush1.msra.mxu0 0.0
    %1814 = vmatprep.subr.mxu0 0.0
    %1815 = vmatpush1.msra.mxu0 0.0
    %1816 = vmatprep.subr.mxu0 0.0
    %1817 = vmatpush1.msra.mxu0 0.0
    %1818 = vmatprep.subr.mxu0 0.0
    %1819 = vmatpush1.msra.mxu0 0.0
    %1820 = vmatprep.subr.mxu0 0.0
    %1821 = vmatpush1.msra.mxu0 0.0
    %1822 = vmatprep.subr.mxu0 0.0
    %1823 = vmatpush1.msra.mxu0 0.0
    %1824 = vmatprep.subr.mxu0 0.0
    %1825 = vmatpush1.msra.mxu0 0.0
    %1826 = vmatprep.subr.mxu0 0.0
    %1827 = vmatpush1.msra.mxu0 %v1793
    %1828 = vmatprep.subr.mxu0 0.0
    %1829 = vmatpush1.msra.mxu0 %v1792
    %1830 = vmatprep.subr.mxu0 0.0
    %1831 = vmatpush1.msra.mxu0 %v1791
    %1832 = vmatprep.subr.mxu0 0.0
    %1833 = vmatpush1.msra.mxu0 %v1790
    %1834 = vmatprep.subr.mxu0 0.0
    %1835 = vmatpush2.msra.mxu0 0.0
    %1836 = vmatprep.subr.mxu0 0.0
    %1837 = vmatpush2.msra.mxu0 0.0
    %1838 = vmatprep.subr.mxu0 0.0
    %1839 = vmatpush2.msra.mxu0 0.0
    %1840 = vmatprep.subr.mxu0 0.0
    %1841 = vmatpush2.msra.mxu0 0.0
    %1842 = vmatprep.subr.mxu0 0.0
    %1843 = vmatpush2.msra.mxu0 0.0
    %1844 = vmatprep.subr.mxu0 0.0
    %1845 = vmatpush2.msra.mxu0 0.0
    %1846 = vmatprep.subr.mxu0 0.0
    %1847 = vmatpush2.msra.mxu0 0.0
    %1848 = vmatprep.subr.mxu0 0.0
    %1849 = vmatpush2.msra.mxu0 0.0
    %1850 = vmatprep.subr.mxu0 0.0
    %1851 = vmatpush2.msra.mxu0 0.0
    %1852 = vmatprep.subr.mxu0 0.0
    %1853 = vmatpush2.msra.mxu0 0.0
    %1854 = vmatprep.subr.mxu0 0.0
    %1855 = vmatpush2.msra.mxu0 0.0
    %1856 = vmatprep.subr.mxu0 0.0
    %1857 = vmatpush2.msra.mxu0 0.0
    %1858 = vmatprep.subr.mxu0 0.0
    %1859 = vmatpush2.msra.mxu0 0.0
    %1860 = vmatprep.subr.mxu0 0.0
    %1861 = vmatpush2.msra.mxu0 0.0
    %1862 = vmatprep.subr.mxu0 0.0
    %1863 = vmatpush2.msra.mxu0 0.0
    %1864 = vmatprep.subr.mxu0 0.0
    %1865 = vmatpush2.msra.mxu0 0.0
    %1866 = vmatprep.mubr.f32.mxu0 0.0
    %1867 = vmatmul.mubr.f32.gmra.mxu0 %v1800
    %v1868 = vpop.f32.mrf.mxu0
    %v1869 = vadd.f32 %v1798, %v1868
    %v1870 = vpop.f32.mrf.mxu0
    %1871 = vdwg.mxu0
    %1872 = vst [vmem:[#allocation2] sm:$0xff] %v1869
    %v1873 = vld [vmem:[#allocation4 + $0x58] sm:$0xff]
    %v1874 = vld [vmem:[#allocation4 + $0x60] sm:$0xff]
    %v1875 = vld [vmem:[#allocation4 + $0x68] sm:$0xff]
    %v1876 = vld [vmem:[#allocation4 + $0x70] sm:$0xff]
    %v1877 = vld [vmem:[#allocation2] sm:$0x1]
    %1878 = vmatprep.subr.mxu0 0.0
    %1879 = vmatpush1.msra.mxu0 0.0
    %1880 = vmatprep.subr.mxu0 0.0
    %1881 = vmatpush1.msra.mxu0 0.0
    %1882 = vmatprep.subr.mxu0 0.0
    %1883 = vmatpush1.msra.mxu0 0.0
    %1884 = vmatprep.subr.mxu0 0.0
    %1885 = vmatpush1.msra.mxu0 0.0
    %1886 = vmatprep.subr.mxu0 0.0
    %1887 = vmatpush1.msra.mxu0 0.0
    %1888 = vmatprep.subr.mxu0 0.0
    %1889 = vmatpush1.msra.mxu0 0.0
    %1890 = vmatprep.subr.mxu0 0.0
    %1891 = vmatpush1.msra.mxu0 0.0
    %1892 = vmatprep.subr.mxu0 0.0
    %1893 = vmatpush1.msra.mxu0 0.0
    %1894 = vmatprep.subr.mxu0 0.0
    %1895 = vmatpush1.msra.mxu0 0.0
    %1896 = vmatprep.subr.mxu0 0.0
    %1897 = vmatpush1.msra.mxu0 0.0
    %1898 = vmatprep.subr.mxu0 0.0
    %1899 = vmatpush1.msra.mxu0 0.0
    %1900 = vmatprep.subr.mxu0 0.0
    %1901 = vmatpush1.msra.mxu0 0.0
    %1902 = vmatprep.subr.mxu0 0.0
    %1903 = vmatpush1.msra.mxu0 %v1876
    %1904 = vmatprep.subr.mxu0 0.0
    %1905 = vmatpush1.msra.mxu0 %v1875
    %1906 = vmatprep.subr.mxu0 0.0
    %1907 = vmatpush1.msra.mxu0 %v1874
    %1908 = vmatprep.subr.mxu0 0.0
    %1909 = vmatpush1.msra.mxu0 %v1873
    %1910 = vmatprep.subr.mxu0 0.0
    %1911 = vmatpush2.msra.mxu0 0.0
    %1912 = vmatprep.subr.mxu0 0.0
    %1913 = vmatpush2.msra.mxu0 0.0
    %1914 = vmatprep.subr.mxu0 0.0
    %1915 = vmatpush2.msra.mxu0 0.0
    %1916 = vmatprep.subr.mxu0 0.0
    %1917 = vmatpush2.msra.mxu0 0.0
    %1918 = vmatprep.subr.mxu0 0.0
    %1919 = vmatpush2.msra.mxu0 0.0
    %1920 = vmatprep.subr.mxu0 0.0
    %1921 = vmatpush2.msra.mxu0 0.0
    %1922 = vmatprep.subr.mxu0 0.0
    %1923 = vmatpush2.msra.mxu0 0.0
    %1924 = vmatprep.subr.mxu0 0.0
    %1925 = vmatpush2.msra.mxu0 0.0
    %1926 = vmatprep.subr.mxu0 0.0
    %1927 = vmatpush2.msra.mxu0 0.0
    %1928 = vmatprep.subr.mxu0 0.0
    %1929 = vmatpush2.msra.mxu0 0.0
    %1930 = vmatprep.subr.mxu0 0.0
    %1931 = vmatpush2.msra.mxu0 0.0
    %1932 = vmatprep.subr.mxu0 0.0
    %1933 = vmatpush2.msra.mxu0 0.0
    %1934 = vmatprep.subr.mxu0 0.0
    %1935 = vmatpush2.msra.mxu0 0.0
    %1936 = vmatprep.subr.mxu0 0.0
    %1937 = vmatpush2.msra.mxu0 0.0
    %1938 = vmatprep.subr.mxu0 0.0
    %1939 = vmatpush2.msra.mxu0 0.0
    %1940 = vmatprep.subr.mxu0 0.0
    %1941 = vmatpush2.msra.mxu0 0.0
    %1942 = vmatprep.mubr.f32.mxu0 0.0
    %1943 = vmatmul.mubr.f32.gmra.mxu0 %v131
    %v1944 = vpop.f32.mrf.mxu0
    %v1945 = vadd.f32 0.0, %v1944
    %v1946 = vpop.f32.mrf.mxu0
    %1947 = vdwg.mxu0
    %v1948 = vadd.f32 %v1877, %v1945
    %v1949 = vtanh.pop %v1948
    %v1950 = vmul.f32 %v1949, 0.5
    %v1951 = vadd.f32 %v1950, 0.5
    %v1952 = vmul.f32 %v1951, 0.0
    %1954 = vrot.lane.b32.xlu0 %v1949, 64
    %v1955 = vpop.permute.xlu0 %1954
    %v1957 = vmul.f32 %v1951, %v1955
    %1959 = vrot.lane.b32.xlu0 %v1957, 32
    %v1960 = vpop.permute.xlu0 %1959
    %v1962 = vadd.f32 %v1952, %v1960
    %v1963 = vtanh.pop %v1962
    %1965 = vrot.lane.b32.xlu0 %v1963, 64
    %v1966 = vpop.permute.xlu0 %1965
    %v1968 = vmul.f32 %v1951, %v1966
    %1970 = vrot.lane.b32.xlu0 %v1968, 32
    %v1971 = vpop.permute.xlu0 %1970
    %1973 = vst.msk [vmem:[#allocation3] sm:$0x1] %vm228, %v1971
    %v1974 = vld [vmem:[#allocation2 + $0x1] sm:$0x1]
    %v1975 = vsel %vm129, %v1971, 0
    %1977 = vmatprep.subr.mxu0 0.0
    %1978 = vmatpush1.msra.mxu0 0.0
    %1979 = vmatprep.subr.mxu0 0.0
    %1980 = vmatpush1.msra.mxu0 0.0
    %1981 = vmatprep.subr.mxu0 0.0
    %1982 = vmatpush1.msra.mxu0 0.0
    %1983 = vmatprep.subr.mxu0 0.0
    %1984 = vmatpush1.msra.mxu0 0.0
    %1985 = vmatprep.subr.mxu0 0.0
    %1986 = vmatpush1.msra.mxu0 0.0
    %1987 = vmatprep.subr.mxu0 0.0
    %1988 = vmatpush1.msra.mxu0 0.0
    %1989 = vmatprep.subr.mxu0 0.0
    %1990 = vmatpush1.msra.mxu0 0.0
    %1991 = vmatprep.subr.mxu0 0.0
    %1992 = vmatpush1.msra.mxu0 0.0
    %1993 = vmatprep.subr.mxu0 0.0
    %1994 = vmatpush1.msra.mxu0 0.0
    %1995 = vmatprep.subr.mxu0 0.0
    %1996 = vmatpush1.msra.mxu0 0.0
    %1997 = vmatprep.subr.mxu0 0.0
    %1998 = vmatpush1.msra.mxu0 0.0
    %1999 = vmatprep.subr.mxu0 0.0
    %2000 = vmatpush1.msra.mxu0 0.0
    %2001 = vmatprep.subr.mxu0 0.0
    %2002 = vmatpush1.msra.mxu0 %v1876
    %2003 = vmatprep.subr.mxu0 0.0
    %2004 = vmatpush1.msra.mxu0 %v1875
    %2005 = vmatprep.subr.mxu0 0.0
    %2006 = vmatpush1.msra.mxu0 %v1874
    %2007 = vmatprep.subr.mxu0 0.0
    %2008 = vmatpush1.msra.mxu0 %v1873
    %2009 = vmatprep.subr.mxu0 0.0
    %2010 = vmatpush2.msra.mxu0 0.0
    %2011 = vmatprep.subr.mxu0 0.0
    %2012 = vmatpush2.msra.mxu0 0.0
    %2013 = vmatprep.subr.mxu0 0.0
    %2014 = vmatpush2.msra.mxu0 0.0
    %2015 = vmatprep.subr.mxu0 0.0
    %2016 = vmatpush2.msra.mxu0 0.0
    %2017 = vmatprep.subr.mxu0 0.0
    %2018 = vmatpush2.msra.mxu0 0.0
    %2019 = vmatprep.subr.mxu0 0.0
    %2020 = vmatpush2.msra.mxu0 0.0
    %2021 = vmatprep.subr.mxu0 0.0
    %2022 = vmatpush2.msra.mxu0 0.0
    %2023 = vmatprep.subr.mxu0 0.0
    %2024 = vmatpush2.msra.mxu0 0.0
    %2025 = vmatprep.subr.mxu0 0.0
    %2026 = vmatpush2.msra.mxu0 0.0
    %2027 = vmatprep.subr.mxu0 0.0
    %2028 = vmatpush2.msra.mxu0 0.0
    %2029 = vmatprep.subr.mxu0 0.0
    %2030 = vmatpush2.msra.mxu0 0.0
    %2031 = vmatprep.subr.mxu0 0.0
    %2032 = vmatpush2.msra.mxu0 0.0
    %2033 = vmatprep.subr.mxu0 0.0
    %2034 = vmatpush2.msra.mxu0 0.0
    %2035 = vmatprep.subr.mxu0 0.0
    %2036 = vmatpush2.msra.mxu0 0.0
    %2037 = vmatprep.subr.mxu0 0.0
    %2038 = vmatpush2.msra.mxu0 0.0
    %2039 = vmatprep.subr.mxu0 0.0
    %2040 = vmatpush2.msra.mxu0 0.0
    %2041 = vmatprep.mubr.f32.mxu0 0.0
    %2042 = vmatmul.mubr.f32.gmra.mxu0 %v1975
    %v2043 = vpop.f32.mrf.mxu0
    %v2044 = vadd.f32 0.0, %v2043
    %v2045 = vpop.f32.mrf.mxu0
    %2046 = vdwg.mxu0
    %v2047 = vadd.f32 %v1974, %v2044
    %v2048 = vtanh.pop %v2047
    %v2049 = vmul.f32 %v2048, 0.5
    %v2050 = vadd.f32 %v2049, 0.5
    %v2051 = vmul.f32 %v2050, %v1962
    %2053 = vrot.lane.b32.xlu0 %v2048, 64
    %v2054 = vpop.permute.xlu0 %2053
    %v2056 = vmul.f32 %v2050, %v2054
    %2058 = vrot.lane.b32.xlu0 %v2056, 32
    %v2059 = vpop.permute.xlu0 %2058
    %v2061 = vadd.f32 %v2051, %v2059
    %v2062 = vtanh.pop %v2061
    %2064 = vrot.lane.b32.xlu0 %v2062, 64
    %v2065 = vpop.permute.xlu0 %2064
    %v2067 = vmul.f32 %v2050, %v2065
    %2069 = vrot.lane.b32.xlu0 %v2067, 32
    %v2070 = vpop.permute.xlu0 %2069
    %2072 = vst.msk [vmem:[#allocation3 + $0x1] sm:$0x1] %vm228, %v2070
    %v2073 = vld [vmem:[#allocation2 + $0x2] sm:$0x1]
    %v2074 = vsel %vm129, %v2070, 0
    %2076 = vmatprep.subr.mxu0 0.0
    %2077 = vmatpush1.msra.mxu0 0.0
    %2078 = vmatprep.subr.mxu0 0.0
    %2079 = vmatpush1.msra.mxu0 0.0
    %2080 = vmatprep.subr.mxu0 0.0
    %2081 = vmatpush1.msra.mxu0 0.0
    %2082 = vmatprep.subr.mxu0 0.0
    %2083 = vmatpush1.msra.mxu0 0.0
    %2084 = vmatprep.subr.mxu0 0.0
    %2085 = vmatpush1.msra.mxu0 0.0
    %2086 = vmatprep.subr.mxu0 0.0
    %2087 = vmatpush1.msra.mxu0 0.0
    %2088 = vmatprep.subr.mxu0 0.0
    %2089 = vmatpush1.msra.mxu0 0.0
    %2090 = vmatprep.subr.mxu0 0.0
    %2091 = vmatpush1.msra.mxu0 0.0
    %2092 = vmatprep.subr.mxu0 0.0
    %2093 = vmatpush1.msra.mxu0 0.0
    %2094 = vmatprep.subr.mxu0 0.0
    %2095 = vmatpush1.msra.mxu0 0.0
    %2096 = vmatprep.subr.mxu0 0.0
    %2097 = vmatpush1.msra.mxu0 0.0
    %2098 = vmatprep.subr.mxu0 0.0
    %2099 = vmatpush1.msra.mxu0 0.0
    %2100 = vmatprep.subr.mxu0 0.0
    %2101 = vmatpush1.msra.mxu0 %v1876
    %2102 = vmatprep.subr.mxu0 0.0
    %2103 = vmatpush1.msra.mxu0 %v1875
    %2104 = vmatprep.subr.mxu0 0.0
    %2105 = vmatpush1.msra.mxu0 %v1874
    %2106 = vmatprep.subr.mxu0 0.0
    %2107 = vmatpush1.msra.mxu0 %v1873
    %2108 = vmatprep.subr.mxu0 0.0
    %2109 = vmatpush2.msra.mxu0 0.0
    %2110 = vmatprep.subr.mxu0 0.0
    %2111 = vmatpush2.msra.mxu0 0.0
    %2112 = vmatprep.subr.mxu0 0.0
    %2113 = vmatpush2.msra.mxu0 0.0
    %2114 = vmatprep.subr.mxu0 0.0
    %2115 = vmatpush2.msra.mxu0 0.0
    %2116 = vmatprep.subr.mxu0 0.0
    %2117 = vmatpush2.msra.mxu0 0.0
    %2118 = vmatprep.subr.mxu0 0.0
    %2119 = vmatpush2.msra.mxu0 0.0
    %2120 = vmatprep.subr.mxu0 0.0
    %2121 = vmatpush2.msra.mxu0 0.0
    %2122 = vmatprep.subr.mxu0 0.0
    %2123 = vmatpush2.msra.mxu0 0.0
    %2124 = vmatprep.subr.mxu0 0.0
    %2125 = vmatpush2.msra.mxu0 0.0
    %2126 = vmatprep.subr.mxu0 0.0
    %2127 = vmatpush2.msra.mxu0 0.0
    %2128 = vmatprep.subr.mxu0 0.0
    %2129 = vmatpush2.msra.mxu0 0.0
    %2130 = vmatprep.subr.mxu0 0.0
    %2131 = vmatpush2.msra.mxu0 0.0
    %2132 = vmatprep.subr.mxu0 0.0
    %2133 = vmatpush2.msra.mxu0 0.0
    %2134 = vmatprep.subr.mxu0 0.0
    %2135 = vmatpush2.msra.mxu0 0.0
    %2136 = vmatprep.subr.mxu0 0.0
    %2137 = vmatpush2.msra.mxu0 0.0
    %2138 = vmatprep.subr.mxu0 0.0
    %2139 = vmatpush2.msra.mxu0 0.0
    %2140 = vmatprep.mubr.f32.mxu0 0.0
    %2141 = vmatmul.mubr.f32.gmra.mxu0 %v2074
    %v2142 = vpop.f32.mrf.mxu0
    %v2143 = vadd.f32 0.0, %v2142
    %v2144 = vpop.f32.mrf.mxu0
    %2145 = vdwg.mxu0
    %v2146 = vadd.f32 %v2073, %v2143
    %v2147 = vtanh.pop %v2146
    %v2148 = vmul.f32 %v2147, 0.5
    %v2149 = vadd.f32 %v2148, 0.5
    %v2150 = vmul.f32 %v2149, %v2061
    %2152 = vrot.lane.b32.xlu0 %v2147, 64
    %v2153 = vpop.permute.xlu0 %2152
    %v2155 = vmul.f32 %v2149, %v2153
    %2157 = vrot.lane.b32.xlu0 %v2155, 32
    %v2158 = vpop.permute.xlu0 %2157
    %v2160 = vadd.f32 %v2150, %v2158
    %v2161 = vtanh.pop %v2160
    %2163 = vrot.lane.b32.xlu0 %v2161, 64
    %v2164 = vpop.permute.xlu0 %2163
    %v2166 = vmul.f32 %v2149, %v2164
    %2168 = vrot.lane.b32.xlu0 %v2166, 32
    %v2169 = vpop.permute.xlu0 %2168
    %2171 = vst.msk [vmem:[#allocation3 + $0x2] sm:$0x1] %vm228, %v2169
    %v2172 = vld [vmem:[#allocation2 + $0x3] sm:$0x1]
    %v2173 = vsel %vm129, %v2169, 0
    %2175 = vmatprep.subr.mxu0 0.0
    %2176 = vmatpush1.msra.mxu0 0.0
    %2177 = vmatprep.subr.mxu0 0.0
    %2178 = vmatpush1.msra.mxu0 0.0
    %2179 = vmatprep.subr.mxu0 0.0
    %2180 = vmatpush1.msra.mxu0 0.0
    %2181 = vmatprep.subr.mxu0 0.0
    %2182 = vmatpush1.msra.mxu0 0.0
    %2183 = vmatprep.subr.mxu0 0.0
    %2184 = vmatpush1.msra.mxu0 0.0
    %2185 = vmatprep.subr.mxu0 0.0
    %2186 = vmatpush1.msra.mxu0 0.0
    %2187 = vmatprep.subr.mxu0 0.0
    %2188 = vmatpush1.msra.mxu0 0.0
    %2189 = vmatprep.subr.mxu0 0.0
    %2190 = vmatpush1.msra.mxu0 0.0
    %2191 = vmatprep.subr.mxu0 0.0
    %2192 = vmatpush1.msra.mxu0 0.0
    %2193 = vmatprep.subr.mxu0 0.0
    %2194 = vmatpush1.msra.mxu0 0.0
    %2195 = vmatprep.subr.mxu0 0.0
    %2196 = vmatpush1.msra.mxu0 0.0
    %2197 = vmatprep.subr.mxu0 0.0
    %2198 = vmatpush1.msra.mxu0 0.0
    %2199 = vmatprep.subr.mxu0 0.0
    %2200 = vmatpush1.msra.mxu0 %v1876
    %2201 = vmatprep.subr.mxu0 0.0
    %2202 = vmatpush1.msra.mxu0 %v1875
    %2203 = vmatprep.subr.mxu0 0.0
    %2204 = vmatpush1.msra.mxu0 %v1874
    %2205 = vmatprep.subr.mxu0 0.0
    %2206 = vmatpush1.msra.mxu0 %v1873
    %2207 = vmatprep.subr.mxu0 0.0
    %2208 = vmatpush2.msra.mxu0 0.0
    %2209 = vmatprep.subr.mxu0 0.0
    %2210 = vmatpush2.msra.mxu0 0.0
    %2211 = vmatprep.subr.mxu0 0.0
    %2212 = vmatpush2.msra.mxu0 0.0
    %2213 = vmatprep.subr.mxu0 0.0
    %2214 = vmatpush2.msra.mxu0 0.0
    %2215 = vmatprep.subr.mxu0 0.0
    %2216 = vmatpush2.msra.mxu0 0.0
    %2217 = vmatprep.subr.mxu0 0.0
    %2218 = vmatpush2.msra.mxu0 0.0
    %2219 = vmatprep.subr.mxu0 0.0
    %2220 = vmatpush2.msra.mxu0 0.0
    %2221 = vmatprep.subr.mxu0 0.0
    %2222 = vmatpush2.msra.mxu0 0.0
    %2223 = vmatprep.subr.mxu0 0.0
    %2224 = vmatpush2.msra.mxu0 0.0
    %2225 = vmatprep.subr.mxu0 0.0
    %2226 = vmatpush2.msra.mxu0 0.0
    %2227 = vmatprep.subr.mxu0 0.0
    %2228 = vmatpush2.msra.mxu0 0.0
    %2229 = vmatprep.subr.mxu0 0.0
    %2230 = vmatpush2.msra.mxu0 0.0
    %2231 = vmatprep.subr.mxu0 0.0
    %2232 = vmatpush2.msra.mxu0 0.0
    %2233 = vmatprep.subr.mxu0 0.0
    %2234 = vmatpush2.msra.mxu0 0.0
    %2235 = vmatprep.subr.mxu0 0.0
    %2236 = vmatpush2.msra.mxu0 0.0
    %2237 = vmatprep.subr.mxu0 0.0
    %2238 = vmatpush2.msra.mxu0 0.0
    %2239 = vmatprep.mubr.f32.mxu0 0.0
    %2240 = vmatmul.mubr.f32.gmra.mxu0 %v2173
    %v2241 = vpop.f32.mrf.mxu0
    %v2242 = vadd.f32 0.0, %v2241
    %v2243 = vpop.f32.mrf.mxu0
    %2244 = vdwg.mxu0
    %v2245 = vadd.f32 %v2172, %v2242
    %v2246 = vtanh.pop %v2245
    %v2247 = vmul.f32 %v2246, 0.5
    %v2248 = vadd.f32 %v2247, 0.5
    %v2249 = vmul.f32 %v2248, %v2160
    %2251 = vrot.lane.b32.xlu0 %v2246, 64
    %v2252 = vpop.permute.xlu0 %2251
    %v2254 = vmul.f32 %v2248, %v2252
    %2256 = vrot.lane.b32.xlu0 %v2254, 32
    %v2257 = vpop.permute.xlu0 %2256
    %v2259 = vadd.f32 %v2249, %v2257
    %v2260 = vtanh.pop %v2259
    %2262 = vrot.lane.b32.xlu0 %v2260, 64
    %v2263 = vpop.permute.xlu0 %2262
    %v2265 = vmul.f32 %v2248, %v2263
    %2267 = vrot.lane.b32.xlu0 %v2265, 32
    %v2268 = vpop.permute.xlu0 %2267
    %2270 = vst.msk [vmem:[#allocation3 + $0x3] sm:$0x1] %vm228, %v2268
    %v2271 = vld [vmem:[#allocation2 + $0x4] sm:$0x1]
    %v2272 = vsel %vm129, %v2268, 0
    %2274 = vmatprep.subr.mxu0 0.0
    %2275 = vmatpush1.msra.mxu0 0.0
    %2276 = vmatprep.subr.mxu0 0.0
    %2277 = vmatpush1.msra.mxu0 0.0
    %2278 = vmatprep.subr.mxu0 0.0
    %2279 = vmatpush1.msra.mxu0 0.0
    %2280 = vmatprep.subr.mxu0 0.0
    %2281 = vmatpush1.msra.mxu0 0.0
    %2282 = vmatprep.subr.mxu0 0.0
    %2283 = vmatpush1.msra.mxu0 0.0
    %2284 = vmatprep.subr.mxu0 0.0
    %2285 = vmatpush1.msra.mxu0 0.0
    %2286 = vmatprep.subr.mxu0 0.0
    %2287 = vmatpush1.msra.mxu0 0.0
    %2288 = vmatprep.subr.mxu0 0.0
    %2289 = vmatpush1.msra.mxu0 0.0
    %2290 = vmatprep.subr.mxu0 0.0
    %2291 = vmatpush1.msra.mxu0 0.0
    %2292 = vmatprep.subr.mxu0 0.0
    %2293 = vmatpush1.msra.mxu0 0.0
    %2294 = vmatprep.subr.mxu0 0.0
    %2295 = vmatpush1.msra.mxu0 0.0
    %2296 = vmatprep.subr.mxu0 0.0
    %2297 = vmatpush1.msra.mxu0 0.0
    %2298 = vmatprep.subr.mxu0 0.0
    %2299 = vmatpush1.msra.mxu0 %v1876
    %2300 = vmatprep.subr.mxu0 0.0
    %2301 = vmatpush1.msra.mxu0 %v1875
    %2302 = vmatprep.subr.mxu0 0.0
    %2303 = vmatpush1.msra.mxu0 %v1874
    %2304 = vmatprep.subr.mxu0 0.0
    %2305 = vmatpush1.msra.mxu0 %v1873
    %2306 = vmatprep.subr.mxu0 0.0
    %2307 = vmatpush2.msra.mxu0 0.0
    %2308 = vmatprep.subr.mxu0 0.0
    %2309 = vmatpush2.msra.mxu0 0.0
    %2310 = vmatprep.subr.mxu0 0.0
    %2311 = vmatpush2.msra.mxu0 0.0
    %2312 = vmatprep.subr.mxu0 0.0
    %2313 = vmatpush2.msra.mxu0 0.0
    %2314 = vmatprep.subr.mxu0 0.0
    %2315 = vmatpush2.msra.mxu0 0.0
    %2316 = vmatprep.subr.mxu0 0.0
    %2317 = vmatpush2.msra.mxu0 0.0
    %2318 = vmatprep.subr.mxu0 0.0
    %2319 = vmatpush2.msra.mxu0 0.0
    %2320 = vmatprep.subr.mxu0 0.0
    %2321 = vmatpush2.msra.mxu0 0.0
    %2322 = vmatprep.subr.mxu0 0.0
    %2323 = vmatpush2.msra.mxu0 0.0
    %2324 = vmatprep.subr.mxu0 0.0
    %2325 = vmatpush2.msra.mxu0 0.0
    %2326 = vmatprep.subr.mxu0 0.0
    %2327 = vmatpush2.msra.mxu0 0.0
    %2328 = vmatprep.subr.mxu0 0.0
    %2329 = vmatpush2.msra.mxu0 0.0
    %2330 = vmatprep.subr.mxu0 0.0
    %2331 = vmatpush2.msra.mxu0 0.0
    %2332 = vmatprep.subr.mxu0 0.0
    %2333 = vmatpush2.msra.mxu0 0.0
    %2334 = vmatprep.subr.mxu0 0.0
    %2335 = vmatpush2.msra.mxu0 0.0
    %2336 = vmatprep.subr.mxu0 0.0
    %2337 = vmatpush2.msra.mxu0 0.0
    %2338 = vmatprep.mubr.f32.mxu0 0.0
    %2339 = vmatmul.mubr.f32.gmra.mxu0 %v2272
    %v2340 = vpop.f32.mrf.mxu0
    %v2341 = vadd.f32 0.0, %v2340
    %v2342 = vpop.f32.mrf.mxu0
    %2343 = vdwg.mxu0
    %v2344 = vadd.f32 %v2271, %v2341
    %v2345 = vtanh.pop %v2344
    %v2346 = vmul.f32 %v2345, 0.5
    %v2347 = vadd.f32 %v2346, 0.5
    %v2348 = vmul.f32 %v2347, %v2259
    %2350 = vrot.lane.b32.xlu0 %v2345, 64
    %v2351 = vpop.permute.xlu0 %2350
    %v2353 = vmul.f32 %v2347, %v2351
    %2355 = vrot.lane.b32.xlu0 %v2353, 32
    %v2356 = vpop.permute.xlu0 %2355
    %v2358 = vadd.f32 %v2348, %v2356
    %v2359 = vtanh.pop %v2358
    %2361 = vrot.lane.b32.xlu0 %v2359, 64
    %v2362 = vpop.permute.xlu0 %2361
    %v2364 = vmul.f32 %v2347, %v2362
    %2366 = vrot.lane.b32.xlu0 %v2364, 32
    %v2367 = vpop.permute.xlu0 %2366
    %2369 = vst.msk [vmem:[#allocation3 + $0x4] sm:$0x1] %vm228, %v2367
    %v2370 = vld [vmem:[#allocation2 + $0x5] sm:$0x1]
    %v2371 = vsel %vm129, %v2367, 0
    %2373 = vmatprep.subr.mxu0 0.0
    %2374 = vmatpush1.msra.mxu0 0.0
    %2375 = vmatprep.subr.mxu0 0.0
    %2376 = vmatpush1.msra.mxu0 0.0
    %2377 = vmatprep.subr.mxu0 0.0
    %2378 = vmatpush1.msra.mxu0 0.0
    %2379 = vmatprep.subr.mxu0 0.0
    %2380 = vmatpush1.msra.mxu0 0.0
    %2381 = vmatprep.subr.mxu0 0.0
    %2382 = vmatpush1.msra.mxu0 0.0
    %2383 = vmatprep.subr.mxu0 0.0
    %2384 = vmatpush1.msra.mxu0 0.0
    %2385 = vmatprep.subr.mxu0 0.0
    %2386 = vmatpush1.msra.mxu0 0.0
    %2387 = vmatprep.subr.mxu0 0.0
    %2388 = vmatpush1.msra.mxu0 0.0
    %2389 = vmatprep.subr.mxu0 0.0
    %2390 = vmatpush1.msra.mxu0 0.0
    %2391 = vmatprep.subr.mxu0 0.0
    %2392 = vmatpush1.msra.mxu0 0.0
    %2393 = vmatprep.subr.mxu0 0.0
    %2394 = vmatpush1.msra.mxu0 0.0
    %2395 = vmatprep.subr.mxu0 0.0
    %2396 = vmatpush1.msra.mxu0 0.0
    %2397 = vmatprep.subr.mxu0 0.0
    %2398 = vmatpush1.msra.mxu0 %v1876
    %2399 = vmatprep.subr.mxu0 0.0
    %2400 = vmatpush1.msra.mxu0 %v1875
    %2401 = vmatprep.subr.mxu0 0.0
    %2402 = vmatpush1.msra.mxu0 %v1874
    %2403 = vmatprep.subr.mxu0 0.0
    %2404 = vmatpush1.msra.mxu0 %v1873
    %2405 = vmatprep.subr.mxu0 0.0
    %2406 = vmatpush2.msra.mxu0 0.0
    %2407 = vmatprep.subr.mxu0 0.0
    %2408 = vmatpush2.msra.mxu0 0.0
    %2409 = vmatprep.subr.mxu0 0.0
    %2410 = vmatpush2.msra.mxu0 0.0
    %2411 = vmatprep.subr.mxu0 0.0
    %2412 = vmatpush2.msra.mxu0 0.0
    %2413 = vmatprep.subr.mxu0 0.0
    %2414 = vmatpush2.msra.mxu0 0.0
    %2415 = vmatprep.subr.mxu0 0.0
    %2416 = vmatpush2.msra.mxu0 0.0
    %2417 = vmatprep.subr.mxu0 0.0
    %2418 = vmatpush2.msra.mxu0 0.0
    %2419 = vmatprep.subr.mxu0 0.0
    %2420 = vmatpush2.msra.mxu0 0.0
    %2421 = vmatprep.subr.mxu0 0.0
    %2422 = vmatpush2.msra.mxu0 0.0
    %2423 = vmatprep.subr.mxu0 0.0
    %2424 = vmatpush2.msra.mxu0 0.0
    %2425 = vmatprep.subr.mxu0 0.0
    %2426 = vmatpush2.msra.mxu0 0.0
    %2427 = vmatprep.subr.mxu0 0.0
    %2428 = vmatpush2.msra.mxu0 0.0
    %2429 = vmatprep.subr.mxu0 0.0
    %2430 = vmatpush2.msra.mxu0 0.0
    %2431 = vmatprep.subr.mxu0 0.0
    %2432 = vmatpush2.msra.mxu0 0.0
    %2433 = vmatprep.subr.mxu0 0.0
    %2434 = vmatpush2.msra.mxu0 0.0
    %2435 = vmatprep.subr.mxu0 0.0
    %2436 = vmatpush2.msra.mxu0 0.0
    %2437 = vmatprep.mubr.f32.mxu0 0.0
    %2438 = vmatmul.mubr.f32.gmra.mxu0 %v2371
    %v2439 = vpop.f32.mrf.mxu0
    %v2440 = vadd.f32 0.0, %v2439
    %v2441 = vpop.f32.mrf.mxu0
    %2442 = vdwg.mxu0
    %v2443 = vadd.f32 %v2370, %v2440
    %v2444 = vtanh.pop %v2443
    %v2445 = vmul.f32 %v2444, 0.5
    %v2446 = vadd.f32 %v2445, 0.5
    %v2447 = vmul.f32 %v2446, %v2358
    %2449 = vrot.lane.b32.xlu0 %v2444, 64
    %v2450 = vpop.permute.xlu0 %2449
    %v2452 = vmul.f32 %v2446, %v2450
    %2454 = vrot.lane.b32.xlu0 %v2452, 32
    %v2455 = vpop.permute.xlu0 %2454
    %v2457 = vadd.f32 %v2447, %v2455
    %v2458 = vtanh.pop %v2457
    %2460 = vrot.lane.b32.xlu0 %v2458, 64
    %v2461 = vpop.permute.xlu0 %2460
    %v2463 = vmul.f32 %v2446, %v2461
    %2465 = vrot.lane.b32.xlu0 %v2463, 32
    %v2466 = vpop.permute.xlu0 %2465
    %2468 = vst.msk [vmem:[#allocation3 + $0x5] sm:$0x1] %vm228, %v2466
    %v2469 = vld [vmem:[#allocation2 + $0x6] sm:$0x1]
    %v2470 = vsel %vm129, %v2466, 0
    %2472 = vmatprep.subr.mxu0 0.0
    %2473 = vmatpush1.msra.mxu0 0.0
    %2474 = vmatprep.subr.mxu0 0.0
    %2475 = vmatpush1.msra.mxu0 0.0
    %2476 = vmatprep.subr.mxu0 0.0
    %2477 = vmatpush1.msra.mxu0 0.0
    %2478 = vmatprep.subr.mxu0 0.0
    %2479 = vmatpush1.msra.mxu0 0.0
    %2480 = vmatprep.subr.mxu0 0.0
    %2481 = vmatpush1.msra.mxu0 0.0
    %2482 = vmatprep.subr.mxu0 0.0
    %2483 = vmatpush1.msra.mxu0 0.0
    %2484 = vmatprep.subr.mxu0 0.0
    %2485 = vmatpush1.msra.mxu0 0.0
    %2486 = vmatprep.subr.mxu0 0.0
    %2487 = vmatpush1.msra.mxu0 0.0
    %2488 = vmatprep.subr.mxu0 0.0
    %2489 = vmatpush1.msra.mxu0 0.0
    %2490 = vmatprep.subr.mxu0 0.0
    %2491 = vmatpush1.msra.mxu0 0.0
    %2492 = vmatprep.subr.mxu0 0.0
    %2493 = vmatpush1.msra.mxu0 0.0
    %2494 = vmatprep.subr.mxu0 0.0
    %2495 = vmatpush1.msra.mxu0 0.0
    %2496 = vmatprep.subr.mxu0 0.0
    %2497 = vmatpush1.msra.mxu0 %v1876
    %2498 = vmatprep.subr.mxu0 0.0
    %2499 = vmatpush1.msra.mxu0 %v1875
    %2500 = vmatprep.subr.mxu0 0.0
    %2501 = vmatpush1.msra.mxu0 %v1874
    %2502 = vmatprep.subr.mxu0 0.0
    %2503 = vmatpush1.msra.mxu0 %v1873
    %2504 = vmatprep.subr.mxu0 0.0
    %2505 = vmatpush2.msra.mxu0 0.0
    %2506 = vmatprep.subr.mxu0 0.0
    %2507 = vmatpush2.msra.mxu0 0.0
    %2508 = vmatprep.subr.mxu0 0.0
    %2509 = vmatpush2.msra.mxu0 0.0
    %2510 = vmatprep.subr.mxu0 0.0
    %2511 = vmatpush2.msra.mxu0 0.0
    %2512 = vmatprep.subr.mxu0 0.0
    %2513 = vmatpush2.msra.mxu0 0.0
    %2514 = vmatprep.subr.mxu0 0.0
    %2515 = vmatpush2.msra.mxu0 0.0
    %2516 = vmatprep.subr.mxu0 0.0
    %2517 = vmatpush2.msra.mxu0 0.0
    %2518 = vmatprep.subr.mxu0 0.0
    %2519 = vmatpush2.msra.mxu0 0.0
    %2520 = vmatprep.subr.mxu0 0.0
    %2521 = vmatpush2.msra.mxu0 0.0
    %2522 = vmatprep.subr.mxu0 0.0
    %2523 = vmatpush2.msra.mxu0 0.0
    %2524 = vmatprep.subr.mxu0 0.0
    %2525 = vmatpush2.msra.mxu0 0.0
    %2526 = vmatprep.subr.mxu0 0.0
    %2527 = vmatpush2.msra.mxu0 0.0
    %2528 = vmatprep.subr.mxu0 0.0
    %2529 = vmatpush2.msra.mxu0 0.0
    %2530 = vmatprep.subr.mxu0 0.0
    %2531 = vmatpush2.msra.mxu0 0.0
    %2532 = vmatprep.subr.mxu0 0.0
    %2533 = vmatpush2.msra.mxu0 0.0
    %2534 = vmatprep.subr.mxu0 0.0
    %2535 = vmatpush2.msra.mxu0 0.0
    %2536 = vmatprep.mubr.f32.mxu0 0.0
    %2537 = vmatmul.mubr.f32.gmra.mxu0 %v2470
    %v2538 = vpop.f32.mrf.mxu0
    %v2539 = vadd.f32 0.0, %v2538
    %v2540 = vpop.f32.mrf.mxu0
    %2541 = vdwg.mxu0
    %v2542 = vadd.f32 %v2469, %v2539
    %v2543 = vtanh.pop %v2542
    %v2544 = vmul.f32 %v2543, 0.5
    %v2545 = vadd.f32 %v2544, 0.5
    %v2546 = vmul.f32 %v2545, %v2457
    %2548 = vrot.lane.b32.xlu0 %v2543, 64
    %v2549 = vpop.permute.xlu0 %2548
    %v2551 = vmul.f32 %v2545, %v2549
    %2553 = vrot.lane.b32.xlu0 %v2551, 32
    %v2554 = vpop.permute.xlu0 %2553
    %v2556 = vadd.f32 %v2546, %v2554
    %v2557 = vtanh.pop %v2556
    %2559 = vrot.lane.b32.xlu0 %v2557, 64
    %v2560 = vpop.permute.xlu0 %2559
    %v2562 = vmul.f32 %v2545, %v2560
    %2564 = vrot.lane.b32.xlu0 %v2562, 32
    %v2565 = vpop.permute.xlu0 %2564
    %2567 = vst.msk [vmem:[#allocation3 + $0x6] sm:$0x1] %vm228, %v2565
    %v2568 = vld [vmem:[#allocation2 + $0x7] sm:$0x1]
    %v2569 = vsel %vm129, %v2565, 0
    %2571 = vmatprep.subr.mxu0 0.0
    %2572 = vmatpush1.msra.mxu0 0.0
    %2573 = vmatprep.subr.mxu0 0.0
    %2574 = vmatpush1.msra.mxu0 0.0
    %2575 = vmatprep.subr.mxu0 0.0
    %2576 = vmatpush1.msra.mxu0 0.0
    %2577 = vmatprep.subr.mxu0 0.0
    %2578 = vmatpush1.msra.mxu0 0.0
    %2579 = vmatprep.subr.mxu0 0.0
    %2580 = vmatpush1.msra.mxu0 0.0
    %2581 = vmatprep.subr.mxu0 0.0
    %2582 = vmatpush1.msra.mxu0 0.0
    %2583 = vmatprep.subr.mxu0 0.0
    %2584 = vmatpush1.msra.mxu0 0.0
    %2585 = vmatprep.subr.mxu0 0.0
    %2586 = vmatpush1.msra.mxu0 0.0
    %2587 = vmatprep.subr.mxu0 0.0
    %2588 = vmatpush1.msra.mxu0 0.0
    %2589 = vmatprep.subr.mxu0 0.0
    %2590 = vmatpush1.msra.mxu0 0.0
    %2591 = vmatprep.subr.mxu0 0.0
    %2592 = vmatpush1.msra.mxu0 0.0
    %2593 = vmatprep.subr.mxu0 0.0
    %2594 = vmatpush1.msra.mxu0 0.0
    %2595 = vmatprep.subr.mxu0 0.0
    %2596 = vmatpush1.msra.mxu0 %v1876
    %2597 = vmatprep.subr.mxu0 0.0
    %2598 = vmatpush1.msra.mxu0 %v1875
    %2599 = vmatprep.subr.mxu0 0.0
    %2600 = vmatpush1.msra.mxu0 %v1874
    %2601 = vmatprep.subr.mxu0 0.0
    %2602 = vmatpush1.msra.mxu0 %v1873
    %2603 = vmatprep.subr.mxu0 0.0
    %2604 = vmatpush2.msra.mxu0 0.0
    %2605 = vmatprep.subr.mxu0 0.0
    %2606 = vmatpush2.msra.mxu0 0.0
    %2607 = vmatprep.subr.mxu0 0.0
    %2608 = vmatpush2.msra.mxu0 0.0
    %2609 = vmatprep.subr.mxu0 0.0
    %2610 = vmatpush2.msra.mxu0 0.0
    %2611 = vmatprep.subr.mxu0 0.0
    %2612 = vmatpush2.msra.mxu0 0.0
    %2613 = vmatprep.subr.mxu0 0.0
    %2614 = vmatpush2.msra.mxu0 0.0
    %2615 = vmatprep.subr.mxu0 0.0
    %2616 = vmatpush2.msra.mxu0 0.0
    %2617 = vmatprep.subr.mxu0 0.0
    %2618 = vmatpush2.msra.mxu0 0.0
    %2619 = vmatprep.subr.mxu0 0.0
    %2620 = vmatpush2.msra.mxu0 0.0
    %2621 = vmatprep.subr.mxu0 0.0
    %2622 = vmatpush2.msra.mxu0 0.0
    %2623 = vmatprep.subr.mxu0 0.0
    %2624 = vmatpush2.msra.mxu0 0.0
    %2625 = vmatprep.subr.mxu0 0.0
    %2626 = vmatpush2.msra.mxu0 0.0
    %2627 = vmatprep.subr.mxu0 0.0
    %2628 = vmatpush2.msra.mxu0 0.0
    %2629 = vmatprep.subr.mxu0 0.0
    %2630 = vmatpush2.msra.mxu0 0.0
    %2631 = vmatprep.subr.mxu0 0.0
    %2632 = vmatpush2.msra.mxu0 0.0
    %2633 = vmatprep.subr.mxu0 0.0
    %2634 = vmatpush2.msra.mxu0 0.0
    %2635 = vmatprep.mubr.f32.mxu0 0.0
    %2636 = vmatmul.mubr.f32.gmra.mxu0 %v2569
    %v2637 = vpop.f32.mrf.mxu0
    %v2638 = vadd.f32 0.0, %v2637
    %v2639 = vpop.f32.mrf.mxu0
    %2640 = vdwg.mxu0
    %v2641 = vadd.f32 %v2568, %v2638
    %v2642 = vtanh.pop %v2641
    %v2643 = vmul.f32 %v2642, 0.5
    %v2644 = vadd.f32 %v2643, 0.5
    %v2645 = vmul.f32 %v2644, %v2556
    %2647 = vrot.lane.b32.xlu0 %v2642, 64
    %v2648 = vpop.permute.xlu0 %2647
    %v2650 = vmul.f32 %v2644, %v2648
    %2652 = vrot.lane.b32.xlu0 %v2650, 32
    %v2653 = vpop.permute.xlu0 %2652
    %v2655 = vadd.f32 %v2645, %v2653
    %v2656 = vtanh.pop %v2655
    %2658 = vrot.lane.b32.xlu0 %v2656, 64
    %v2659 = vpop.permute.xlu0 %2658
    %v2661 = vmul.f32 %v2644, %v2659
    %2663 = vrot.lane.b32.xlu0 %v2661, 32
    %v2664 = vpop.permute.xlu0 %2663
    %2666 = vst.msk [vmem:[#allocation3 + $0x7] sm:$0x1] %vm228, %v2664
    %2667 = vst.msk [vmem:[%s4 + $0x2] sm:$0x1] %vm228, %v2664
    %2669 = vrot.lane.b32.xlu0 %v2655, 96
    %v2670 = vpop.permute.xlu0 %2669
    %2672 = vst.msk [vmem:[%s4 + $0x3] sm:$0x1] %vm228, %v2670
    %v2673 = vld [vmem:[#allocation3] sm:$0xff]
    %v2674 = vld [vmem:[%s2 + $0x28] sm:$0xff]
    %v2675 = vld [vmem:[%s2 + $0x30] sm:$0xff]
    %v2676 = vld [vmem:[%s2 + $0x38] sm:$0xff]
    %v2677 = vld [vmem:[%s2 + $0x40] sm:$0xff]
    %v2678 = vld [vmem:[%s2 + $0x48] sm:$0x1]
    %v2679 = vlaneseq
    %v2680 = vshrl.u32 %v2679, 7
    %v2681 = vsub.s32 0, %v2680
    %v2682 = vrot.slane %v2678, %v2681
    %v2684 = vsel %vm129, %v2673, 0
    %2686 = vmatprep.subr.mxu0 0.0
    %2687 = vmatpush1.msra.mxu0 0.0
    %2688 = vmatprep.subr.mxu0 0.0
    %2689 = vmatpush1.msra.mxu0 0.0
    %2690 = vmatprep.subr.mxu0 0.0
    %2691 = vmatpush1.msra.mxu0 0.0
    %2692 = vmatprep.subr.mxu0 0.0
    %2693 = vmatpush1.msra.mxu0 0.0
    %2694 = vmatprep.subr.mxu0 0.0
    %2695 = vmatpush1.msra.mxu0 0.0
    %2696 = vmatprep.subr.mxu0 0.0
    %2697 = vmatpush1.msra.mxu0 0.0
    %2698 = vmatprep.subr.mxu0 0.0
    %2699 = vmatpush1.msra.mxu0 0.0
    %2700 = vmatprep.subr.mxu0 0.0
    %2701 = vmatpush1.msra.mxu0 0.0
    %2702 = vmatprep.subr.mxu0 0.0
    %2703 = vmatpush1.msra.mxu0 0.0
    %2704 = vmatprep.subr.mxu0 0.0
    %2705 = vmatpush1.msra.mxu0 0.0
    %2706 = vmatprep.subr.mxu0 0.0
    %2707 = vmatpush1.msra.mxu0 0.0
    %2708 = vmatprep.subr.mxu0 0.0
    %2709 = vmatpush1.msra.mxu0 0.0
    %2710 = vmatprep.subr.mxu0 0.0
    %2711 = vmatpush1.msra.mxu0 %v2677
    %2712 = vmatprep.subr.mxu0 0.0
    %2713 = vmatpush1.msra.mxu0 %v2676
    %2714 = vmatprep.subr.mxu0 0.0
    %2715 = vmatpush1.msra.mxu0 %v2675
    %2716 = vmatprep.subr.mxu0 0.0
    %2717 = vmatpush1.msra.mxu0 %v2674
    %2718 = vmatprep.subr.mxu0 0.0
    %2719 = vmatpush2.msra.mxu0 0.0
    %2720 = vmatprep.subr.mxu0 0.0
    %2721 = vmatpush2.msra.mxu0 0.0
    %2722 = vmatprep.subr.mxu0 0.0
    %2723 = vmatpush2.msra.mxu0 0.0
    %2724 = vmatprep.subr.mxu0 0.0
    %2725 = vmatpush2.msra.mxu0 0.0
    %2726 = vmatprep.subr.mxu0 0.0
    %2727 = vmatpush2.msra.mxu0 0.0
    %2728 = vmatprep.subr.mxu0 0.0
    %2729 = vmatpush2.msra.mxu0 0.0
    %2730 = vmatprep.subr.mxu0 0.0
    %2731 = vmatpush2.msra.mxu0 0.0
    %2732 = vmatprep.subr.mxu0 0.0
    %2733 = vmatpush2.msra.mxu0 0.0
    %2734 = vmatprep.subr.mxu0 0.0
    %2735 = vmatpush2.msra.mxu0 0.0
    %2736 = vmatprep.subr.mxu0 0.0
    %2737 = vmatpush2.msra.mxu0 0.0
    %2738 = vmatprep.subr.mxu0 0.0
    %2739 = vmatpush2.msra.mxu0 0.0
    %2740 = vmatprep.subr.mxu0 0.0
    %2741 = vmatpush2.msra.mxu0 0.0
    %2742 = vmatprep.subr.mxu0 0.0
    %2743 = vmatpush2.msra.mxu0 0.0
    %2744 = vmatprep.subr.mxu0 0.0
    %2745 = vmatpush2.msra.mxu0 0.0
    %2746 = vmatprep.subr.mxu0 0.0
    %2747 = vmatpush2.msra.mxu0 0.0
    %2748 = vmatprep.subr.mxu0 0.0
    %2749 = vmatpush2.msra.mxu0 0.0
    %2750 = vmatprep.mubr.f32.mxu0 0.0
    %2751 = vmatmul.mubr.f32.gmra.mxu0 %v2684
    %v2752 = vpop.f32.mrf.mxu0
    %v2753 = vadd.f32 %v2682, %v2752
    %v2754 = vpop.f32.mrf.mxu0
    %2755 = vdwg.mxu0
    %2756 = vst.msk [vmem:[#allocation7] sm:$0xff] %vm129, %v2753
    // Predicated region
    $region18: #{onnx_rnnp_forward.1} parent=1 // pred_check
      _
    $region19: #{onnx_rnnp_forward.1} parent=1 // pred_check_branch
      %2758 = sbr.rel (0) target = $region21
    $region20: #{onnx_rnnp_forward.1} parent=1 // pred_region
      %s2760 = ssub.s32 128, 128
      %2761 = vsyncadd [#allocation6], %s2760
      %s2763 = sshll.u32 [#allocation7], 4
      %s2764 = int_to_ptr.vmem [resolvable:$true] %s2763
      %2766 = dma.vmem_to_hbm [thread:$0]  %s2764, 128, %s3, [#allocation6]
    $region21: #{onnx_rnnp_forward.1} parent=1 // pred_fallthru
      _
    // Predicated region
    $region22: #{onnx_rnnp_forward.1} parent=1 // pred_check
      _
    $region23: #{onnx_rnnp_forward.1} parent=1 // pred_check_branch
      %2768 = sbr.rel (0) target = $region25
    $region24: #{onnx_rnnp_forward.1} parent=1 // pred_region
      _
    $region25: #{onnx_rnnp_forward.1} parent=1 // pred_fallthru
      _
    // Predicated region
    $region26: #{onnx_rnnp_forward.1} parent=1 // pred_check
      _
    $region27: #{onnx_rnnp_forward.1} parent=1 // pred_check_branch
      %2770 = sbr.rel (0) target = $region29
    $region28: #{onnx_rnnp_forward.1} parent=1 // pred_region
      %2771 = dma.done [#allocation6], 128
    $region29: #{onnx_rnnp_forward.1} parent=1 // pred_fallthru
      _
    // Predicated region
    $region30: #{onnx_rnnp_forward.1} parent=1 // pred_check
      _
    $region31: #{onnx_rnnp_forward.1} parent=1 // pred_check_branch
      %2773 = sbr.rel (0) target = $region33
    $region32: #{onnx_rnnp_forward.1} parent=1 // pred_region
      _
    $region33: #{onnx_rnnp_forward.1} parent=1 // pred_fallthru
      _
    %2774 = vsyncpa [#allocation5], 1
    %2775 = vsyncpa [#allocation6], 1

</llo_original>
